<compile_context>
chip_gen: v5e
topology: v5e:2x2
jax: 0.10.0
libtpu: 0.0.40
codegen_flags: <defaults>
</compile_context>

<pallas_src>
import functools

import jax
import jax.numpy as jnp
from jax import lax
from jax.experimental import pallas as pl
from jax.experimental.pallas import tpu as pltpu


# --------------------------------------------------------------------------
# small helpers
# --------------------------------------------------------------------------
def _ceil_to(n, m):
    return ((n + m - 1) // m) * m


def _bdot(a, b):
    """bf16 MXU matmul with f32 accumulation."""
    return jnp.dot(a.astype(jnp.bfloat16), b.astype(jnp.bfloat16),
                   preferred_element_type=jnp.float32)


def _mosaic_params(est_block_bytes, dims):
    """CompilerParams with an explicit scoped-VMEM limit sized from the
    estimated block footprint (default scoped limit is only 16/32 MiB)."""
    limit = int(min(max(2 * est_block_bytes + (16 << 20), 32 << 20), 100 << 20))
    return pltpu.CompilerParams(dimension_semantics=dims,
                                vmem_limit_bytes=limit)


def _probe_single_buffered_weights():
    """Grid-invariant weight blocks don't need double-buffering.  Probe (once,
    eagerly) whether this Pallas build supports pipeline_mode=pl.Buffered(1);
    fall back to default (double-buffered) specs on any failure."""
    try:
        def k(x_ref, w_ref, b_ref, o_ref):
            o_ref[...] = x_ref[...] + w_ref[...] + b_ref[...]

        x = jnp.ones((16, 16), jnp.float32)
        w = jnp.full((8, 16), 2.0, jnp.float32)
        b = jnp.full((1, 16), 3.0, jnp.float32)
        out = pl.pallas_call(
            k, grid=(2,),
            in_specs=[pl.BlockSpec((8, 16), lambda i: (i, 0)),
                      pl.BlockSpec((8, 16), lambda i: (0, 0),
                                   pipeline_mode=pl.Buffered(1)),
                      pl.BlockSpec((1, 16), lambda i: (0, 0),
                                   pipeline_mode=pl.Buffered(1))],
            out_specs=pl.BlockSpec((8, 16), lambda i: (i, 0)),
            out_shape=jax.ShapeDtypeStruct((16, 16), jnp.float32),
        )(x, w, b)
        out = jax.block_until_ready(out)
        if not bool(jnp.all(out == 6.0)):
            return {}
        return {"pipeline_mode": pl.Buffered(1)}
    except Exception:  # any failure -> plain double-buffered specs
        return {}


# evaluated eagerly at import (must not run under a jit trace)
_INVARIANT_SPEC_KW = _probe_single_buffered_weights()


def _invariant_spec(shape):
    """BlockSpec for a grid-invariant (weight/bias) operand."""
    return pl.BlockSpec(shape, lambda *_: (0,) * len(shape),
                        **_INVARIANT_SPEC_KW)


# --------------------------------------------------------------------------
# Kernel 1: tiled linear  y = [relu](x @ W + b)
#   grid = (row blocks ["parallel"], K-reduction blocks ["arbitrary", last])
#   Accumulates straight into the f32 output block (resident across K).
# --------------------------------------------------------------------------
def _linear_kernel(x_ref, w_ref, b_ref, o_ref, *, relu):
    @pl.when(pl.program_id(1) == 0)
    def _():
        o_ref[...] = jnp.zeros_like(o_ref)

    o_ref[...] += _bdot(x_ref[...], w_ref[...])

    @pl.when(pl.program_id(1) == pl.num_programs(1) - 1)
    def _():
        r = o_ref[...] + b_ref[...]
        o_ref[...] = jnp.maximum(r, 0.0) if relu else r


def tiled_linear(x2d, w, b=None, *, relu=False, tm_cap=256, tk_cap=1024):
    """Used for the (pre-masked) pathway CustomizedLinear and the classifier's
    first Linear.  M / K are zero-padded to the tile so awkward sizes never
    force a full-array weight block."""
    M, K = x2d.shape
    N = w.shape[1]
    if b is None:
        b = jnp.zeros((1, N), jnp.float32)

    tm = M if M <= tm_cap else tm_cap                 # tm_cap multiple of 8
    tk = K if K <= tk_cap else tk_cap                 # tk_cap multiple of 128
    Mp, Kp = _ceil_to(M, tm), _ceil_to(K, tk)
    if Mp != M or Kp != K:
        x2d = jnp.pad(x2d, ((0, Mp - M), (0, Kp - K)))
    if Kp != K:
        w = jnp.pad(w, ((0, Kp - K), (0, 0)))

    est = 2 * (tm * tk * x2d.dtype.itemsize + tk * N * w.dtype.itemsize
               + tm * N * 4) + N * 4
    out = pl.pallas_call(
        functools.partial(_linear_kernel, relu=relu),
        grid=(Mp // tm, Kp // tk),
        in_specs=[pl.BlockSpec((tm, tk), lambda i, k: (i, k)),
                  pl.BlockSpec((tk, N), lambda i, k: (k, 0)),
                  _invariant_spec((1, N))],
        out_specs=pl.BlockSpec((tm, N), lambda i, k: (i, 0)),
        out_shape=jax.ShapeDtypeStruct((Mp, N), jnp.float32),
        compiler_params=_mosaic_params(est, ("parallel", "arbitrary")),
    )(x2d, w, b)
    return out[:M] if Mp != M else out


# --------------------------------------------------------------------------
# In-kernel bodies used by the fused Evoformer layer kernel
# --------------------------------------------------------------------------
def _attn_body(x, bias, wq, wkv, wg, bg, wo, bo, *, heads, dim_head, q_block):
    """Multi-head attention with optional additive bias, sigmoid gating and
    output projection.  x: (N, D) f32.  Queries are processed in blocks of
    q_block rows so the (q, N) softmax temporaries stay bounded.  The scale
    dim_head**-0.5 is pre-folded into wq (and beta, where used, into wo/bo)."""
    n = x.shape[0]
    inner = heads * dim_head
    xb = x.astype(jnp.bfloat16)
    kv = jnp.dot(xb, wkv, preferred_element_type=jnp.float32)       # (n, 2*inner)
    k = kv[:, :inner].astype(jnp.bfloat16)
    v = kv[:, inner:].astype(jnp.bfloat16)

    out_blocks = []
    for q0 in range(0, n, q_block):
        qb = min(q_block, n - q0)
        xq = xb[q0:q0 + qb]
        q = jnp.dot(xq, wq, preferred_element_type=jnp.float32)     # (qb, inner)
        gates = jax.nn.sigmoid(
            jnp.dot(xq, wg, preferred_element_type=jnp.float32) + bg)
        head_outs = []
        for h in range(heads):
            sl = slice(h * dim_head, (h + 1) * dim_head)
            dots = lax.dot_general(q[:, sl].astype(jnp.bfloat16), k[:, sl],
                                   (((1,), (1,)), ((), ())),
                                   preferred_element_type=jnp.float32)  # (qb, n)
            if bias is not None:
                dots = dots + bias[q0:q0 + qb, :]
            dots = dots - jnp.max(dots, axis=-1, keepdims=True)
            e = jnp.exp(dots)
            attn = e * pl.reciprocal(jnp.sum(e, axis=-1, keepdims=True),
                                     approx=True)
            head_outs.append(jnp.dot(attn.astype(jnp.bfloat16), v[:, sl],
                                     preferred_element_type=jnp.float32))
        ob = jnp.concatenate(head_outs, axis=-1) * gates             # (qb, inner)
        out_blocks.append(jnp.dot(ob.astype(jnp.bfloat16), wo,
                                  preferred_element_type=jnp.float32) + bo)
    if len(out_blocks) == 1:
        return out_blocks[0]
    return jnp.concatenate(out_blocks, axis=0)


def _ffn_body(x, w1_ref, b1_ref, w2_ref, b2_ref, *, h_block):
    """GEGLU feed-forward: Linear -> a * gelu(g) -> Linear, with the hidden
    dim processed in h_block chunks so the (N, 8*dim) intermediate is never
    materialized.  Weight refs are sliced per chunk.  x: (N, D) f32."""
    hidden, d_out = w2_ref.shape
    xb = x.astype(jnp.bfloat16)
    acc = jnp.zeros((x.shape[0], d_out), jnp.float32)
    for c0 in range(0, hidden, h_block):
        hb = min(h_block, hidden - c0)
        a = jnp.dot(xb, w1_ref[:, c0:c0 + hb],
                    preferred_element_type=jnp.float32) + b1_ref[:, c0:c0 + hb]
        g = jnp.dot(xb, w1_ref[:, hidden + c0:hidden + c0 + hb],
                    preferred_element_type=jnp.float32) \
            + b1_ref[:, hidden + c0:hidden + c0 + hb]
        # exact (erf) GELU, matching torch F.gelu default -- f32 math
        gelu_g = 0.5 * g * (1.0 + lax.erf(g * 0.7071067811865476))
        acc = acc + jnp.dot((a * gelu_g).astype(jnp.bfloat16),
                            w2_ref[c0:c0 + hb, :],
                            preferred_element_type=jnp.float32)
    return acc + b2_ref[...]


# --------------------------------------------------------------------------
# Kernel 2: one fused Evoformer layer per batch element
#   row-attn (dim=S, bias=x) -> row-FF (dim=S) -> col-attn (dim=P, beta
#   folded into weights) -> col-FF (dim=P) -> x += outer_mean_s(m)
# --------------------------------------------------------------------------
def _evoformer_layer_kernel(
        m_ref, x_ref,
        r_wq, r_wkv, r_wg, r_bg, r_wo, r_bo,
        rf_w1, rf_b1, rf_w2, rf_b2,
        c_wq, c_wkv, c_wg, c_bg, c_wo, c_bo,
        cf_w1, cf_b1, cf_w2, cf_b2,
        m_out_ref, x_out_ref,
        *, heads, dim_head, inv_s, q_block, h_block):
    m = m_ref[0]                                   # (S, P) f32
    x = x_ref[0]                                   # (P, P) f32

    # ---- row phase on the (P, S) view: one transpose in, one transpose out
    mt = m.T                                       # (P, S)
    mt = _attn_body(mt, x, r_wq[...], r_wkv[...], r_wg[...], r_bg[...],
                    r_wo[...], r_bo[...],
                    heads=heads, dim_head=dim_head, q_block=q_block) + mt
    mt = _ffn_body(mt, rf_w1, rf_b1, rf_w2, rf_b2, h_block=h_block) + mt
    m = mt.T                                       # (S, P)

    # ---- column phase on the (S, P) view (beta folded into c_wo / c_bo) ----
    m = _attn_body(m, None, c_wq[...], c_wkv[...], c_wg[...], c_bg[...],
                   c_wo[...], c_bo[...],
                   heads=heads, dim_head=dim_head, q_block=q_block) + m
    m = _ffn_body(m, cf_w1, cf_b1, cf_w2, cf_b2, h_block=h_block) + m

    # ---- outer mean over modalities (f32) + residual into crosstalk x ------
    outer = lax.dot_general(m * inv_s, m, (((0,), (0,)), ((), ())),
                            preferred_element_type=jnp.float32)        # (P, P)
    x_out_ref[0] = x + outer
    m_out_ref[0] = m


def evoformer_layer(m, x, lp, *, heads, dim_head, x_shared, q_block, h_block):
    B, S, P = m.shape
    kernel = functools.partial(_evoformer_layer_kernel, heads=heads,
                               dim_head=dim_head, inv_s=1.0 / S,
                               q_block=q_block, h_block=h_block)
    ra, rf = lp['row_attn'], lp['ff_row']
    ca, cf = lp['col_attn'], lp['ff_col']
    weights = [ra['wq'], ra['wkv'], ra['wg'], ra['bg'], ra['wo'], ra['bo'],
               rf['w1'], rf['b1'], rf['w2'], rf['b2'],
               ca['wq'], ca['wkv'], ca['wg'], ca['bg'], ca['wo'], ca['bo'],
               cf['w1'], cf['b1'], cf['w2'], cf['b2']]

    # x: shared (1,P,P) crosstalk for the first layer (constant index map, no
    # HBM tiling), per-batch (B,P,P) afterwards.
    if x_shared:
        x_spec = _invariant_spec((1, P, P))
    else:
        x_spec = pl.BlockSpec((1, P, P), lambda b: (b, 0, 0))

    in_specs = [pl.BlockSpec((1, S, P), lambda b: (b, 0, 0)), x_spec]
    # grid-invariant weights: single-buffered when supported (saves VMEM).
    # TODO(synk): verify via pl.lower_as_mlir that these are not re-DMA'd per
    # batch step; if they are, hoist the big FFN weights to pl.ANY + one-time
    # manual copy into scratch.
    in_specs += [_invariant_spec(w.shape) for w in weights]

    # m always updated in place; x only once it is per-batch (after layer 0)
    aliases = {0: 0} if x_shared else {0: 0, 1: 1}

    w_bytes = sum(int(w.size) * w.dtype.itemsize for w in weights)
    w_bytes *= 1 if _INVARIANT_SPEC_KW else 2
    est = (4 * S * P * 4 + 4 * P * P * 4 + w_bytes
           + 4 * min(q_block, P) * P * 4 + 2 * P * min(h_block, 4 * P) * 4)

    m_out, x_out = pl.pallas_call(
        kernel,
        grid=(B,),
        in_specs=in_specs,
        out_specs=(pl.BlockSpec((1, S, P), lambda b: (b, 0, 0)),
                   pl.BlockSpec((1, P, P), lambda b: (b, 0, 0))),
        out_shape=(jax.ShapeDtypeStruct((B, S, P), jnp.float32),
                   jax.ShapeDtypeStruct((B, P, P), jnp.float32)),
        input_output_aliases=aliases,
        compiler_params=_mosaic_params(est, ("parallel",)),
    )(m, x, *weights)
    return m_out, x_out


# --------------------------------------------------------------------------
# Kernel 3: classifier tail (3 x Linear+ReLU / Linear, Softmax over classes)
#   (the classifier's first Linear over S*P runs through tiled_linear)
# --------------------------------------------------------------------------
def _classifier_tail_kernel(x_ref, w2, b2, w3, b3, w4, b4, o_ref):
    def lin(a, w, b):
        return jnp.dot(a.astype(jnp.bfloat16), w[...],
                       preferred_element_type=jnp.float32) + b[...]
    h = jnp.maximum(lin(x_ref[...], w2, b2), 0.0)
    h = jnp.maximum(lin(h, w3, b3), 0.0)
    logits = lin(h, w4, b4)
    logits = logits - jnp.max(logits, axis=-1, keepdims=True)
    e = jnp.exp(logits)
    # approx reciprocal (EUP slot); ~1e-3 relative vs torch.softmax
    o_ref[...] = e * pl.reciprocal(jnp.sum(e, axis=-1, keepdims=True),
                                   approx=True)


def classifier_head(h, cls_tail):
    B, F = h.shape
    label_dim = cls_tail[-1]['w'].shape[1]
    tb = B if B <= 256 else 256
    Bp = _ceil_to(B, tb)
    if Bp != B:
        h = jnp.pad(h, ((0, Bp - B), (0, 0)))
    args = [h]
    in_specs = [pl.BlockSpec((tb, F), lambda i: (i, 0))]
    for lp in cls_tail:
        args += [lp['w'], lp['b']]
        in_specs += [_invariant_spec(lp['w'].shape),
                     _invariant_spec(lp['b'].shape)]
    est = 2 * tb * F * 4 + sum(int(a.size) * a.dtype.itemsize for a in args[1:])
    out = pl.pallas_call(
        _classifier_tail_kernel,
        grid=(Bp // tb,),
        in_specs=in_specs,
        out_specs=pl.BlockSpec((tb, label_dim), lambda i: (i, 0)),
        out_shape=jax.ShapeDtypeStruct((Bp, label_dim), jnp.float32),
        compiler_params=_mosaic_params(est, ("parallel",)),
    )(*args)
    return out[:B] if Bp != B else out


# --------------------------------------------------------------------------
# Full forward pass
# --------------------------------------------------------------------------
def omics_forward(m_row, params, *, heads, dim_head, q_block=256, h_block=512):
    B, S, G = m_row.shape
    P = params['pathway_w_masked'].shape[1]

    # pathway_model: CustomizedLinear(mask_raw, bias=None) -- mask pre-folded
    m = tiled_linear(m_row.reshape(B * S, G), params['pathway_w_masked'],
                     tk_cap=2048).reshape(B, S, P)

    # x = repeat(pathway_mx, 'i j -> b i j'): NOT materialized -- the shared
    # (1, P, P) matrix is broadcast inside the first layer's kernel.
    x = params['pathway_mx'][None]

    for li, lp in enumerate(params['layers']):
        m, x = evoformer_layer(m, x, lp, heads=heads, dim_head=dim_head,
                               x_shared=(li == 0),
                               q_block=q_block, h_block=h_block)

    cls = params['classifier']
    h = tiled_linear(m.reshape(B, S * P), cls[0]['w'], cls[0]['b'], relu=True)
    return classifier_head(h, cls[1:])


# --------------------------------------------------------------------------
# Deterministic parameter construction + inference-time preparation
# --------------------------------------------------------------------------
def init_params(key, S, G, P, heads, dim_head, depth, classifier_dim, label_dim):
    inner = heads * dim_head
    keys = iter(jax.random.split(key, 256))

    def nrm(shape, scale=0.1):
        return scale * jax.random.normal(next(keys), shape, dtype=jnp.float32)

    params = {}
    params['pathway_w'] = nrm((G, P), 0.2)
    params['pathway_mask'] = (
        jax.random.uniform(next(keys), (G, P)) < 0.5).astype(jnp.float32)
    params['pathway_mx'] = nrm((P, P), 0.5)

    def attn_params(dim):
        return dict(wq=nrm((dim, inner)), wkv=nrm((dim, 2 * inner)),
                    wg=nrm((dim, inner)), bg=nrm((1, inner)),
                    wo=nrm((inner, dim)), bo=nrm((1, dim)))

    def ffn_params(dim, mult=4):
        return dict(w1=nrm((dim, dim * mult * 2)), b1=nrm((1, dim * mult * 2)),
                    w2=nrm((dim * mult, dim)), b2=nrm((1, dim)))

    params['layers'] = [
        dict(row_attn=attn_params(S), col_attn=attn_params(P),
             ff_row=ffn_params(S), ff_col=ffn_params(P))
        for _ in range(depth)
    ]

    dims = [S * P] + list(classifier_dim) + [label_dim]
    params['classifier'] = [
        dict(w=nrm((dims[i], dims[i + 1])), b=nrm((1, dims[i + 1])))
        for i in range(len(dims) - 1)
    ]
    return params


def prepare_params(params, *, dim_head, beta):
    """One-time inference-time preparation (outside the kernels):
      * fold the pathway mask into its weight,
      * fold the attention scale (dim_head**-0.5) into every wq,
      * fold beta into the column-attention output projection (wo, bo),
      * zero-pad classifier hidden dims to multiples of 128 (lane-dense),
      * cast all matmul weights to bf16 (biases / additive terms stay f32)."""
    bf16 = jnp.bfloat16
    scale = dim_head ** (-0.5)

    def cast_attn(a, out_scale=1.0):
        return dict(wq=(a['wq'] * scale).astype(bf16),
                    wkv=a['wkv'].astype(bf16),
                    wg=a['wg'].astype(bf16), bg=a['bg'],
                    wo=(a['wo'] * out_scale).astype(bf16),
                    bo=a['bo'] * out_scale)

    def cast_ffn(f):
        return dict(w1=f['w1'].astype(bf16), b1=f['b1'],
                    w2=f['w2'].astype(bf16), b2=f['b2'])

    # lane-dense classifier: pad hidden dims to multiples of 128 with zeros.
    # Padded units are ReLU(0)=0 and feed zero weight rows -> logits unchanged.
    cls = params['classifier']
    dims = [c['w'].shape[0] for c in cls] + [cls[-1]['w'].shape[1]]
    padded = [dims[0]] + [_ceil_to(d, 128) for d in dims[1:-1]] + [dims[-1]]

    def pad_cls(c, d_in, d_out):
        w = jnp.pad(c['w'], ((0, d_in - c['w'].shape[0]),
                             (0, d_out - c['w'].shape[1])))
        b = jnp.pad(c['b'], ((0, 0), (0, d_out - c['b'].shape[1])))
        return dict(w=w.astype(bf16), b=b)

    return {
        'pathway_w_masked':
            (params['pathway_w'] * params['pathway_mask']).astype(bf16),
        'pathway_mx': params['pathway_mx'].astype(jnp.float32),
        'layers': [dict(row_attn=cast_attn(l['row_attn']),
                        col_attn=cast_attn(l['col_attn'], out_scale=beta),
                        ff_row=cast_ffn(l['ff_row']),
                        ff_col=cast_ffn(l['ff_col']))
                   for l in params['layers']],
        'classifier': [pad_cls(c, padded[i], padded[i + 1])
                       for i, c in enumerate(cls)],
    }


if __name__ == "__main__":
    B, S, G, P = 2, 4, 16, 8           # batch, modalities(row_dim), genes, pathways(col_dim)
    heads, dim_head, depth = 2, 8, 2
    classifier_dim = (32, 16, 8)
    label_dim = 3
    beta = 0.5

    key = jax.random.PRNGKey(0)
    k_in, k_par = jax.random.split(key)
    m_row = jax.random.normal(k_in, (B, S, G), dtype=jnp.float32)
    params = prepare_params(
        init_params(k_par, S, G, P, heads, dim_head, depth,
                    classifier_dim, label_dim),
        dim_head=dim_head, beta=beta)

    fwd = jax.jit(functools.partial(omics_forward, heads=heads,
                                    dim_head=dim_head))
    out = jax.block_until_ready(fwd(m_row, params))
    assert out.shape == (B, label_dim)
    assert bool(jnp.all(jnp.isfinite(out)))
    print("KERNEL_OK")
</pallas_src>

<mosaic_0001>
module attributes {stable_mosaic.version = 11 : i64} {
  func.func @k(%arg0: i32, %arg1: memref<8x16xf32, #tpu.memory_space<vmem>>, %arg2: memref<8x16xf32, #tpu.memory_space<vmem>>, %arg3: memref<1x16xf32, #tpu.memory_space<vmem>>, %arg4: memref<8x16xf32, #tpu.memory_space<vmem>>) attributes {dimension_semantics = [#tpu.dimension_semantics<arbitrary>], iteration_bounds = array<i64: 2>, scalar_prefetch = 0 : i64, scratch_operands = 0 : i64, tpu.core_type = #tpu.core_type<tc>, window_params = [{transform_indices = @transform_0, window_bounds = array<i64: 8, 16>}, {pipeline_mode = #tpu.pipeline_mode<synchronous>, transform_indices = @transform_1, window_bounds = array<i64: 8, 16>}, {pipeline_mode = #tpu.pipeline_mode<synchronous>, transform_indices = @transform_2, window_bounds = array<i64: 1, 16>}, {transform_indices = @transform_3, window_bounds = array<i64: 8, 16>}]} {
    %c0 = arith.constant 0 : index
    %c0_0 = arith.constant 0 : index
    %0 = vector.load %arg1[%c0, %c0_0] : memref<8x16xf32, #tpu.memory_space<vmem>>, vector<8x16xf32>
    %c0_1 = arith.constant 0 : index
    %c0_2 = arith.constant 0 : index
    %1 = vector.load %arg2[%c0_1, %c0_2] : memref<8x16xf32, #tpu.memory_space<vmem>>, vector<8x16xf32>
    %2 = arith.addf %0, %1 : vector<8x16xf32>
    %c0_3 = arith.constant 0 : index
    %c0_4 = arith.constant 0 : index
    %3 = vector.load %arg3[%c0_3, %c0_4] : memref<1x16xf32, #tpu.memory_space<vmem>>, vector<1x16xf32>
    %4 = vector.broadcast %3 : vector<1x16xf32> to vector<8x16xf32>
    %5 = arith.addf %2, %4 : vector<8x16xf32>
    %c0_5 = arith.constant 0 : index
    %c0_6 = arith.constant 0 : index
    %6 = vector.load %arg4[%c0_5, %c0_6] : memref<8x16xf32, #tpu.memory_space<vmem>>, vector<8x16xf32>
    tpu.vector_store %arg4[%c0_5, %c0_6], %5 {strides = array<i32>} : memref<8x16xf32, #tpu.memory_space<vmem>>, vector<8x16xf32>,
    return
  }
  func.func @transform_0(%arg0: i32) -> (i32, i32) {
    %c0_i32 = arith.constant 0 : i32
    %c0_i32_0 = arith.constant 0 : i32
    return %arg0, %c0_i32 : i32, i32
  }
  func.func @transform_1(%arg0: i32) -> (i32, i32) {
    %c0_i32 = arith.constant 0 : i32
    %c0_i32_0 = arith.constant 0 : i32
    %c0_i32_1 = arith.constant 0 : i32
    return %c0_i32, %c0_i32_0 : i32, i32
  }
  func.func @transform_2(%arg0: i32) -> (i32, i32) {
    %c0_i32 = arith.constant 0 : i32
    %c0_i32_0 = arith.constant 0 : i32
    %c0_i32_1 = arith.constant 0 : i32
    return %c0_i32, %c0_i32_0 : i32, i32
  }
  func.func @transform_3(%arg0: i32) -> (i32, i32) {
    %c0_i32 = arith.constant 0 : i32
    %c0_i32_0 = arith.constant 0 : i32
    return %arg0, %c0_i32 : i32, i32
  }
}

module attributes {stable_mosaic.version = 11 : i64} {
  func.func @_evoformer_layer_kernel(%arg0: i32, %arg1: memref<1x4x8xf32, #tpu.memory_space<vmem>>, %arg2: memref<1x8x8xf32, #tpu.memory_space<vmem>>, %arg3: memref<4x16xbf16, #tpu.memory_space<vmem>>, %arg4: memref<4x32xbf16, #tpu.memory_space<vmem>>, %arg5: memref<4x16xbf16, #tpu.memory_space<vmem>>, %arg6: memref<1x16xf32, #tpu.memory_space<vmem>>, %arg7: memref<16x4xbf16, #tpu.memory_space<vmem>>, %arg8: memref<1x4xf32, #tpu.memory_space<vmem>>, %arg9: memref<4x32xbf16, #tpu.memory_space<vmem>>, %arg10: memref<1x32xf32, #tpu.memory_space<vmem>>, %arg11: memref<16x4xbf16, #tpu.memory_space<vmem>>, %arg12: memref<1x4xf32, #tpu.memory_space<vmem>>, %arg13: memref<8x16xbf16, #tpu.memory_space<vmem>>, %arg14: memref<8x32xbf16, #tpu.memory_space<vmem>>, %arg15: memref<8x16xbf16, #tpu.memory_space<vmem>>, %arg16: memref<1x16xf32, #tpu.memory_space<vmem>>, %arg17: memref<16x8xbf16, #tpu.memory_space<vmem>>, %arg18: memref<1x8xf32, #tpu.memory_space<vmem>>, %arg19: memref<8x64xbf16, #tpu.memory_space<vmem>>, %arg20: memref<1x64xf32, #tpu.memory_space<vmem>>, %arg21: memref<32x8xbf16, #tpu.memory_space<vmem>>, %arg22: memref<1x8xf32, #tpu.memory_space<vmem>>, %arg23: memref<1x4x8xf32, #tpu.memory_space<vmem>>, %arg24: memref<1x8x8xf32, #tpu.memory_space<vmem>>) attributes {dimension_semantics = [#tpu.dimension_semantics<parallel>], iteration_bounds = array<i64: 2>, scalar_prefetch = 0 : i64, scratch_operands = 0 : i64, tpu.core_type = #tpu.core_type<tc>, window_params = [{transform_indices = @transform_0, window_bounds = array<i64: 1, 4, 8>}, {transform_indices = @transform_1, window_bounds = array<i64: 1, 8, 8>}, {pipeline_mode = #tpu.pipeline_mode<synchronous>, transform_indices = @transform_2, window_bounds = array<i64: 4, 16>}, {pipeline_mode = #tpu.pipeline_mode<synchronous>, transform_indices = @transform_3, window_bounds = array<i64: 4, 32>}, {pipeline_mode = #tpu.pipeline_mode<synchronous>, transform_indices = @transform_4, window_bounds = array<i64: 4, 16>}, {pipeline_mode = #tpu.pipeline_mode<synchronous>, transform_indices = @transform_5, window_bounds = array<i64: 1, 16>}, {pipeline_mode = #tpu.pipeline_mode<synchronous>, transform_indices = @transform_6, window_bounds = array<i64: 16, 4>}, {pipeline_mode = #tpu.pipeline_mode<synchronous>, transform_indices = @transform_7, window_bounds = array<i64: 1, 4>}, {pipeline_mode = #tpu.pipeline_mode<synchronous>, transform_indices = @transform_8, window_bounds = array<i64: 4, 32>}, {pipeline_mode = #tpu.pipeline_mode<synchronous>, transform_indices = @transform_9, window_bounds = array<i64: 1, 32>}, {pipeline_mode = #tpu.pipeline_mode<synchronous>, transform_indices = @transform_10, window_bounds = array<i64: 16, 4>}, {pipeline_mode = #tpu.pipeline_mode<synchronous>, transform_indices = @transform_11, window_bounds = array<i64: 1, 4>}, {pipeline_mode = #tpu.pipeline_mode<synchronous>, transform_indices = @transform_12, window_bounds = array<i64: 8, 16>}, {pipeline_mode = #tpu.pipeline_mode<synchronous>, transform_indices = @transform_13, window_bounds = array<i64: 8, 32>}, {pipeline_mode = #tpu.pipeline_mode<synchronous>, transform_indices = @transform_14, window_bounds = array<i64: 8, 16>}, {pipeline_mode = #tpu.pipeline_mode<synchronous>, transform_indices = @transform_15, window_bounds = array<i64: 1, 16>}, {pipeline_mode = #tpu.pipeline_mode<synchronous>, transform_indices = @transform_16, window_bounds = array<i64: 16, 8>}, {pipeline_mode = #tpu.pipeline_mode<synchronous>, transform_indices = @transform_17, window_bounds = array<i64: 1, 8>}, {pipeline_mode = #tpu.pipeline_mode<synchronous>, transform_indices = @transform_18, window_bounds = array<i64: 8, 64>}, {pipeline_mode = #tpu.pipeline_mode<synchronous>, transform_indices = @transform_19, window_bounds = array<i64: 1, 64>}, {pipeline_mode = #tpu.pipeline_mode<synchronous>, transform_indices = @transform_20, window_bounds = array<i64: 32, 8>}, {pipeline_mode = #tpu.pipeline_mode<synchronous>, transform_indices = @transform_21, window_bounds = array<i64: 1, 8>}, {transform_indices = @transform_22, window_bounds = array<i64: 1, 4, 8>}, {transform_indices = @transform_23, window_bounds = array<i64: 1, 8, 8>}]} {
    %c0 = arith.constant 0 : index
    %c0_0 = arith.constant 0 : index
    %c0_1 = arith.constant 0 : index
    %0 = vector.load %arg1[%c0, %c0_0, %c0_1] : memref<1x4x8xf32, #tpu.memory_space<vmem>>, vector<1x4x8xf32>
    %1 = vector.shape_cast %0 : vector<1x4x8xf32> to vector<4x8xf32>
    %c0_2 = arith.constant 0 : index
    %c0_3 = arith.constant 0 : index
    %c0_4 = arith.constant 0 : index
    %2 = vector.load %arg2[%c0_2, %c0_3, %c0_4] : memref<1x8x8xf32, #tpu.memory_space<vmem>>, vector<1x8x8xf32>
    %3 = vector.shape_cast %2 : vector<1x8x8xf32> to vector<8x8xf32>
    %4 = tpu.transpose %1, [1, 0] : vector<4x8xf32> -> vector<8x4xf32>
    %c0_5 = arith.constant 0 : index
    %c0_6 = arith.constant 0 : index
    %5 = vector.load %arg3[%c0_5, %c0_6] : memref<4x16xbf16, #tpu.memory_space<vmem>>, vector<4x16xbf16>
    %c0_7 = arith.constant 0 : index
    %c0_8 = arith.constant 0 : index
    %6 = vector.load %arg4[%c0_7, %c0_8] : memref<4x32xbf16, #tpu.memory_space<vmem>>, vector<4x32xbf16>
    %c0_9 = arith.constant 0 : index
    %c0_10 = arith.constant 0 : index
    %7 = vector.load %arg5[%c0_9, %c0_10] : memref<4x16xbf16, #tpu.memory_space<vmem>>, vector<4x16xbf16>
    %c0_11 = arith.constant 0 : index
    %c0_12 = arith.constant 0 : index
    %8 = vector.load %arg6[%c0_11, %c0_12] : memref<1x16xf32, #tpu.memory_space<vmem>>, vector<1x16xf32>
    %c0_13 = arith.constant 0 : index
    %c0_14 = arith.constant 0 : index
    %9 = vector.load %arg7[%c0_13, %c0_14] : memref<16x4xbf16, #tpu.memory_space<vmem>>, vector<16x4xbf16>
    %c0_15 = arith.constant 0 : index
    %c0_16 = arith.constant 0 : index
    %10 = vector.load %arg8[%c0_15, %c0_16] : memref<1x4xf32, #tpu.memory_space<vmem>>, vector<1x4xf32>
    %11 = arith.truncf %4 : vector<8x4xf32> to vector<8x4xbf16>
    %cst = arith.constant dense<0.000000e+00> : vector<8x32xf32>
    %12 = tpu.matmul %11, %6, %cst {dimension_numbers = #tpu.dot_dimension_numbers<[1], [0], [0], [1], [0, 0, 1, 1], [], []>} : vector<8x4xbf16>, vector<4x32xbf16>, vector<8x32xf32> -> vector<8x32xf32>
    %13 = vector.extract_strided_slice %12 {offsets = [0, 0], sizes = [8, 16], strides = [1, 1]} : vector<8x32xf32> to vector<8x16xf32>
    %14 = arith.truncf %13 : vector<8x16xf32> to vector<8x16xbf16>
    %15 = vector.extract_strided_slice %12 {offsets = [0, 16], sizes = [8, 16], strides = [1, 1]} : vector<8x32xf32> to vector<8x16xf32>
    %16 = arith.truncf %15 : vector<8x16xf32> to vector<8x16xbf16>
    %cst_17 = arith.constant dense<0.000000e+00> : vector<8x16xf32>
    %17 = tpu.matmul %11, %5, %cst_17 {dimension_numbers = #tpu.dot_dimension_numbers<[1], [0], [0], [1], [0, 0, 1, 1], [], []>} : vector<8x4xbf16>, vector<4x16xbf16>, vector<8x16xf32> -> vector<8x16xf32>
    %cst_18 = arith.constant dense<0.000000e+00> : vector<8x16xf32>
    %18 = tpu.matmul %11, %7, %cst_18 {dimension_numbers = #tpu.dot_dimension_numbers<[1], [0], [0], [1], [0, 0, 1, 1], [], []>} : vector<8x4xbf16>, vector<4x16xbf16>, vector<8x16xf32> -> vector<8x16xf32>
    %19 = vector.broadcast %8 : vector<1x16xf32> to vector<8x16xf32>
    %20 = arith.addf %18, %19 : vector<8x16xf32>
    %21 = arith.negf %20 : vector<8x16xf32>
    %22 = math.exp %21 : vector<8x16xf32>
    %cst_19 = arith.constant 1.000000e+00 : f32
    %23 = vector.broadcast %cst_19 : f32 to vector<8x16xf32>
    %24 = arith.addf %23, %22 : vector<8x16xf32>
    %25 = arith.divf %23, %24 : vector<8x16xf32>
    %26 = vector.extract_strided_slice %17 {offsets = [0, 0], sizes = [8, 8], strides = [1, 1]} : vector<8x16xf32> to vector<8x8xf32>
    %27 = arith.truncf %26 : vector<8x8xf32> to vector<8x8xbf16>
    %28 = vector.extract_strided_slice %14 {offsets = [0, 0], sizes = [8, 8], strides = [1, 1]} : vector<8x16xbf16> to vector<8x8xbf16>
    %cst_20 = arith.constant dense<0.000000e+00> : vector<8x8xf32>
    %29 = tpu.matmul %27, %28, %cst_20 {dimension_numbers = #tpu.dot_dimension_numbers<[1], [1], [0], [0], [0, 0, 1, 0], [], []>} : vector<8x8xbf16>, vector<8x8xbf16>, vector<8x8xf32> -> vector<8x8xf32>
    %30 = arith.addf %29, %3 : vector<8x8xf32>
    %cst_21 = arith.constant dense<0xFF800000> : vector<8xf32>
    %31 = vector.multi_reduction <maximumf>, %30, %cst_21 [1] : vector<8x8xf32> to vector<8xf32>
    %32 = vector.shape_cast %31 : vector<8xf32> to vector<8x1xf32>
    %33 = vector.broadcast %32 : vector<8x1xf32> to vector<8x8xf32>
    %34 = arith.subf %30, %33 : vector<8x8xf32>
    %35 = math.exp %34 : vector<8x8xf32>
    %cst_22 = arith.constant dense<0.000000e+00> : vector<8xf32>
    %36 = vector.multi_reduction <add>, %35, %cst_22 [1] : vector<8x8xf32> to vector<8xf32>
    %37 = vector.shape_cast %36 : vector<8xf32> to vector<8x1xf32>
    %38 = tpu.reciprocal %37 {approx = true} : vector<8x1xf32> -> vector<8x1xf32>
    %39 = vector.broadcast %38 : vector<8x1xf32> to vector<8x8xf32>
    %40 = arith.mulf %35, %39 : vector<8x8xf32>
    %41 = arith.truncf %40 : vector<8x8xf32> to vector<8x8xbf16>
    %42 = vector.extract_strided_slice %16 {offsets = [0, 0], sizes = [8, 8], strides = [1, 1]} : vector<8x16xbf16> to vector<8x8xbf16>
    %cst_23 = arith.constant dense<0.000000e+00> : vector<8x8xf32>
    %43 = tpu.matmul %41, %42, %cst_23 {dimension_numbers = #tpu.dot_dimension_numbers<[1], [0], [0], [1], [0, 0, 1, 1], [], []>} : vector<8x8xbf16>, vector<8x8xbf16>, vector<8x8xf32> -> vector<8x8xf32>
    %44 = vector.extract_strided_slice %17 {offsets = [0, 8], sizes = [8, 8], strides = [1, 1]} : vector<8x16xf32> to vector<8x8xf32>
    %45 = arith.truncf %44 : vector<8x8xf32> to vector<8x8xbf16>
    %46 = vector.extract_strided_slice %14 {offsets = [0, 8], sizes = [8, 8], strides = [1, 1]} : vector<8x16xbf16> to vector<8x8xbf16>
    %cst_24 = arith.constant dense<0.000000e+00> : vector<8x8xf32>
    %47 = tpu.matmul %45, %46, %cst_24 {dimension_numbers = #tpu.dot_dimension_numbers<[1], [1], [0], [0], [0, 0, 1, 0], [], []>} : vector<8x8xbf16>, vector<8x8xbf16>, vector<8x8xf32> -> vector<8x8xf32>
    %48 = arith.addf %47, %3 : vector<8x8xf32>
    %cst_25 = arith.constant dense<0xFF800000> : vector<8xf32>
    %49 = vector.multi_reduction <maximumf>, %48, %cst_25 [1] : vector<8x8xf32> to vector<8xf32>
    %50 = vector.shape_cast %49 : vector<8xf32> to vector<8x1xf32>
    %51 = vector.broadcast %50 : vector<8x1xf32> to vector<8x8xf32>
    %52 = arith.subf %48, %51 : vector<8x8xf32>
    %53 = math.exp %52 : vector<8x8xf32>
    %cst_26 = arith.constant dense<0.000000e+00> : vector<8xf32>
    %54 = vector.multi_reduction <add>, %53, %cst_26 [1] : vector<8x8xf32> to vector<8xf32>
    %55 = vector.shape_cast %54 : vector<8xf32> to vector<8x1xf32>
    %56 = tpu.reciprocal %55 {approx = true} : vector<8x1xf32> -> vector<8x1xf32>
    %57 = vector.broadcast %56 : vector<8x1xf32> to vector<8x8xf32>
    %58 = arith.mulf %53, %57 : vector<8x8xf32>
    %59 = arith.truncf %58 : vector<8x8xf32> to vector<8x8xbf16>
    %60 = vector.extract_strided_slice %16 {offsets = [0, 8], sizes = [8, 8], strides = [1, 1]} : vector<8x16xbf16> to vector<8x8xbf16>
    %cst_27 = arith.constant dense<0.000000e+00> : vector<8x8xf32>
    %61 = tpu.matmul %59, %60, %cst_27 {dimension_numbers = #tpu.dot_dimension_numbers<[1], [0], [0], [1], [0, 0, 1, 1], [], []>} : vector<8x8xbf16>, vector<8x8xbf16>, vector<8x8xf32> -> vector<8x8xf32>
    %62 = tpu.concatenate %43, %61 in 1 : vector<8x8xf32>, vector<8x8xf32> -> vector<8x16xf32>
    %63 = arith.mulf %62, %25 : vector<8x16xf32>
    %64 = arith.truncf %63 : vector<8x16xf32> to vector<8x16xbf16>
    %cst_28 = arith.constant dense<0.000000e+00> : vector<8x4xf32>
    %65 = tpu.matmul %64, %9, %cst_28 {dimension_numbers = #tpu.dot_dimension_numbers<[1], [0], [0], [1], [0, 0, 1, 1], [], []>} : vector<8x16xbf16>, vector<16x4xbf16>, vector<8x4xf32> -> vector<8x4xf32>
    %66 = vector.broadcast %10 : vector<1x4xf32> to vector<8x4xf32>
    %67 = arith.addf %65, %66 : vector<8x4xf32>
    %68 = arith.addf %67, %4 : vector<8x4xf32>
    %69 = arith.truncf %68 : vector<8x4xf32> to vector<8x4xbf16>
    %cst_29 = arith.constant 0.000000e+00 : f32
    %70 = vector.broadcast %cst_29 : f32 to vector<8x4xf32>
    %c0_30 = arith.constant 0 : index
    %c0_31 = arith.constant 0 : index
    %71 = vector.load %arg9[%c0_30, %c0_31] : memref<4x32xbf16, #tpu.memory_space<vmem>>, vector<4x16xbf16>
    %cst_32 = arith.constant dense<0.000000e+00> : vector<8x16xf32>
    %72 = tpu.matmul %69, %71, %cst_32 {dimension_numbers = #tpu.dot_dimension_numbers<[1], [0], [0], [1], [0, 0, 1, 1], [], []>} : vector<8x4xbf16>, vector<4x16xbf16>, vector<8x16xf32> -> vector<8x16xf32>
    %c0_33 = arith.constant 0 : index
    %c0_34 = arith.constant 0 : index
    %73 = vector.load %arg10[%c0_33, %c0_34] : memref<1x32xf32, #tpu.memory_space<vmem>>, vector<1x16xf32>
    %74 = vector.broadcast %73 : vector<1x16xf32> to vector<8x16xf32>
    %75 = arith.addf %72, %74 : vector<8x16xf32>
    %c0_35 = arith.constant 0 : index
    %c16 = arith.constant 16 : index
    %76 = vector.load %arg9[%c0_35, %c16] : memref<4x32xbf16, #tpu.memory_space<vmem>>, vector<4x16xbf16>
    %cst_36 = arith.constant dense<0.000000e+00> : vector<8x16xf32>
    %77 = tpu.matmul %69, %76, %cst_36 {dimension_numbers = #tpu.dot_dimension_numbers<[1], [0], [0], [1], [0, 0, 1, 1], [], []>} : vector<8x4xbf16>, vector<4x16xbf16>, vector<8x16xf32> -> vector<8x16xf32>
    %c0_37 = arith.constant 0 : index
    %c16_38 = arith.constant 16 : index
    %78 = vector.load %arg10[%c0_37, %c16_38] : memref<1x32xf32, #tpu.memory_space<vmem>>, vector<1x16xf32>
    %79 = vector.broadcast %78 : vector<1x16xf32> to vector<8x16xf32>
    %80 = arith.addf %77, %79 : vector<8x16xf32>
    %cst_39 = arith.constant 5.000000e-01 : f32
    %81 = vector.broadcast %cst_39 : f32 to vector<8x16xf32>
    %82 = arith.mulf %81, %80 : vector<8x16xf32>
    %cst_40 = arith.constant 0.707106769 : f32
    %83 = vector.broadcast %cst_40 : f32 to vector<8x16xf32>
    %84 = arith.mulf %80, %83 : vector<8x16xf32>
    %85 = math.erf %84 : vector<8x16xf32>
    %cst_41 = arith.constant 1.000000e+00 : f32
    %86 = vector.broadcast %cst_41 : f32 to vector<8x16xf32>
    %87 = arith.addf %86, %85 : vector<8x16xf32>
    %88 = arith.mulf %82, %87 : vector<8x16xf32>
    %89 = arith.mulf %75, %88 : vector<8x16xf32>
    %90 = arith.truncf %89 : vector<8x16xf32> to vector<8x16xbf16>
    %c0_42 = arith.constant 0 : index
    %c0_43 = arith.constant 0 : index
    %91 = vector.load %arg11[%c0_42, %c0_43] : memref<16x4xbf16, #tpu.memory_space<vmem>>, vector<16x4xbf16>
    %cst_44 = arith.constant dense<0.000000e+00> : vector<8x4xf32>
    %92 = tpu.matmul %90, %91, %cst_44 {dimension_numbers = #tpu.dot_dimension_numbers<[1], [0], [0], [1], [0, 0, 1, 1], [], []>} : vector<8x16xbf16>, vector<16x4xbf16>, vector<8x4xf32> -> vector<8x4xf32>
    %93 = arith.addf %70, %92 : vector<8x4xf32>
    %c0_45 = arith.constant 0 : index
    %c0_46 = arith.constant 0 : index
    %94 = vector.load %arg12[%c0_45, %c0_46] : memref<1x4xf32, #tpu.memory_space<vmem>>, vector<1x4xf32>
    %95 = vector.broadcast %94 : vector<1x4xf32> to vector<8x4xf32>
    %96 = arith.addf %93, %95 : vector<8x4xf32>
    %97 = arith.addf %96, %68 : vector<8x4xf32>
    %98 = tpu.transpose %97, [1, 0] : vector<8x4xf32> -> vector<4x8xf32>
    %c0_47 = arith.constant 0 : index
    %c0_48 = arith.constant 0 : index
    %99 = vector.load %arg13[%c0_47, %c0_48] : memref<8x16xbf16, #tpu.memory_space<vmem>>, vector<8x16xbf16>
    %c0_49 = arith.constant 0 : index
    %c0_50 = arith.constant 0 : index
    %100 = vector.load %arg14[%c0_49, %c0_50] : memref<8x32xbf16, #tpu.memory_space<vmem>>, vector<8x32xbf16>
    %c0_51 = arith.constant 0 : index
    %c0_52 = arith.constant 0 : index
    %101 = vector.load %arg15[%c0_51, %c0_52] : memref<8x16xbf16, #tpu.memory_space<vmem>>, vector<8x16xbf16>
    %c0_53 = arith.constant 0 : index
    %c0_54 = arith.constant 0 : index
    %102 = vector.load %arg16[%c0_53, %c0_54] : memref<1x16xf32, #tpu.memory_space<vmem>>, vector<1x16xf32>
    %c0_55 = arith.constant 0 : index
    %c0_56 = arith.constant 0 : index
    %103 = vector.load %arg17[%c0_55, %c0_56] : memref<16x8xbf16, #tpu.memory_space<vmem>>, vector<16x8xbf16>
    %c0_57 = arith.constant 0 : index
    %c0_58 = arith.constant 0 : index
    %104 = vector.load %arg18[%c0_57, %c0_58] : memref<1x8xf32, #tpu.memory_space<vmem>>, vector<1x8xf32>
    %105 = arith.truncf %98 : vector<4x8xf32> to vector<4x8xbf16>
    %cst_59 = arith.constant dense<0.000000e+00> : vector<4x32xf32>
    %106 = tpu.matmul %105, %100, %cst_59 {dimension_numbers = #tpu.dot_dimension_numbers<[1], [0], [0], [1], [0, 0, 1, 1], [], []>} : vector<4x8xbf16>, vector<8x32xbf16>, vector<4x32xf32> -> vector<4x32xf32>
    %107 = vector.extract_strided_slice %106 {offsets = [0, 0], sizes = [4, 16], strides = [1, 1]} : vector<4x32xf32> to vector<4x16xf32>
    %108 = arith.truncf %107 : vector<4x16xf32> to vector<4x16xbf16>
    %109 = vector.extract_strided_slice %106 {offsets = [0, 16], sizes = [4, 16], strides = [1, 1]} : vector<4x32xf32> to vector<4x16xf32>
    %110 = arith.truncf %109 : vector<4x16xf32> to vector<4x16xbf16>
    %cst_60 = arith.constant dense<0.000000e+00> : vector<4x16xf32>
    %111 = tpu.matmul %105, %99, %cst_60 {dimension_numbers = #tpu.dot_dimension_numbers<[1], [0], [0], [1], [0, 0, 1, 1], [], []>} : vector<4x8xbf16>, vector<8x16xbf16>, vector<4x16xf32> -> vector<4x16xf32>
    %cst_61 = arith.constant dense<0.000000e+00> : vector<4x16xf32>
    %112 = tpu.matmul %105, %101, %cst_61 {dimension_numbers = #tpu.dot_dimension_numbers<[1], [0], [0], [1], [0, 0, 1, 1], [], []>} : vector<4x8xbf16>, vector<8x16xbf16>, vector<4x16xf32> -> vector<4x16xf32>
    %113 = vector.broadcast %102 : vector<1x16xf32> to vector<4x16xf32>
    %114 = arith.addf %112, %113 : vector<4x16xf32>
    %115 = arith.negf %114 : vector<4x16xf32>
    %116 = math.exp %115 : vector<4x16xf32>
    %cst_62 = arith.constant 1.000000e+00 : f32
    %117 = vector.broadcast %cst_62 : f32 to vector<4x16xf32>
    %118 = arith.addf %117, %116 : vector<4x16xf32>
    %119 = arith.divf %117, %118 : vector<4x16xf32>
    %120 = vector.extract_strided_slice %111 {offsets = [0, 0], sizes = [4, 8], strides = [1, 1]} : vector<4x16xf32> to vector<4x8xf32>
    %121 = arith.truncf %120 : vector<4x8xf32> to vector<4x8xbf16>
    %122 = vector.extract_strided_slice %108 {offsets = [0, 0], sizes = [4, 8], strides = [1, 1]} : vector<4x16xbf16> to vector<4x8xbf16>
    %cst_63 = arith.constant dense<0.000000e+00> : vector<4x4xf32>
    %123 = tpu.matmul %121, %122, %cst_63 {dimension_numbers = #tpu.dot_dimension_numbers<[1], [1], [0], [0], [0, 0, 1, 0], [], []>} : vector<4x8xbf16>, vector<4x8xbf16>, vector<4x4xf32> -> vector<4x4xf32>
    %cst_64 = arith.constant dense<0xFF800000> : vector<4xf32>
    %124 = vector.multi_reduction <maximumf>, %123, %cst_64 [1] : vector<4x4xf32> to vector<4xf32>
    %125 = vector.shape_cast %124 : vector<4xf32> to vector<4x1xf32>
    %126 = vector.broadcast %125 : vector<4x1xf32> to vector<4x4xf32>
    %127 = arith.subf %123, %126 : vector<4x4xf32>
    %128 = math.exp %127 : vector<4x4xf32>
    %cst_65 = arith.constant dense<0.000000e+00> : vector<4xf32>
    %129 = vector.multi_reduction <add>, %128, %cst_65 [1] : vector<4x4xf32> to vector<4xf32>
    %130 = vector.shape_cast %129 : vector<4xf32> to vector<4x1xf32>
    %131 = tpu.reciprocal %130 {approx = true} : vector<4x1xf32> -> vector<4x1xf32>
    %132 = vector.broadcast %131 : vector<4x1xf32> to vector<4x4xf32>
    %133 = arith.mulf %128, %132 : vector<4x4xf32>
    %134 = arith.truncf %133 : vector<4x4xf32> to vector<4x4xbf16>
    %135 = vector.extract_strided_slice %110 {offsets = [0, 0], sizes = [4, 8], strides = [1, 1]} : vector<4x16xbf16> to vector<4x8xbf16>
    %cst_66 = arith.constant dense<0.000000e+00> : vector<4x8xf32>
    %136 = tpu.matmul %134, %135, %cst_66 {dimension_numbers = #tpu.dot_dimension_numbers<[1], [0], [0], [1], [0, 0, 1, 1], [], []>} : vector<4x4xbf16>, vector<4x8xbf16>, vector<4x8xf32> -> vector<4x8xf32>
    %137 = vector.extract_strided_slice %111 {offsets = [0, 8], sizes = [4, 8], strides = [1, 1]} : vector<4x16xf32> to vector<4x8xf32>
    %138 = arith.truncf %137 : vector<4x8xf32> to vector<4x8xbf16>
    %139 = vector.extract_strided_slice %108 {offsets = [0, 8], sizes = [4, 8], strides = [1, 1]} : vector<4x16xbf16> to vector<4x8xbf16>
    %cst_67 = arith.constant dense<0.000000e+00> : vector<4x4xf32>
    %140 = tpu.matmul %138, %139, %cst_67 {dimension_numbers = #tpu.dot_dimension_numbers<[1], [1], [0], [0], [0, 0, 1, 0], [], []>} : vector<4x8xbf16>, vector<4x8xbf16>, vector<4x4xf32> -> vector<4x4xf32>
    %cst_68 = arith.constant dense<0xFF800000> : vector<4xf32>
    %141 = vector.multi_reduction <maximumf>, %140, %cst_68 [1] : vector<4x4xf32> to vector<4xf32>
    %142 = vector.shape_cast %141 : vector<4xf32> to vector<4x1xf32>
    %143 = vector.broadcast %142 : vector<4x1xf32> to vector<4x4xf32>
    %144 = arith.subf %140, %143 : vector<4x4xf32>
    %145 = math.exp %144 : vector<4x4xf32>
    %cst_69 = arith.constant dense<0.000000e+00> : vector<4xf32>
    %146 = vector.multi_reduction <add>, %145, %cst_69 [1] : vector<4x4xf32> to vector<4xf32>
    %147 = vector.shape_cast %146 : vector<4xf32> to vector<4x1xf32>
    %148 = tpu.reciprocal %147 {approx = true} : vector<4x1xf32> -> vector<4x1xf32>
    %149 = vector.broadcast %148 : vector<4x1xf32> to vector<4x4xf32>
    %150 = arith.mulf %145, %149 : vector<4x4xf32>
    %151 = arith.truncf %150 : vector<4x4xf32> to vector<4x4xbf16>
    %152 = vector.extract_strided_slice %110 {offsets = [0, 8], sizes = [4, 8], strides = [1, 1]} : vector<4x16xbf16> to vector<4x8xbf16>
    %cst_70 = arith.constant dense<0.000000e+00> : vector<4x8xf32>
    %153 = tpu.matmul %151, %152, %cst_70 {dimension_numbers = #tpu.dot_dimension_numbers<[1], [0], [0], [1], [0, 0, 1, 1], [], []>} : vector<4x4xbf16>, vector<4x8xbf16>, vector<4x8xf32> -> vector<4x8xf32>
    %154 = tpu.concatenate %136, %153 in 1 : vector<4x8xf32>, vector<4x8xf32> -> vector<4x16xf32>
    %155 = arith.mulf %154, %119 : vector<4x16xf32>
    %156 = arith.truncf %155 : vector<4x16xf32> to vector<4x16xbf16>
    %cst_71 = arith.constant dense<0.000000e+00> : vector<4x8xf32>
    %157 = tpu.matmul %156, %103, %cst_71 {dimension_numbers = #tpu.dot_dimension_numbers<[1], [0], [0], [1], [0, 0, 1, 1], [], []>} : vector<4x16xbf16>, vector<16x8xbf16>, vector<4x8xf32> -> vector<4x8xf32>
    %158 = vector.broadcast %104 : vector<1x8xf32> to vector<4x8xf32>
    %159 = arith.addf %157, %158 : vector<4x8xf32>
    %160 = arith.addf %159, %98 : vector<4x8xf32>
    %161 = arith.truncf %160 : vector<4x8xf32> to vector<4x8xbf16>
    %cst_72 = arith.constant 0.000000e+00 : f32
    %162 = vector.broadcast %cst_72 : f32 to vector<4x8xf32>
    %c0_73 = arith.constant 0 : index
    %c0_74 = arith.constant 0 : index
    %163 = vector.load %arg19[%c0_73, %c0_74] : memref<8x64xbf16, #tpu.memory_space<vmem>>, vector<8x32xbf16>
    %cst_75 = arith.constant dense<0.000000e+00> : vector<4x32xf32>
    %164 = tpu.matmul %161, %163, %cst_75 {dimension_numbers = #tpu.dot_dimension_numbers<[1], [0], [0], [1], [0, 0, 1, 1], [], []>} : vector<4x8xbf16>, vector<8x32xbf16>, vector<4x32xf32> -> vector<4x32xf32>
    %c0_76 = arith.constant 0 : index
    %c0_77 = arith.constant 0 : index
    %165 = vector.load %arg20[%c0_76, %c0_77] : memref<1x64xf32, #tpu.memory_space<vmem>>, vector<1x32xf32>
    %166 = vector.broadcast %165 : vector<1x32xf32> to vector<4x32xf32>
    %167 = arith.addf %164, %166 : vector<4x32xf32>
    %c0_78 = arith.constant 0 : index
    %c32 = arith.constant 32 : index
    %168 = vector.load %arg19[%c0_78, %c32] : memref<8x64xbf16, #tpu.memory_space<vmem>>, vector<8x32xbf16>
    %cst_79 = arith.constant dense<0.000000e+00> : vector<4x32xf32>
    %169 = tpu.matmul %161, %168, %cst_79 {dimension_numbers = #tpu.dot_dimension_numbers<[1], [0], [0], [1], [0, 0, 1, 1], [], []>} : vector<4x8xbf16>, vector<8x32xbf16>, vector<4x32xf32> -> vector<4x32xf32>
    %c0_80 = arith.constant 0 : index
    %c32_81 = arith.constant 32 : index
    %170 = vector.load %arg20[%c0_80, %c32_81] : memref<1x64xf32, #tpu.memory_space<vmem>>, vector<1x32xf32>
    %171 = vector.broadcast %170 : vector<1x32xf32> to vector<4x32xf32>
    %172 = arith.addf %169, %171 : vector<4x32xf32>
    %cst_82 = arith.constant 5.000000e-01 : f32
    %173 = vector.broadcast %cst_82 : f32 to vector<4x32xf32>
    %174 = arith.mulf %173, %172 : vector<4x32xf32>
    %cst_83 = arith.constant 0.707106769 : f32
    %175 = vector.broadcast %cst_83 : f32 to vector<4x32xf32>
    %176 = arith.mulf %172, %175 : vector<4x32xf32>
    %177 = math.erf %176 : vector<4x32xf32>
    %cst_84 = arith.constant 1.000000e+00 : f32
    %178 = vector.broadcast %cst_84 : f32 to vector<4x32xf32>
    %179 = arith.addf %178, %177 : vector<4x32xf32>
    %180 = arith.mulf %174, %179 : vector<4x32xf32>
    %181 = arith.mulf %167, %180 : vector<4x32xf32>
    %182 = arith.truncf %181 : vector<4x32xf32> to vector<4x32xbf16>
    %c0_85 = arith.constant 0 : index
    %c0_86 = arith.constant 0 : index
    %183 = vector.load %arg21[%c0_85, %c0_86] : memref<32x8xbf16, #tpu.memory_space<vmem>>, vector<32x8xbf16>
    %cst_87 = arith.constant dense<0.000000e+00> : vector<4x8xf32>
    %184 = tpu.matmul %182, %183, %cst_87 {dimension_numbers = #tpu.dot_dimension_numbers<[1], [0], [0], [1], [0, 0, 1, 1], [], []>} : vector<4x32xbf16>, vector<32x8xbf16>, vector<4x8xf32> -> vector<4x8xf32>
    %185 = arith.addf %162, %184 : vector<4x8xf32>
    %c0_88 = arith.constant 0 : index
    %c0_89 = arith.constant 0 : index
    %186 = vector.load %arg22[%c0_88, %c0_89] : memref<1x8xf32, #tpu.memory_space<vmem>>, vector<1x8xf32>
    %187 = vector.broadcast %186 : vector<1x8xf32> to vector<4x8xf32>
    %188 = arith.addf %185, %187 : vector<4x8xf32>
    %189 = arith.addf %188, %160 : vector<4x8xf32>
    %cst_90 = arith.constant 2.500000e-01 : f32
    %190 = vector.broadcast %cst_90 : f32 to vector<4x8xf32>
    %191 = arith.mulf %189, %190 : vector<4x8xf32>
    %cst_91 = arith.constant dense<0.000000e+00> : vector<8x8xf32>
    %192 = tpu.matmul %191, %189, %cst_91 {dimension_numbers = #tpu.dot_dimension_numbers<[0], [0], [1], [1], [0, 1, 1, 1], [], []>} : vector<4x8xf32>, vector<4x8xf32>, vector<8x8xf32> -> vector<8x8xf32>
    %193 = arith.addf %3, %192 : vector<8x8xf32>
    %c0_92 = arith.constant 0 : index
    %c0_93 = arith.constant 0 : index
    %c0_94 = arith.constant 0 : index
    %194 = vector.load %arg24[%c0_92, %c0_93, %c0_94] : memref<1x8x8xf32, #tpu.memory_space<vmem>>, vector<1x8x8xf32>
    %195 = vector.shape_cast %194 : vector<1x8x8xf32> to vector<8x8xf32>
    %196 = vector.shape_cast %193 : vector<8x8xf32> to vector<1x8x8xf32>
    tpu.vector_store %arg24[%c0_92, %c0_93, %c0_94], %196 {strides = array<i32>} : memref<1x8x8xf32, #tpu.memory_space<vmem>>, vector<1x8x8xf32>,
    %c0_95 = arith.constant 0 : index
    %c0_96 = arith.constant 0 : index
    %c0_97 = arith.constant 0 : index
    %197 = vector.load %arg23[%c0_95, %c0_96, %c0_97] : memref<1x4x8xf32, #tpu.memory_space<vmem>>, vector<1x4x8xf32>
    %198 = vector.shape_cast %197 : vector<1x4x8xf32> to vector<4x8xf32>
    %199 = vector.shape_cast %189 : vector<4x8xf32> to vector<1x4x8xf32>
    tpu.vector_store %arg23[%c0_95, %c0_96, %c0_97], %199 {strides = array<i32>} : memref<1x4x8xf32, #tpu.memory_space<vmem>>, vector<1x4x8xf32>,
    return
  }
  func.func @transform_0(%arg0: i32) -> (i32, i32, i32) {
    %c0_i32 = arith.constant 0 : i32
    %c0_i32_0 = arith.constant 0 : i32
    %c0_i32_1 = arith.constant 0 : i32
    return %arg0, %c0_i32, %c0_i32_0 : i32, i32, i32
  }
  func.func @transform_1(%arg0: i32) -> (i32, i32, i32) {
    %c0_i32 = arith.constant 0 : i32
    %c0_i32_0 = arith.constant 0 : i32
    %c0_i32_1 = arith.constant 0 : i32
    return %arg0, %c0_i32, %c0_i32_0 : i32, i32, i32
  }
  func.func @transform_2(%arg0: i32) -> (i32, i32) {
    %c0_i32 = arith.constant 0 : i32
    %c0_i32_0 = arith.constant 0 : i32
    %c0_i32_1 = arith.constant 0 : i32
    return %c0_i32, %c0_i32_0 : i32, i32
  }
  func.func @transform_3(%arg0: i32) -> (i32, i32) {
    %c0_i32 = arith.constant 0 : i32
    %c0_i32_0 = arith.constant 0 : i32
    %c0_i32_1 = arith.constant 0 : i32
    return %c0_i32, %c0_i32_0 : i32, i32
  }
  func.func @transform_4(%arg0: i32) -> (i32, i32) {
    %c0_i32 = arith.constant 0 : i32
    %c0_i32_0 = arith.constant 0 : i32
    %c0_i32_1 = arith.constant 0 : i32
    return %c0_i32, %c0_i32_0 : i32, i32
  }
  func.func @transform_5(%arg0: i32) -> (i32, i32) {
    %c0_i32 = arith.constant 0 : i32
    %c0_i32_0 = arith.constant 0 : i32
    %c0_i32_1 = arith.constant 0 : i32
    return %c0_i32, %c0_i32_0 : i32, i32
  }
  func.func @transform_6(%arg0: i32) -> (i32, i32) {
    %c0_i32 = arith.constant 0 : i32
    %c0_i32_0 = arith.constant 0 : i32
    %c0_i32_1 = arith.constant 0 : i32
    return %c0_i32, %c0_i32_0 : i32, i32
  }
  func.func @transform_7(%arg0: i32) -> (i32, i32) {
    %c0_i32 = arith.constant 0 : i32
    %c0_i32_0 = arith.constant 0 : i32
    %c0_i32_1 = arith.constant 0 : i32
    return %c0_i32, %c0_i32_0 : i32, i32
  }
  func.func @transform_8(%arg0: i32) -> (i32, i32) {
    %c0_i32 = arith.constant 0 : i32
    %c0_i32_0 = arith.constant 0 : i32
    %c0_i32_1 = arith.constant 0 : i32
    return %c0_i32, %c0_i32_0 : i32, i32
  }
  func.func @transform_9(%arg0: i32) -> (i32, i32) {
    %c0_i32 = arith.constant 0 : i32
    %c0_i32_0 = arith.constant 0 : i32
    %c0_i32_1 = arith.constant 0 : i32
    return %c0_i32, %c0_i32_0 : i32, i32
  }
  func.func @transform_10(%arg0: i32) -> (i32, i32) {
    %c0_i32 = arith.constant 0 : i32
    %c0_i32_0 = arith.constant 0 : i32
    %c0_i32_1 = arith.constant 0 : i32
    return %c0_i32, %c0_i32_0 : i32, i32
  }
  func.func @transform_11(%arg0: i32) -> (i32, i32) {
    %c0_i32 = arith.constant 0 : i32
    %c0_i32_0 = arith.constant 0 : i32
    %c0_i32_1 = arith.constant 0 : i32
    return %c0_i32, %c0_i32_0 : i32, i32
  }
  func.func @transform_12(%arg0: i32) -> (i32, i32) {
    %c0_i32 = arith.constant 0 : i32
    %c0_i32_0 = arith.constant 0 : i32
    %c0_i32_1 = arith.constant 0 : i32
    return %c0_i32, %c0_i32_0 : i32, i32
  }
  func.func @transform_13(%arg0: i32) -> (i32, i32) {
    %c0_i32 = arith.constant 0 : i32
    %c0_i32_0 = arith.constant 0 : i32
    %c0_i32_1 = arith.constant 0 : i32
    return %c0_i32, %c0_i32_0 : i32, i32
  }
  func.func @transform_14(%arg0: i32) -> (i32, i32) {
    %c0_i32 = arith.constant 0 : i32
    %c0_i32_0 = arith.constant 0 : i32
    %c0_i32_1 = arith.constant 0 : i32
    return %c0_i32, %c0_i32_0 : i32, i32
  }
  func.func @transform_15(%arg0: i32) -> (i32, i32) {
    %c0_i32 = arith.constant 0 : i32
    %c0_i32_0 = arith.constant 0 : i32
    %c0_i32_1 = arith.constant 0 : i32
    return %c0_i32, %c0_i32_0 : i32, i32
  }
  func.func @transform_16(%arg0: i32) -> (i32, i32) {
    %c0_i32 = arith.constant 0 : i32
    %c0_i32_0 = arith.constant 0 : i32
    %c0_i32_1 = arith.constant 0 : i32
    return %c0_i32, %c0_i32_0 : i32, i32
  }
  func.func @transform_17(%arg0: i32) -> (i32, i32) {
    %c0_i32 = arith.constant 0 : i32
    %c0_i32_0 = arith.constant 0 : i32
    %c0_i32_1 = arith.constant 0 : i32
    return %c0_i32, %c0_i32_0 : i32, i32
  }
  func.func @transform_18(%arg0: i32) -> (i32, i32) {
    %c0_i32 = arith.constant 0 : i32
    %c0_i32_0 = arith.constant 0 : i32
    %c0_i32_1 = arith.constant 0 : i32
    return %c0_i32, %c0_i32_0 : i32, i32
  }
  func.func @transform_19(%arg0: i32) -> (i32, i32) {
    %c0_i32 = arith.constant 0 : i32
    %c0_i32_0 = arith.constant 0 : i32
    %c0_i32_1 = arith.constant 0 : i32
    return %c0_i32, %c0_i32_0 : i32, i32
  }
  func.func @transform_20(%arg0: i32) -> (i32, i32) {
    %c0_i32 = arith.constant 0 : i32
    %c0_i32_0 = arith.constant 0 : i32
    %c0_i32_1 = arith.constant 0 : i32
    return %c0_i32, %c0_i32_0 : i32, i32
  }
  func.func @transform_21(%arg0: i32) -> (i32, i32) {
    %c0_i32 = arith.constant 0 : i32
    %c0_i32_0 = arith.constant 0 : i32
    %c0_i32_1 = arith.constant 0 : i32
    return %c0_i32, %c0_i32_0 : i32, i32
  }
  func.func @transform_22(%arg0: i32) -> (i32, i32, i32) {
    %c0_i32 = arith.constant 0 : i32
    %c0_i32_0 = arith.constant 0 : i32
    %c0_i32_1 = arith.constant 0 : i32
    return %arg0, %c0_i32, %c0_i32_0 : i32, i32, i32
  }
  func.func @transform_23(%arg0: i32) -> (i32, i32, i32) {
    %c0_i32 = arith.constant 0 : i32
    %c0_i32_0 = arith.constant 0 : i32
    %c0_i32_1 = arith.constant 0 : i32
    return %arg0, %c0_i32, %c0_i32_0 : i32, i32, i32
  }
}

module attributes {stable_mosaic.version = 11 : i64} {
  func.func @_linear_kernel(%arg0: i32, %arg1: i32, %arg2: memref<8x16xf32, #tpu.memory_space<vmem>>, %arg3: memref<16x8xbf16, #tpu.memory_space<vmem>>, %arg4: memref<1x8xf32, #tpu.memory_space<vmem>>, %arg5: memref<8x8xf32, #tpu.memory_space<vmem>>) attributes {dimension_semantics = [#tpu.dimension_semantics<parallel>, #tpu.dimension_semantics<arbitrary>], iteration_bounds = array<i64: 1, 1>, scalar_prefetch = 0 : i64, scratch_operands = 0 : i64, tpu.core_type = #tpu.core_type<tc>, window_params = [{transform_indices = @transform_0, window_bounds = array<i64: 8, 16>}, {transform_indices = @transform_1, window_bounds = array<i64: 16, 8>}, {pipeline_mode = #tpu.pipeline_mode<synchronous>, transform_indices = @transform_2, window_bounds = array<i64: 1, 8>}, {transform_indices = @transform_3, window_bounds = array<i64: 8, 8>}]} {
    %c0_i32 = arith.constant 0 : i32
    %0 = arith.cmpi eq, %arg1, %c0_i32 : i32
    %1 = arith.extui %0 : i1 to i32
    %c0_i32_0 = arith.constant 0 : i32
    %2 = arith.cmpi ne, %1, %c0_i32_0 : i32
    scf.if %2 {
      %cst_10 = arith.constant 0.000000e+00 : f32
      %13 = vector.broadcast %cst_10 : f32 to vector<8x8xf32>
      %c0_11 = arith.constant 0 : index
      %c0_12 = arith.constant 0 : index
      %14 = vector.load %arg5[%c0_11, %c0_12] : memref<8x8xf32, #tpu.memory_space<vmem>>, vector<8x8xf32>
      tpu.vector_store %arg5[%c0_11, %c0_12], %13 {strides = array<i32>} : memref<8x8xf32, #tpu.memory_space<vmem>>, vector<8x8xf32>,
    } else {
    }
    %c0 = arith.constant 0 : index
    %c0_1 = arith.constant 0 : index
    %3 = vector.load %arg5[%c0, %c0_1] : memref<8x8xf32, #tpu.memory_space<vmem>>, vector<8x8xf32>
    %c0_2 = arith.constant 0 : index
    %c0_3 = arith.constant 0 : index
    %4 = vector.load %arg2[%c0_2, %c0_3] : memref<8x16xf32, #tpu.memory_space<vmem>>, vector<8x16xf32>
    %c0_4 = arith.constant 0 : index
    %c0_5 = arith.constant 0 : index
    %5 = vector.load %arg3[%c0_4, %c0_5] : memref<16x8xbf16, #tpu.memory_space<vmem>>, vector<16x8xbf16>
    %6 = arith.truncf %4 : vector<8x16xf32> to vector<8x16xbf16>
    %cst = arith.constant dense<0.000000e+00> : vector<8x8xf32>
    %7 = tpu.matmul %6, %5, %cst {dimension_numbers = #tpu.dot_dimension_numbers<[1], [0], [0], [1], [0, 0, 1, 1], [], []>} : vector<8x16xbf16>, vector<16x8xbf16>, vector<8x8xf32> -> vector<8x8xf32>
    %8 = arith.addf %3, %7 : vector<8x8xf32>
    %c0_6 = arith.constant 0 : index
    %c0_7 = arith.constant 0 : index
    %9 = vector.load %arg5[%c0_6, %c0_7] : memref<8x8xf32, #tpu.memory_space<vmem>>, vector<8x8xf32>
    tpu.vector_store %arg5[%c0_6, %c0_7], %8 {strides = array<i32>} : memref<8x8xf32, #tpu.memory_space<vmem>>, vector<8x8xf32>,
    %c0_i32_8 = arith.constant 0 : i32
    %10 = arith.cmpi eq, %arg1, %c0_i32_8 : i32
    %11 = arith.extui %10 : i1 to i32
    %c0_i32_9 = arith.constant 0 : i32
    %12 = arith.cmpi ne, %11, %c0_i32_9 : i32
    scf.if %12 {
      %c0_10 = arith.constant 0 : index
      %c0_11 = arith.constant 0 : index
      %13 = vector.load %arg5[%c0_10, %c0_11] : memref<8x8xf32, #tpu.memory_space<vmem>>, vector<8x8xf32>
      %c0_12 = arith.constant 0 : index
      %c0_13 = arith.constant 0 : index
      %14 = vector.load %arg4[%c0_12, %c0_13] : memref<1x8xf32, #tpu.memory_space<vmem>>, vector<1x8xf32>
      %15 = vector.broadcast %14 : vector<1x8xf32> to vector<8x8xf32>
      %16 = arith.addf %13, %15 : vector<8x8xf32>
      %c0_14 = arith.constant 0 : index
      %c0_15 = arith.constant 0 : index
      %17 = vector.load %arg5[%c0_14, %c0_15] : memref<8x8xf32, #tpu.memory_space<vmem>>, vector<8x8xf32>
      tpu.vector_store %arg5[%c0_14, %c0_15], %16 {strides = array<i32>} : memref<8x8xf32, #tpu.memory_space<vmem>>, vector<8x8xf32>,
    } else {
    }
    return
  }
  func.func @transform_0(%arg0: i32, %arg1: i32) -> (i32, i32) {
    %c0_i32 = arith.constant 0 : i32
    return %arg0, %arg1 : i32, i32
  }
  func.func @transform_1(%arg0: i32, %arg1: i32) -> (i32, i32) {
    %c0_i32 = arith.constant 0 : i32
    %c0_i32_0 = arith.constant 0 : i32
    return %arg1, %c0_i32 : i32, i32
  }
  func.func @transform_2(%arg0: i32, %arg1: i32) -> (i32, i32) {
    %c0_i32 = arith.constant 0 : i32
    %c0_i32_0 = arith.constant 0 : i32
    %c0_i32_1 = arith.constant 0 : i32
    return %c0_i32, %c0_i32_0 : i32, i32
  }
  func.func @transform_3(%arg0: i32, %arg1: i32) -> (i32, i32) {
    %c0_i32 = arith.constant 0 : i32
    %c0_i32_0 = arith.constant 0 : i32
    return %arg0, %c0_i32 : i32, i32
  }
}

module attributes {stable_mosaic.version = 11 : i64} {
  func.func @_evoformer_layer_kernel(%arg0: i32, %arg1: memref<1x4x8xf32, #tpu.memory_space<vmem>>, %arg2: memref<1x8x8xf32, #tpu.memory_space<vmem>>, %arg3: memref<4x16xbf16, #tpu.memory_space<vmem>>, %arg4: memref<4x32xbf16, #tpu.memory_space<vmem>>, %arg5: memref<4x16xbf16, #tpu.memory_space<vmem>>, %arg6: memref<1x16xf32, #tpu.memory_space<vmem>>, %arg7: memref<16x4xbf16, #tpu.memory_space<vmem>>, %arg8: memref<1x4xf32, #tpu.memory_space<vmem>>, %arg9: memref<4x32xbf16, #tpu.memory_space<vmem>>, %arg10: memref<1x32xf32, #tpu.memory_space<vmem>>, %arg11: memref<16x4xbf16, #tpu.memory_space<vmem>>, %arg12: memref<1x4xf32, #tpu.memory_space<vmem>>, %arg13: memref<8x16xbf16, #tpu.memory_space<vmem>>, %arg14: memref<8x32xbf16, #tpu.memory_space<vmem>>, %arg15: memref<8x16xbf16, #tpu.memory_space<vmem>>, %arg16: memref<1x16xf32, #tpu.memory_space<vmem>>, %arg17: memref<16x8xbf16, #tpu.memory_space<vmem>>, %arg18: memref<1x8xf32, #tpu.memory_space<vmem>>, %arg19: memref<8x64xbf16, #tpu.memory_space<vmem>>, %arg20: memref<1x64xf32, #tpu.memory_space<vmem>>, %arg21: memref<32x8xbf16, #tpu.memory_space<vmem>>, %arg22: memref<1x8xf32, #tpu.memory_space<vmem>>, %arg23: memref<1x4x8xf32, #tpu.memory_space<vmem>>, %arg24: memref<1x8x8xf32, #tpu.memory_space<vmem>>) attributes {dimension_semantics = [#tpu.dimension_semantics<parallel>], iteration_bounds = array<i64: 2>, scalar_prefetch = 0 : i64, scratch_operands = 0 : i64, tpu.core_type = #tpu.core_type<tc>, window_params = [{transform_indices = @transform_0, window_bounds = array<i64: 1, 4, 8>}, {pipeline_mode = #tpu.pipeline_mode<synchronous>, transform_indices = @transform_1, window_bounds = array<i64: 1, 8, 8>}, {pipeline_mode = #tpu.pipeline_mode<synchronous>, transform_indices = @transform_2, window_bounds = array<i64: 4, 16>}, {pipeline_mode = #tpu.pipeline_mode<synchronous>, transform_indices = @transform_3, window_bounds = array<i64: 4, 32>}, {pipeline_mode = #tpu.pipeline_mode<synchronous>, transform_indices = @transform_4, window_bounds = array<i64: 4, 16>}, {pipeline_mode = #tpu.pipeline_mode<synchronous>, transform_indices = @transform_5, window_bounds = array<i64: 1, 16>}, {pipeline_mode = #tpu.pipeline_mode<synchronous>, transform_indices = @transform_6, window_bounds = array<i64: 16, 4>}, {pipeline_mode = #tpu.pipeline_mode<synchronous>, transform_indices = @transform_7, window_bounds = array<i64: 1, 4>}, {pipeline_mode = #tpu.pipeline_mode<synchronous>, transform_indices = @transform_8, window_bounds = array<i64: 4, 32>}, {pipeline_mode = #tpu.pipeline_mode<synchronous>, transform_indices = @transform_9, window_bounds = array<i64: 1, 32>}, {pipeline_mode = #tpu.pipeline_mode<synchronous>, transform_indices = @transform_10, window_bounds = array<i64: 16, 4>}, {pipeline_mode = #tpu.pipeline_mode<synchronous>, transform_indices = @transform_11, window_bounds = array<i64: 1, 4>}, {pipeline_mode = #tpu.pipeline_mode<synchronous>, transform_indices = @transform_12, window_bounds = array<i64: 8, 16>}, {pipeline_mode = #tpu.pipeline_mode<synchronous>, transform_indices = @transform_13, window_bounds = array<i64: 8, 32>}, {pipeline_mode = #tpu.pipeline_mode<synchronous>, transform_indices = @transform_14, window_bounds = array<i64: 8, 16>}, {pipeline_mode = #tpu.pipeline_mode<synchronous>, transform_indices = @transform_15, window_bounds = array<i64: 1, 16>}, {pipeline_mode = #tpu.pipeline_mode<synchronous>, transform_indices = @transform_16, window_bounds = array<i64: 16, 8>}, {pipeline_mode = #tpu.pipeline_mode<synchronous>, transform_indices = @transform_17, window_bounds = array<i64: 1, 8>}, {pipeline_mode = #tpu.pipeline_mode<synchronous>, transform_indices = @transform_18, window_bounds = array<i64: 8, 64>}, {pipeline_mode = #tpu.pipeline_mode<synchronous>, transform_indices = @transform_19, window_bounds = array<i64: 1, 64>}, {pipeline_mode = #tpu.pipeline_mode<synchronous>, transform_indices = @transform_20, window_bounds = array<i64: 32, 8>}, {pipeline_mode = #tpu.pipeline_mode<synchronous>, transform_indices = @transform_21, window_bounds = array<i64: 1, 8>}, {transform_indices = @transform_22, window_bounds = array<i64: 1, 4, 8>}, {transform_indices = @transform_23, window_bounds = array<i64: 1, 8, 8>}]} {
    %c0 = arith.constant 0 : index
    %c0_0 = arith.constant 0 : index
    %c0_1 = arith.constant 0 : index
    %0 = vector.load %arg1[%c0, %c0_0, %c0_1] : memref<1x4x8xf32, #tpu.memory_space<vmem>>, vector<1x4x8xf32>
    %1 = vector.shape_cast %0 : vector<1x4x8xf32> to vector<4x8xf32>
    %c0_2 = arith.constant 0 : index
    %c0_3 = arith.constant 0 : index
    %c0_4 = arith.constant 0 : index
    %2 = vector.load %arg2[%c0_2, %c0_3, %c0_4] : memref<1x8x8xf32, #tpu.memory_space<vmem>>, vector<1x8x8xf32>
    %3 = vector.shape_cast %2 : vector<1x8x8xf32> to vector<8x8xf32>
    %4 = tpu.transpose %1, [1, 0] : vector<4x8xf32> -> vector<8x4xf32>
    %c0_5 = arith.constant 0 : index
    %c0_6 = arith.constant 0 : index
    %5 = vector.load %arg3[%c0_5, %c0_6] : memref<4x16xbf16, #tpu.memory_space<vmem>>, vector<4x16xbf16>
    %c0_7 = arith.constant 0 : index
    %c0_8 = arith.constant 0 : index
    %6 = vector.load %arg4[%c0_7, %c0_8] : memref<4x32xbf16, #tpu.memory_space<vmem>>, vector<4x32xbf16>
    %c0_9 = arith.constant 0 : index
    %c0_10 = arith.constant 0 : index
    %7 = vector.load %arg5[%c0_9, %c0_10] : memref<4x16xbf16, #tpu.memory_space<vmem>>, vector<4x16xbf16>
    %c0_11 = arith.constant 0 : index
    %c0_12 = arith.constant 0 : index
    %8 = vector.load %arg6[%c0_11, %c0_12] : memref<1x16xf32, #tpu.memory_space<vmem>>, vector<1x16xf32>
    %c0_13 = arith.constant 0 : index
    %c0_14 = arith.constant 0 : index
    %9 = vector.load %arg7[%c0_13, %c0_14] : memref<16x4xbf16, #tpu.memory_space<vmem>>, vector<16x4xbf16>
    %c0_15 = arith.constant 0 : index
    %c0_16 = arith.constant 0 : index
    %10 = vector.load %arg8[%c0_15, %c0_16] : memref<1x4xf32, #tpu.memory_space<vmem>>, vector<1x4xf32>
    %11 = arith.truncf %4 : vector<8x4xf32> to vector<8x4xbf16>
    %cst = arith.constant dense<0.000000e+00> : vector<8x32xf32>
    %12 = tpu.matmul %11, %6, %cst {dimension_numbers = #tpu.dot_dimension_numbers<[1], [0], [0], [1], [0, 0, 1, 1], [], []>} : vector<8x4xbf16>, vector<4x32xbf16>, vector<8x32xf32> -> vector<8x32xf32>
    %13 = vector.extract_strided_slice %12 {offsets = [0, 0], sizes = [8, 16], strides = [1, 1]} : vector<8x32xf32> to vector<8x16xf32>
    %14 = arith.truncf %13 : vector<8x16xf32> to vector<8x16xbf16>
    %15 = vector.extract_strided_slice %12 {offsets = [0, 16], sizes = [8, 16], strides = [1, 1]} : vector<8x32xf32> to vector<8x16xf32>
    %16 = arith.truncf %15 : vector<8x16xf32> to vector<8x16xbf16>
    %cst_17 = arith.constant dense<0.000000e+00> : vector<8x16xf32>
    %17 = tpu.matmul %11, %5, %cst_17 {dimension_numbers = #tpu.dot_dimension_numbers<[1], [0], [0], [1], [0, 0, 1, 1], [], []>} : vector<8x4xbf16>, vector<4x16xbf16>, vector<8x16xf32> -> vector<8x16xf32>
    %cst_18 = arith.constant dense<0.000000e+00> : vector<8x16xf32>
    %18 = tpu.matmul %11, %7, %cst_18 {dimension_numbers = #tpu.dot_dimension_numbers<[1], [0], [0], [1], [0, 0, 1, 1], [], []>} : vector<8x4xbf16>, vector<4x16xbf16>, vector<8x16xf32> -> vector<8x16xf32>
    %19 = vector.broadcast %8 : vector<1x16xf32> to vector<8x16xf32>
    %20 = arith.addf %18, %19 : vector<8x16xf32>
    %21 = arith.negf %20 : vector<8x16xf32>
    %22 = math.exp %21 : vector<8x16xf32>
    %cst_19 = arith.constant 1.000000e+00 : f32
    %23 = vector.broadcast %cst_19 : f32 to vector<8x16xf32>
    %24 = arith.addf %23, %22 : vector<8x16xf32>
    %25 = arith.divf %23, %24 : vector<8x16xf32>
    %26 = vector.extract_strided_slice %17 {offsets = [0, 0], sizes = [8, 8], strides = [1, 1]} : vector<8x16xf32> to vector<8x8xf32>
    %27 = arith.truncf %26 : vector<8x8xf32> to vector<8x8xbf16>
    %28 = vector.extract_strided_slice %14 {offsets = [0, 0], sizes = [8, 8], strides = [1, 1]} : vector<8x16xbf16> to vector<8x8xbf16>
    %cst_20 = arith.constant dense<0.000000e+00> : vector<8x8xf32>
    %29 = tpu.matmul %27, %28, %cst_20 {dimension_numbers = #tpu.dot_dimension_numbers<[1], [1], [0], [0], [0, 0, 1, 0], [], []>} : vector<8x8xbf16>, vector<8x8xbf16>, vector<8x8xf32> -> vector<8x8xf32>
    %30 = arith.addf %29, %3 : vector<8x8xf32>
    %cst_21 = arith.constant dense<0xFF800000> : vector<8xf32>
    %31 = vector.multi_reduction <maximumf>, %30, %cst_21 [1] : vector<8x8xf32> to vector<8xf32>
    %32 = vector.shape_cast %31 : vector<8xf32> to vector<8x1xf32>
    %33 = vector.broadcast %32 : vector<8x1xf32> to vector<8x8xf32>
    %34 = arith.subf %30, %33 : vector<8x8xf32>
    %35 = math.exp %34 : vector<8x8xf32>
    %cst_22 = arith.constant dense<0.000000e+00> : vector<8xf32>
    %36 = vector.multi_reduction <add>, %35, %cst_22 [1] : vector<8x8xf32> to vector<8xf32>
    %37 = vector.shape_cast %36 : vector<8xf32> to vector<8x1xf32>
    %38 = tpu.reciprocal %37 {approx = true} : vector<8x1xf32> -> vector<8x1xf32>
    %39 = vector.broadcast %38 : vector<8x1xf32> to vector<8x8xf32>
    %40 = arith.mulf %35, %39 : vector<8x8xf32>
    %41 = arith.truncf %40 : vector<8x8xf32> to vector<8x8xbf16>
    %42 = vector.extract_strided_slice %16 {offsets = [0, 0], sizes = [8, 8], strides = [1, 1]} : vector<8x16xbf16> to vector<8x8xbf16>
    %cst_23 = arith.constant dense<0.000000e+00> : vector<8x8xf32>
    %43 = tpu.matmul %41, %42, %cst_23 {dimension_numbers = #tpu.dot_dimension_numbers<[1], [0], [0], [1], [0, 0, 1, 1], [], []>} : vector<8x8xbf16>, vector<8x8xbf16>, vector<8x8xf32> -> vector<8x8xf32>
    %44 = vector.extract_strided_slice %17 {offsets = [0, 8], sizes = [8, 8], strides = [1, 1]} : vector<8x16xf32> to vector<8x8xf32>
    %45 = arith.truncf %44 : vector<8x8xf32> to vector<8x8xbf16>
    %46 = vector.extract_strided_slice %14 {offsets = [0, 8], sizes = [8, 8], strides = [1, 1]} : vector<8x16xbf16> to vector<8x8xbf16>
    %cst_24 = arith.constant dense<0.000000e+00> : vector<8x8xf32>
    %47 = tpu.matmul %45, %46, %cst_24 {dimension_numbers = #tpu.dot_dimension_numbers<[1], [1], [0], [0], [0, 0, 1, 0], [], []>} : vector<8x8xbf16>, vector<8x8xbf16>, vector<8x8xf32> -> vector<8x8xf32>
    %48 = arith.addf %47, %3 : vector<8x8xf32>
    %cst_25 = arith.constant dense<0xFF800000> : vector<8xf32>
    %49 = vector.multi_reduction <maximumf>, %48, %cst_25 [1] : vector<8x8xf32> to vector<8xf32>
    %50 = vector.shape_cast %49 : vector<8xf32> to vector<8x1xf32>
    %51 = vector.broadcast %50 : vector<8x1xf32> to vector<8x8xf32>
    %52 = arith.subf %48, %51 : vector<8x8xf32>
    %53 = math.exp %52 : vector<8x8xf32>
    %cst_26 = arith.constant dense<0.000000e+00> : vector<8xf32>
    %54 = vector.multi_reduction <add>, %53, %cst_26 [1] : vector<8x8xf32> to vector<8xf32>
    %55 = vector.shape_cast %54 : vector<8xf32> to vector<8x1xf32>
    %56 = tpu.reciprocal %55 {approx = true} : vector<8x1xf32> -> vector<8x1xf32>
    %57 = vector.broadcast %56 : vector<8x1xf32> to vector<8x8xf32>
    %58 = arith.mulf %53, %57 : vector<8x8xf32>
    %59 = arith.truncf %58 : vector<8x8xf32> to vector<8x8xbf16>
    %60 = vector.extract_strided_slice %16 {offsets = [0, 8], sizes = [8, 8], strides = [1, 1]} : vector<8x16xbf16> to vector<8x8xbf16>
    %cst_27 = arith.constant dense<0.000000e+00> : vector<8x8xf32>
    %61 = tpu.matmul %59, %60, %cst_27 {dimension_numbers = #tpu.dot_dimension_numbers<[1], [0], [0], [1], [0, 0, 1, 1], [], []>} : vector<8x8xbf16>, vector<8x8xbf16>, vector<8x8xf32> -> vector<8x8xf32>
    %62 = tpu.concatenate %43, %61 in 1 : vector<8x8xf32>, vector<8x8xf32> -> vector<8x16xf32>
    %63 = arith.mulf %62, %25 : vector<8x16xf32>
    %64 = arith.truncf %63 : vector<8x16xf32> to vector<8x16xbf16>
    %cst_28 = arith.constant dense<0.000000e+00> : vector<8x4xf32>
    %65 = tpu.matmul %64, %9, %cst_28 {dimension_numbers = #tpu.dot_dimension_numbers<[1], [0], [0], [1], [0, 0, 1, 1], [], []>} : vector<8x16xbf16>, vector<16x4xbf16>, vector<8x4xf32> -> vector<8x4xf32>
    %66 = vector.broadcast %10 : vector<1x4xf32> to vector<8x4xf32>
    %67 = arith.addf %65, %66 : vector<8x4xf32>
    %68 = arith.addf %67, %4 : vector<8x4xf32>
    %69 = arith.truncf %68 : vector<8x4xf32> to vector<8x4xbf16>
    %cst_29 = arith.constant 0.000000e+00 : f32
    %70 = vector.broadcast %cst_29 : f32 to vector<8x4xf32>
    %c0_30 = arith.constant 0 : index
    %c0_31 = arith.constant 0 : index
    %71 = vector.load %arg9[%c0_30, %c0_31] : memref<4x32xbf16, #tpu.memory_space<vmem>>, vector<4x16xbf16>
    %cst_32 = arith.constant dense<0.000000e+00> : vector<8x16xf32>
    %72 = tpu.matmul %69, %71, %cst_32 {dimension_numbers = #tpu.dot_dimension_numbers<[1], [0], [0], [1], [0, 0, 1, 1], [], []>} : vector<8x4xbf16>, vector<4x16xbf16>, vector<8x16xf32> -> vector<8x16xf32>
    %c0_33 = arith.constant 0 : index
    %c0_34 = arith.constant 0 : index
    %73 = vector.load %arg10[%c0_33, %c0_34] : memref<1x32xf32, #tpu.memory_space<vmem>>, vector<1x16xf32>
    %74 = vector.broadcast %73 : vector<1x16xf32> to vector<8x16xf32>
    %75 = arith.addf %72, %74 : vector<8x16xf32>
    %c0_35 = arith.constant 0 : index
    %c16 = arith.constant 16 : index
    %76 = vector.load %arg9[%c0_35, %c16] : memref<4x32xbf16, #tpu.memory_space<vmem>>, vector<4x16xbf16>
    %cst_36 = arith.constant dense<0.000000e+00> : vector<8x16xf32>
    %77 = tpu.matmul %69, %76, %cst_36 {dimension_numbers = #tpu.dot_dimension_numbers<[1], [0], [0], [1], [0, 0, 1, 1], [], []>} : vector<8x4xbf16>, vector<4x16xbf16>, vector<8x16xf32> -> vector<8x16xf32>
    %c0_37 = arith.constant 0 : index
    %c16_38 = arith.constant 16 : index
    %78 = vector.load %arg10[%c0_37, %c16_38] : memref<1x32xf32, #tpu.memory_space<vmem>>, vector<1x16xf32>
    %79 = vector.broadcast %78 : vector<1x16xf32> to vector<8x16xf32>
    %80 = arith.addf %77, %79 : vector<8x16xf32>
    %cst_39 = arith.constant 5.000000e-01 : f32
    %81 = vector.broadcast %cst_39 : f32 to vector<8x16xf32>
    %82 = arith.mulf %81, %80 : vector<8x16xf32>
    %cst_40 = arith.constant 0.707106769 : f32
    %83 = vector.broadcast %cst_40 : f32 to vector<8x16xf32>
    %84 = arith.mulf %80, %83 : vector<8x16xf32>
    %85 = math.erf %84 : vector<8x16xf32>
    %cst_41 = arith.constant 1.000000e+00 : f32
    %86 = vector.broadcast %cst_41 : f32 to vector<8x16xf32>
    %87 = arith.addf %86, %85 : vector<8x16xf32>
    %88 = arith.mulf %82, %87 : vector<8x16xf32>
    %89 = arith.mulf %75, %88 : vector<8x16xf32>
    %90 = arith.truncf %89 : vector<8x16xf32> to vector<8x16xbf16>
    %c0_42 = arith.constant 0 : index
    %c0_43 = arith.constant 0 : index
    %91 = vector.load %arg11[%c0_42, %c0_43] : memref<16x4xbf16, #tpu.memory_space<vmem>>, vector<16x4xbf16>
    %cst_44 = arith.constant dense<0.000000e+00> : vector<8x4xf32>
    %92 = tpu.matmul %90, %91, %cst_44 {dimension_numbers = #tpu.dot_dimension_numbers<[1], [0], [0], [1], [0, 0, 1, 1], [], []>} : vector<8x16xbf16>, vector<16x4xbf16>, vector<8x4xf32> -> vector<8x4xf32>
    %93 = arith.addf %70, %92 : vector<8x4xf32>
    %c0_45 = arith.constant 0 : index
    %c0_46 = arith.constant 0 : index
    %94 = vector.load %arg12[%c0_45, %c0_46] : memref<1x4xf32, #tpu.memory_space<vmem>>, vector<1x4xf32>
    %95 = vector.broadcast %94 : vector<1x4xf32> to vector<8x4xf32>
    %96 = arith.addf %93, %95 : vector<8x4xf32>
    %97 = arith.addf %96, %68 : vector<8x4xf32>
    %98 = tpu.transpose %97, [1, 0] : vector<8x4xf32> -> vector<4x8xf32>
    %c0_47 = arith.constant 0 : index
    %c0_48 = arith.constant 0 : index
    %99 = vector.load %arg13[%c0_47, %c0_48] : memref<8x16xbf16, #tpu.memory_space<vmem>>, vector<8x16xbf16>
    %c0_49 = arith.constant 0 : index
    %c0_50 = arith.constant 0 : index
    %100 = vector.load %arg14[%c0_49, %c0_50] : memref<8x32xbf16, #tpu.memory_space<vmem>>, vector<8x32xbf16>
    %c0_51 = arith.constant 0 : index
    %c0_52 = arith.constant 0 : index
    %101 = vector.load %arg15[%c0_51, %c0_52] : memref<8x16xbf16, #tpu.memory_space<vmem>>, vector<8x16xbf16>
    %c0_53 = arith.constant 0 : index
    %c0_54 = arith.constant 0 : index
    %102 = vector.load %arg16[%c0_53, %c0_54] : memref<1x16xf32, #tpu.memory_space<vmem>>, vector<1x16xf32>
    %c0_55 = arith.constant 0 : index
    %c0_56 = arith.constant 0 : index
    %103 = vector.load %arg17[%c0_55, %c0_56] : memref<16x8xbf16, #tpu.memory_space<vmem>>, vector<16x8xbf16>
    %c0_57 = arith.constant 0 : index
    %c0_58 = arith.constant 0 : index
    %104 = vector.load %arg18[%c0_57, %c0_58] : memref<1x8xf32, #tpu.memory_space<vmem>>, vector<1x8xf32>
    %105 = arith.truncf %98 : vector<4x8xf32> to vector<4x8xbf16>
    %cst_59 = arith.constant dense<0.000000e+00> : vector<4x32xf32>
    %106 = tpu.matmul %105, %100, %cst_59 {dimension_numbers = #tpu.dot_dimension_numbers<[1], [0], [0], [1], [0, 0, 1, 1], [], []>} : vector<4x8xbf16>, vector<8x32xbf16>, vector<4x32xf32> -> vector<4x32xf32>
    %107 = vector.extract_strided_slice %106 {offsets = [0, 0], sizes = [4, 16], strides = [1, 1]} : vector<4x32xf32> to vector<4x16xf32>
    %108 = arith.truncf %107 : vector<4x16xf32> to vector<4x16xbf16>
    %109 = vector.extract_strided_slice %106 {offsets = [0, 16], sizes = [4, 16], strides = [1, 1]} : vector<4x32xf32> to vector<4x16xf32>
    %110 = arith.truncf %109 : vector<4x16xf32> to vector<4x16xbf16>
    %cst_60 = arith.constant dense<0.000000e+00> : vector<4x16xf32>
    %111 = tpu.matmul %105, %99, %cst_60 {dimension_numbers = #tpu.dot_dimension_numbers<[1], [0], [0], [1], [0, 0, 1, 1], [], []>} : vector<4x8xbf16>, vector<8x16xbf16>, vector<4x16xf32> -> vector<4x16xf32>
    %cst_61 = arith.constant dense<0.000000e+00> : vector<4x16xf32>
    %112 = tpu.matmul %105, %101, %cst_61 {dimension_numbers = #tpu.dot_dimension_numbers<[1], [0], [0], [1], [0, 0, 1, 1], [], []>} : vector<4x8xbf16>, vector<8x16xbf16>, vector<4x16xf32> -> vector<4x16xf32>
    %113 = vector.broadcast %102 : vector<1x16xf32> to vector<4x16xf32>
    %114 = arith.addf %112, %113 : vector<4x16xf32>
    %115 = arith.negf %114 : vector<4x16xf32>
    %116 = math.exp %115 : vector<4x16xf32>
    %cst_62 = arith.constant 1.000000e+00 : f32
    %117 = vector.broadcast %cst_62 : f32 to vector<4x16xf32>
    %118 = arith.addf %117, %116 : vector<4x16xf32>
    %119 = arith.divf %117, %118 : vector<4x16xf32>
    %120 = vector.extract_strided_slice %111 {offsets = [0, 0], sizes = [4, 8], strides = [1, 1]} : vector<4x16xf32> to vector<4x8xf32>
    %121 = arith.truncf %120 : vector<4x8xf32> to vector<4x8xbf16>
    %122 = vector.extract_strided_slice %108 {offsets = [0, 0], sizes = [4, 8], strides = [1, 1]} : vector<4x16xbf16> to vector<4x8xbf16>
    %cst_63 = arith.constant dense<0.000000e+00> : vector<4x4xf32>
    %123 = tpu.matmul %121, %122, %cst_63 {dimension_numbers = #tpu.dot_dimension_numbers<[1], [1], [0], [0], [0, 0, 1, 0], [], []>} : vector<4x8xbf16>, vector<4x8xbf16>, vector<4x4xf32> -> vector<4x4xf32>
    %cst_64 = arith.constant dense<0xFF800000> : vector<4xf32>
    %124 = vector.multi_reduction <maximumf>, %123, %cst_64 [1] : vector<4x4xf32> to vector<4xf32>
    %125 = vector.shape_cast %124 : vector<4xf32> to vector<4x1xf32>
    %126 = vector.broadcast %125 : vector<4x1xf32> to vector<4x4xf32>
    %127 = arith.subf %123, %126 : vector<4x4xf32>
    %128 = math.exp %127 : vector<4x4xf32>
    %cst_65 = arith.constant dense<0.000000e+00> : vector<4xf32>
    %129 = vector.multi_reduction <add>, %128, %cst_65 [1] : vector<4x4xf32> to vector<4xf32>
    %130 = vector.shape_cast %129 : vector<4xf32> to vector<4x1xf32>
    %131 = tpu.reciprocal %130 {approx = true} : vector<4x1xf32> -> vector<4x1xf32>
    %132 = vector.broadcast %131 : vector<4x1xf32> to vector<4x4xf32>
    %133 = arith.mulf %128, %132 : vector<4x4xf32>
    %134 = arith.truncf %133 : vector<4x4xf32> to vector<4x4xbf16>
    %135 = vector.extract_strided_slice %110 {offsets = [0, 0], sizes = [4, 8], strides = [1, 1]} : vector<4x16xbf16> to vector<4x8xbf16>
    %cst_66 = arith.constant dense<0.000000e+00> : vector<4x8xf32>
    %136 = tpu.matmul %134, %135, %cst_66 {dimension_numbers = #tpu.dot_dimension_numbers<[1], [0], [0], [1], [0, 0, 1, 1], [], []>} : vector<4x4xbf16>, vector<4x8xbf16>, vector<4x8xf32> -> vector<4x8xf32>
    %137 = vector.extract_strided_slice %111 {offsets = [0, 8], sizes = [4, 8], strides = [1, 1]} : vector<4x16xf32> to vector<4x8xf32>
    %138 = arith.truncf %137 : vector<4x8xf32> to vector<4x8xbf16>
    %139 = vector.extract_strided_slice %108 {offsets = [0, 8], sizes = [4, 8], strides = [1, 1]} : vector<4x16xbf16> to vector<4x8xbf16>
    %cst_67 = arith.constant dense<0.000000e+00> : vector<4x4xf32>
    %140 = tpu.matmul %138, %139, %cst_67 {dimension_numbers = #tpu.dot_dimension_numbers<[1], [1], [0], [0], [0, 0, 1, 0], [], []>} : vector<4x8xbf16>, vector<4x8xbf16>, vector<4x4xf32> -> vector<4x4xf32>
    %cst_68 = arith.constant dense<0xFF800000> : vector<4xf32>
    %141 = vector.multi_reduction <maximumf>, %140, %cst_68 [1] : vector<4x4xf32> to vector<4xf32>
    %142 = vector.shape_cast %141 : vector<4xf32> to vector<4x1xf32>
    %143 = vector.broadcast %142 : vector<4x1xf32> to vector<4x4xf32>
    %144 = arith.subf %140, %143 : vector<4x4xf32>
    %145 = math.exp %144 : vector<4x4xf32>
    %cst_69 = arith.constant dense<0.000000e+00> : vector<4xf32>
    %146 = vector.multi_reduction <add>, %145, %cst_69 [1] : vector<4x4xf32> to vector<4xf32>
    %147 = vector.shape_cast %146 : vector<4xf32> to vector<4x1xf32>
    %148 = tpu.reciprocal %147 {approx = true} : vector<4x1xf32> -> vector<4x1xf32>
    %149 = vector.broadcast %148 : vector<4x1xf32> to vector<4x4xf32>
    %150 = arith.mulf %145, %149 : vector<4x4xf32>
    %151 = arith.truncf %150 : vector<4x4xf32> to vector<4x4xbf16>
    %152 = vector.extract_strided_slice %110 {offsets = [0, 8], sizes = [4, 8], strides = [1, 1]} : vector<4x16xbf16> to vector<4x8xbf16>
    %cst_70 = arith.constant dense<0.000000e+00> : vector<4x8xf32>
    %153 = tpu.matmul %151, %152, %cst_70 {dimension_numbers = #tpu.dot_dimension_numbers<[1], [0], [0], [1], [0, 0, 1, 1], [], []>} : vector<4x4xbf16>, vector<4x8xbf16>, vector<4x8xf32> -> vector<4x8xf32>
    %154 = tpu.concatenate %136, %153 in 1 : vector<4x8xf32>, vector<4x8xf32> -> vector<4x16xf32>
    %155 = arith.mulf %154, %119 : vector<4x16xf32>
    %156 = arith.truncf %155 : vector<4x16xf32> to vector<4x16xbf16>
    %cst_71 = arith.constant dense<0.000000e+00> : vector<4x8xf32>
    %157 = tpu.matmul %156, %103, %cst_71 {dimension_numbers = #tpu.dot_dimension_numbers<[1], [0], [0], [1], [0, 0, 1, 1], [], []>} : vector<4x16xbf16>, vector<16x8xbf16>, vector<4x8xf32> -> vector<4x8xf32>
    %158 = vector.broadcast %104 : vector<1x8xf32> to vector<4x8xf32>
    %159 = arith.addf %157, %158 : vector<4x8xf32>
    %160 = arith.addf %159, %98 : vector<4x8xf32>
    %161 = arith.truncf %160 : vector<4x8xf32> to vector<4x8xbf16>
    %cst_72 = arith.constant 0.000000e+00 : f32
    %162 = vector.broadcast %cst_72 : f32 to vector<4x8xf32>
    %c0_73 = arith.constant 0 : index
    %c0_74 = arith.constant 0 : index
    %163 = vector.load %arg19[%c0_73, %c0_74] : memref<8x64xbf16, #tpu.memory_space<vmem>>, vector<8x32xbf16>
    %cst_75 = arith.constant dense<0.000000e+00> : vector<4x32xf32>
    %164 = tpu.matmul %161, %163, %cst_75 {dimension_numbers = #tpu.dot_dimension_numbers<[1], [0], [0], [1], [0, 0, 1, 1], [], []>} : vector<4x8xbf16>, vector<8x32xbf16>, vector<4x32xf32> -> vector<4x32xf32>
    %c0_76 = arith.constant 0 : index
    %c0_77 = arith.constant 0 : index
    %165 = vector.load %arg20[%c0_76, %c0_77] : memref<1x64xf32, #tpu.memory_space<vmem>>, vector<1x32xf32>
    %166 = vector.broadcast %165 : vector<1x32xf32> to vector<4x32xf32>
    %167 = arith.addf %164, %166 : vector<4x32xf32>
    %c0_78 = arith.constant 0 : index
    %c32 = arith.constant 32 : index
    %168 = vector.load %arg19[%c0_78, %c32] : memref<8x64xbf16, #tpu.memory_space<vmem>>, vector<8x32xbf16>
    %cst_79 = arith.constant dense<0.000000e+00> : vector<4x32xf32>
    %169 = tpu.matmul %161, %168, %cst_79 {dimension_numbers = #tpu.dot_dimension_numbers<[1], [0], [0], [1], [0, 0, 1, 1], [], []>} : vector<4x8xbf16>, vector<8x32xbf16>, vector<4x32xf32> -> vector<4x32xf32>
    %c0_80 = arith.constant 0 : index
    %c32_81 = arith.constant 32 : index
    %170 = vector.load %arg20[%c0_80, %c32_81] : memref<1x64xf32, #tpu.memory_space<vmem>>, vector<1x32xf32>
    %171 = vector.broadcast %170 : vector<1x32xf32> to vector<4x32xf32>
    %172 = arith.addf %169, %171 : vector<4x32xf32>
    %cst_82 = arith.constant 5.000000e-01 : f32
    %173 = vector.broadcast %cst_82 : f32 to vector<4x32xf32>
    %174 = arith.mulf %173, %172 : vector<4x32xf32>
    %cst_83 = arith.constant 0.707106769 : f32
    %175 = vector.broadcast %cst_83 : f32 to vector<4x32xf32>
    %176 = arith.mulf %172, %175 : vector<4x32xf32>
    %177 = math.erf %176 : vector<4x32xf32>
    %cst_84 = arith.constant 1.000000e+00 : f32
    %178 = vector.broadcast %cst_84 : f32 to vector<4x32xf32>
    %179 = arith.addf %178, %177 : vector<4x32xf32>
    %180 = arith.mulf %174, %179 : vector<4x32xf32>
    %181 = arith.mulf %167, %180 : vector<4x32xf32>
    %182 = arith.truncf %181 : vector<4x32xf32> to vector<4x32xbf16>
    %c0_85 = arith.constant 0 : index
    %c0_86 = arith.constant 0 : index
    %183 = vector.load %arg21[%c0_85, %c0_86] : memref<32x8xbf16, #tpu.memory_space<vmem>>, vector<32x8xbf16>
    %cst_87 = arith.constant dense<0.000000e+00> : vector<4x8xf32>
    %184 = tpu.matmul %182, %183, %cst_87 {dimension_numbers = #tpu.dot_dimension_numbers<[1], [0], [0], [1], [0, 0, 1, 1], [], []>} : vector<4x32xbf16>, vector<32x8xbf16>, vector<4x8xf32> -> vector<4x8xf32>
    %185 = arith.addf %162, %184 : vector<4x8xf32>
    %c0_88 = arith.constant 0 : index
    %c0_89 = arith.constant 0 : index
    %186 = vector.load %arg22[%c0_88, %c0_89] : memref<1x8xf32, #tpu.memory_space<vmem>>, vector<1x8xf32>
    %187 = vector.broadcast %186 : vector<1x8xf32> to vector<4x8xf32>
    %188 = arith.addf %185, %187 : vector<4x8xf32>
    %189 = arith.addf %188, %160 : vector<4x8xf32>
    %cst_90 = arith.constant 2.500000e-01 : f32
    %190 = vector.broadcast %cst_90 : f32 to vector<4x8xf32>
    %191 = arith.mulf %189, %190 : vector<4x8xf32>
    %cst_91 = arith.constant dense<0.000000e+00> : vector<8x8xf32>
    %192 = tpu.matmul %191, %189, %cst_91 {dimension_numbers = #tpu.dot_dimension_numbers<[0], [0], [1], [1], [0, 1, 1, 1], [], []>} : vector<4x8xf32>, vector<4x8xf32>, vector<8x8xf32> -> vector<8x8xf32>
    %193 = arith.addf %3, %192 : vector<8x8xf32>
    %c0_92 = arith.constant 0 : index
    %c0_93 = arith.constant 0 : index
    %c0_94 = arith.constant 0 : index
    %194 = vector.load %arg24[%c0_92, %c0_93, %c0_94] : memref<1x8x8xf32, #tpu.memory_space<vmem>>, vector<1x8x8xf32>
    %195 = vector.shape_cast %194 : vector<1x8x8xf32> to vector<8x8xf32>
    %196 = vector.shape_cast %193 : vector<8x8xf32> to vector<1x8x8xf32>
    tpu.vector_store %arg24[%c0_92, %c0_93, %c0_94], %196 {strides = array<i32>} : memref<1x8x8xf32, #tpu.memory_space<vmem>>, vector<1x8x8xf32>,
    %c0_95 = arith.constant 0 : index
    %c0_96 = arith.constant 0 : index
    %c0_97 = arith.constant 0 : index
    %197 = vector.load %arg23[%c0_95, %c0_96, %c0_97] : memref<1x4x8xf32, #tpu.memory_space<vmem>>, vector<1x4x8xf32>
    %198 = vector.shape_cast %197 : vector<1x4x8xf32> to vector<4x8xf32>
    %199 = vector.shape_cast %189 : vector<4x8xf32> to vector<1x4x8xf32>
    tpu.vector_store %arg23[%c0_95, %c0_96, %c0_97], %199 {strides = array<i32>} : memref<1x4x8xf32, #tpu.memory_space<vmem>>, vector<1x4x8xf32>,
    return
  }
  func.func @transform_0(%arg0: i32) -> (i32, i32, i32) {
    %c0_i32 = arith.constant 0 : i32
    %c0_i32_0 = arith.constant 0 : i32
    %c0_i32_1 = arith.constant 0 : i32
    return %arg0, %c0_i32, %c0_i32_0 : i32, i32, i32
  }
  func.func @transform_1(%arg0: i32) -> (i32, i32, i32) {
    %c0_i32 = arith.constant 0 : i32
    %c0_i32_0 = arith.constant 0 : i32
    %c0_i32_1 = arith.constant 0 : i32
    %c0_i32_2 = arith.constant 0 : i32
    return %c0_i32, %c0_i32_0, %c0_i32_1 : i32, i32, i32
  }
  func.func @transform_2(%arg0: i32) -> (i32, i32) {
    %c0_i32 = arith.constant 0 : i32
    %c0_i32_0 = arith.constant 0 : i32
    %c0_i32_1 = arith.constant 0 : i32
    return %c0_i32, %c0_i32_0 : i32, i32
  }
  func.func @transform_3(%arg0: i32) -> (i32, i32) {
    %c0_i32 = arith.constant 0 : i32
    %c0_i32_0 = arith.constant 0 : i32
    %c0_i32_1 = arith.constant 0 : i32
    return %c0_i32, %c0_i32_0 : i32, i32
  }
  func.func @transform_4(%arg0: i32) -> (i32, i32) {
    %c0_i32 = arith.constant 0 : i32
    %c0_i32_0 = arith.constant 0 : i32
    %c0_i32_1 = arith.constant 0 : i32
    return %c0_i32, %c0_i32_0 : i32, i32
  }
  func.func @transform_5(%arg0: i32) -> (i32, i32) {
    %c0_i32 = arith.constant 0 : i32
    %c0_i32_0 = arith.constant 0 : i32
    %c0_i32_1 = arith.constant 0 : i32
    return %c0_i32, %c0_i32_0 : i32, i32
  }
  func.func @transform_6(%arg0: i32) -> (i32, i32) {
    %c0_i32 = arith.constant 0 : i32
    %c0_i32_0 = arith.constant 0 : i32
    %c0_i32_1 = arith.constant 0 : i32
    return %c0_i32, %c0_i32_0 : i32, i32
  }
  func.func @transform_7(%arg0: i32) -> (i32, i32) {
    %c0_i32 = arith.constant 0 : i32
    %c0_i32_0 = arith.constant 0 : i32
    %c0_i32_1 = arith.constant 0 : i32
    return %c0_i32, %c0_i32_0 : i32, i32
  }
  func.func @transform_8(%arg0: i32) -> (i32, i32) {
    %c0_i32 = arith.constant 0 : i32
    %c0_i32_0 = arith.constant 0 : i32
    %c0_i32_1 = arith.constant 0 : i32
    return %c0_i32, %c0_i32_0 : i32, i32
  }
  func.func @transform_9(%arg0: i32) -> (i32, i32) {
    %c0_i32 = arith.constant 0 : i32
    %c0_i32_0 = arith.constant 0 : i32
    %c0_i32_1 = arith.constant 0 : i32
    return %c0_i32, %c0_i32_0 : i32, i32
  }
  func.func @transform_10(%arg0: i32) -> (i32, i32) {
    %c0_i32 = arith.constant 0 : i32
    %c0_i32_0 = arith.constant 0 : i32
    %c0_i32_1 = arith.constant 0 : i32
    return %c0_i32, %c0_i32_0 : i32, i32
  }
  func.func @transform_11(%arg0: i32) -> (i32, i32) {
    %c0_i32 = arith.constant 0 : i32
    %c0_i32_0 = arith.constant 0 : i32
    %c0_i32_1 = arith.constant 0 : i32
    return %c0_i32, %c0_i32_0 : i32, i32
  }
  func.func @transform_12(%arg0: i32) -> (i32, i32) {
    %c0_i32 = arith.constant 0 : i32
    %c0_i32_0 = arith.constant 0 : i32
    %c0_i32_1 = arith.constant 0 : i32
    return %c0_i32, %c0_i32_0 : i32, i32
  }
  func.func @transform_13(%arg0: i32) -> (i32, i32) {
    %c0_i32 = arith.constant 0 : i32
    %c0_i32_0 = arith.constant 0 : i32
    %c0_i32_1 = arith.constant 0 : i32
    return %c0_i32, %c0_i32_0 : i32, i32
  }
  func.func @transform_14(%arg0: i32) -> (i32, i32) {
    %c0_i32 = arith.constant 0 : i32
    %c0_i32_0 = arith.constant 0 : i32
    %c0_i32_1 = arith.constant 0 : i32
    return %c0_i32, %c0_i32_0 : i32, i32
  }
  func.func @transform_15(%arg0: i32) -> (i32, i32) {
    %c0_i32 = arith.constant 0 : i32
    %c0_i32_0 = arith.constant 0 : i32
    %c0_i32_1 = arith.constant 0 : i32
    return %c0_i32, %c0_i32_0 : i32, i32
  }
  func.func @transform_16(%arg0: i32) -> (i32, i32) {
    %c0_i32 = arith.constant 0 : i32
    %c0_i32_0 = arith.constant 0 : i32
    %c0_i32_1 = arith.constant 0 : i32
    return %c0_i32, %c0_i32_0 : i32, i32
  }
  func.func @transform_17(%arg0: i32) -> (i32, i32) {
    %c0_i32 = arith.constant 0 : i32
    %c0_i32_0 = arith.constant 0 : i32
    %c0_i32_1 = arith.constant 0 : i32
    return %c0_i32, %c0_i32_0 : i32, i32
  }
  func.func @transform_18(%arg0: i32) -> (i32, i32) {
    %c0_i32 = arith.constant 0 : i32
    %c0_i32_0 = arith.constant 0 : i32
    %c0_i32_1 = arith.constant 0 : i32
    return %c0_i32, %c0_i32_0 : i32, i32
  }
  func.func @transform_19(%arg0: i32) -> (i32, i32) {
    %c0_i32 = arith.constant 0 : i32
    %c0_i32_0 = arith.constant 0 : i32
    %c0_i32_1 = arith.constant 0 : i32
    return %c0_i32, %c0_i32_0 : i32, i32
  }
  func.func @transform_20(%arg0: i32) -> (i32, i32) {
    %c0_i32 = arith.constant 0 : i32
    %c0_i32_0 = arith.constant 0 : i32
    %c0_i32_1 = arith.constant 0 : i32
    return %c0_i32, %c0_i32_0 : i32, i32
  }
  func.func @transform_21(%arg0: i32) -> (i32, i32) {
    %c0_i32 = arith.constant 0 : i32
    %c0_i32_0 = arith.constant 0 : i32
    %c0_i32_1 = arith.constant 0 : i32
    return %c0_i32, %c0_i32_0 : i32, i32
  }
  func.func @transform_22(%arg0: i32) -> (i32, i32, i32) {
    %c0_i32 = arith.constant 0 : i32
    %c0_i32_0 = arith.constant 0 : i32
    %c0_i32_1 = arith.constant 0 : i32
    return %arg0, %c0_i32, %c0_i32_0 : i32, i32, i32
  }
  func.func @transform_23(%arg0: i32) -> (i32, i32, i32) {
    %c0_i32 = arith.constant 0 : i32
    %c0_i32_0 = arith.constant 0 : i32
    %c0_i32_1 = arith.constant 0 : i32
    return %arg0, %c0_i32, %c0_i32_0 : i32, i32, i32
  }
}

module attributes {stable_mosaic.version = 11 : i64} {
  func.func @_linear_kernel(%arg0: i32, %arg1: i32, %arg2: memref<2x32xf32, #tpu.memory_space<vmem>>, %arg3: memref<32x128xbf16, #tpu.memory_space<vmem>>, %arg4: memref<1x128xf32, #tpu.memory_space<vmem>>, %arg5: memref<2x128xf32, #tpu.memory_space<vmem>>) attributes {dimension_semantics = [#tpu.dimension_semantics<parallel>, #tpu.dimension_semantics<arbitrary>], iteration_bounds = array<i64: 1, 1>, scalar_prefetch = 0 : i64, scratch_operands = 0 : i64, tpu.core_type = #tpu.core_type<tc>, window_params = [{transform_indices = @transform_0, window_bounds = array<i64: 2, 32>}, {transform_indices = @transform_1, window_bounds = array<i64: 32, 128>}, {pipeline_mode = #tpu.pipeline_mode<synchronous>, transform_indices = @transform_2, window_bounds = array<i64: 1, 128>}, {transform_indices = @transform_3, window_bounds = array<i64: 2, 128>}]} {
    %c0_i32 = arith.constant 0 : i32
    %0 = arith.cmpi eq, %arg1, %c0_i32 : i32
    %1 = arith.extui %0 : i1 to i32
    %c0_i32_0 = arith.constant 0 : i32
    %2 = arith.cmpi ne, %1, %c0_i32_0 : i32
    scf.if %2 {
      %cst_10 = arith.constant 0.000000e+00 : f32
      %13 = vector.broadcast %cst_10 : f32 to vector<2x128xf32>
      %c0_11 = arith.constant 0 : index
      %c0_12 = arith.constant 0 : index
      %14 = vector.load %arg5[%c0_11, %c0_12] : memref<2x128xf32, #tpu.memory_space<vmem>>, vector<2x128xf32>
      tpu.vector_store %arg5[%c0_11, %c0_12], %13 {strides = array<i32>} : memref<2x128xf32, #tpu.memory_space<vmem>>, vector<2x128xf32>,
    } else {
    }
    %c0 = arith.constant 0 : index
    %c0_1 = arith.constant 0 : index
    %3 = vector.load %arg5[%c0, %c0_1] : memref<2x128xf32, #tpu.memory_space<vmem>>, vector<2x128xf32>
    %c0_2 = arith.constant 0 : index
    %c0_3 = arith.constant 0 : index
    %4 = vector.load %arg2[%c0_2, %c0_3] : memref<2x32xf32, #tpu.memory_space<vmem>>, vector<2x32xf32>
    %c0_4 = arith.constant 0 : index
    %c0_5 = arith.constant 0 : index
    %5 = vector.load %arg3[%c0_4, %c0_5] : memref<32x128xbf16, #tpu.memory_space<vmem>>, vector<32x128xbf16>
    %6 = arith.truncf %4 : vector<2x32xf32> to vector<2x32xbf16>
    %cst = arith.constant dense<0.000000e+00> : vector<2x128xf32>
    %7 = tpu.matmul %6, %5, %cst {dimension_numbers = #tpu.dot_dimension_numbers<[1], [0], [0], [1], [0, 0, 1, 1], [], []>} : vector<2x32xbf16>, vector<32x128xbf16>, vector<2x128xf32> -> vector<2x128xf32>
    %8 = arith.addf %3, %7 : vector<2x128xf32>
    %c0_6 = arith.constant 0 : index
    %c0_7 = arith.constant 0 : index
    %9 = vector.load %arg5[%c0_6, %c0_7] : memref<2x128xf32, #tpu.memory_space<vmem>>, vector<2x128xf32>
    tpu.vector_store %arg5[%c0_6, %c0_7], %8 {strides = array<i32>} : memref<2x128xf32, #tpu.memory_space<vmem>>, vector<2x128xf32>,
    %c0_i32_8 = arith.constant 0 : i32
    %10 = arith.cmpi eq, %arg1, %c0_i32_8 : i32
    %11 = arith.extui %10 : i1 to i32
    %c0_i32_9 = arith.constant 0 : i32
    %12 = arith.cmpi ne, %11, %c0_i32_9 : i32
    scf.if %12 {
      %c0_10 = arith.constant 0 : index
      %c0_11 = arith.constant 0 : index
      %13 = vector.load %arg5[%c0_10, %c0_11] : memref<2x128xf32, #tpu.memory_space<vmem>>, vector<2x128xf32>
      %c0_12 = arith.constant 0 : index
      %c0_13 = arith.constant 0 : index
      %14 = vector.load %arg4[%c0_12, %c0_13] : memref<1x128xf32, #tpu.memory_space<vmem>>, vector<1x128xf32>
      %15 = vector.broadcast %14 : vector<1x128xf32> to vector<2x128xf32>
      %16 = arith.addf %13, %15 : vector<2x128xf32>
      %cst_14 = arith.constant 0.000000e+00 : f32
      %17 = vector.broadcast %cst_14 : f32 to vector<2x128xf32>
      %18 = arith.maximumf %16, %17 : vector<2x128xf32>
      %c0_15 = arith.constant 0 : index
      %c0_16 = arith.constant 0 : index
      %19 = vector.load %arg5[%c0_15, %c0_16] : memref<2x128xf32, #tpu.memory_space<vmem>>, vector<2x128xf32>
      tpu.vector_store %arg5[%c0_15, %c0_16], %18 {strides = array<i32>} : memref<2x128xf32, #tpu.memory_space<vmem>>, vector<2x128xf32>,
    } else {
    }
    return
  }
  func.func @transform_0(%arg0: i32, %arg1: i32) -> (i32, i32) {
    %c0_i32 = arith.constant 0 : i32
    return %arg0, %arg1 : i32, i32
  }
  func.func @transform_1(%arg0: i32, %arg1: i32) -> (i32, i32) {
    %c0_i32 = arith.constant 0 : i32
    %c0_i32_0 = arith.constant 0 : i32
    return %arg1, %c0_i32 : i32, i32
  }
  func.func @transform_2(%arg0: i32, %arg1: i32) -> (i32, i32) {
    %c0_i32 = arith.constant 0 : i32
    %c0_i32_0 = arith.constant 0 : i32
    %c0_i32_1 = arith.constant 0 : i32
    return %c0_i32, %c0_i32_0 : i32, i32
  }
  func.func @transform_3(%arg0: i32, %arg1: i32) -> (i32, i32) {
    %c0_i32 = arith.constant 0 : i32
    %c0_i32_0 = arith.constant 0 : i32
    return %arg0, %c0_i32 : i32, i32
  }
}

module attributes {stable_mosaic.version = 11 : i64} {
  func.func @_classifier_tail_kernel(%arg0: i32, %arg1: memref<2x128xf32, #tpu.memory_space<vmem>>, %arg2: memref<128x128xbf16, #tpu.memory_space<vmem>>, %arg3: memref<1x128xf32, #tpu.memory_space<vmem>>, %arg4: memref<128x128xbf16, #tpu.memory_space<vmem>>, %arg5: memref<1x128xf32, #tpu.memory_space<vmem>>, %arg6: memref<128x3xbf16, #tpu.memory_space<vmem>>, %arg7: memref<1x3xf32, #tpu.memory_space<vmem>>, %arg8: memref<2x3xf32, #tpu.memory_space<vmem>>) attributes {dimension_semantics = [#tpu.dimension_semantics<parallel>], iteration_bounds = array<i64: 1>, scalar_prefetch = 0 : i64, scratch_operands = 0 : i64, tpu.core_type = #tpu.core_type<tc>, window_params = [{transform_indices = @transform_0, window_bounds = array<i64: 2, 128>}, {pipeline_mode = #tpu.pipeline_mode<synchronous>, transform_indices = @transform_1, window_bounds = array<i64: 128, 128>}, {pipeline_mode = #tpu.pipeline_mode<synchronous>, transform_indices = @transform_2, window_bounds = array<i64: 1, 128>}, {pipeline_mode = #tpu.pipeline_mode<synchronous>, transform_indices = @transform_3, window_bounds = array<i64: 128, 128>}, {pipeline_mode = #tpu.pipeline_mode<synchronous>, transform_indices = @transform_4, window_bounds = array<i64: 1, 128>}, {pipeline_mode = #tpu.pipeline_mode<synchronous>, transform_indices = @transform_5, window_bounds = array<i64: 128, 3>}, {pipeline_mode = #tpu.pipeline_mode<synchronous>, transform_indices = @transform_6, window_bounds = array<i64: 1, 3>}, {transform_indices = @transform_7, window_bounds = array<i64: 2, 3>}]} {
    %c0 = arith.constant 0 : index
    %c0_0 = arith.constant 0 : index
    %0 = vector.load %arg1[%c0, %c0_0] : memref<2x128xf32, #tpu.memory_space<vmem>>, vector<2x128xf32>
    %1 = arith.truncf %0 : vector<2x128xf32> to vector<2x128xbf16>
    %c0_1 = arith.constant 0 : index
    %c0_2 = arith.constant 0 : index
    %2 = vector.load %arg2[%c0_1, %c0_2] : memref<128x128xbf16, #tpu.memory_space<vmem>>, vector<128x128xbf16>
    %cst = arith.constant dense<0.000000e+00> : vector<2x128xf32>
    %3 = tpu.matmul %1, %2, %cst {dimension_numbers = #tpu.dot_dimension_numbers<[1], [0], [0], [1], [0, 0, 1, 1], [], []>} : vector<2x128xbf16>, vector<128x128xbf16>, vector<2x128xf32> -> vector<2x128xf32>
    %c0_3 = arith.constant 0 : index
    %c0_4 = arith.constant 0 : index
    %4 = vector.load %arg3[%c0_3, %c0_4] : memref<1x128xf32, #tpu.memory_space<vmem>>, vector<1x128xf32>
    %5 = vector.broadcast %4 : vector<1x128xf32> to vector<2x128xf32>
    %6 = arith.addf %3, %5 : vector<2x128xf32>
    %cst_5 = arith.constant 0.000000e+00 : f32
    %7 = vector.broadcast %cst_5 : f32 to vector<2x128xf32>
    %8 = arith.maximumf %6, %7 : vector<2x128xf32>
    %9 = arith.truncf %8 : vector<2x128xf32> to vector<2x128xbf16>
    %c0_6 = arith.constant 0 : index
    %c0_7 = arith.constant 0 : index
    %10 = vector.load %arg4[%c0_6, %c0_7] : memref<128x128xbf16, #tpu.memory_space<vmem>>, vector<128x128xbf16>
    %cst_8 = arith.constant dense<0.000000e+00> : vector<2x128xf32>
    %11 = tpu.matmul %9, %10, %cst_8 {dimension_numbers = #tpu.dot_dimension_numbers<[1], [0], [0], [1], [0, 0, 1, 1], [], []>} : vector<2x128xbf16>, vector<128x128xbf16>, vector<2x128xf32> -> vector<2x128xf32>
    %c0_9 = arith.constant 0 : index
    %c0_10 = arith.constant 0 : index
    %12 = vector.load %arg5[%c0_9, %c0_10] : memref<1x128xf32, #tpu.memory_space<vmem>>, vector<1x128xf32>
    %13 = vector.broadcast %12 : vector<1x128xf32> to vector<2x128xf32>
    %14 = arith.addf %11, %13 : vector<2x128xf32>
    %cst_11 = arith.constant 0.000000e+00 : f32
    %15 = vector.broadcast %cst_11 : f32 to vector<2x128xf32>
    %16 = arith.maximumf %14, %15 : vector<2x128xf32>
    %17 = arith.truncf %16 : vector<2x128xf32> to vector<2x128xbf16>
    %c0_12 = arith.constant 0 : index
    %c0_13 = arith.constant 0 : index
    %18 = vector.load %arg6[%c0_12, %c0_13] : memref<128x3xbf16, #tpu.memory_space<vmem>>, vector<128x3xbf16>
    %cst_14 = arith.constant dense<0.000000e+00> : vector<2x3xf32>
    %19 = tpu.matmul %17, %18, %cst_14 {dimension_numbers = #tpu.dot_dimension_numbers<[1], [0], [0], [1], [0, 0, 1, 1], [], []>} : vector<2x128xbf16>, vector<128x3xbf16>, vector<2x3xf32> -> vector<2x3xf32>
    %c0_15 = arith.constant 0 : index
    %c0_16 = arith.constant 0 : index
    %20 = vector.load %arg7[%c0_15, %c0_16] : memref<1x3xf32, #tpu.memory_space<vmem>>, vector<1x3xf32>
    %21 = vector.broadcast %20 : vector<1x3xf32> to vector<2x3xf32>
    %22 = arith.addf %19, %21 : vector<2x3xf32>
    %cst_17 = arith.constant dense<0xFF800000> : vector<2xf32>
    %23 = vector.multi_reduction <maximumf>, %22, %cst_17 [1] : vector<2x3xf32> to vector<2xf32>
    %24 = vector.shape_cast %23 : vector<2xf32> to vector<2x1xf32>
    %25 = vector.broadcast %24 : vector<2x1xf32> to vector<2x3xf32>
    %26 = arith.subf %22, %25 : vector<2x3xf32>
    %27 = math.exp %26 : vector<2x3xf32>
    %cst_18 = arith.constant dense<0.000000e+00> : vector<2xf32>
    %28 = vector.multi_reduction <add>, %27, %cst_18 [1] : vector<2x3xf32> to vector<2xf32>
    %29 = vector.shape_cast %28 : vector<2xf32> to vector<2x1xf32>
    %30 = tpu.reciprocal %29 {approx = true} : vector<2x1xf32> -> vector<2x1xf32>
    %31 = vector.broadcast %30 : vector<2x1xf32> to vector<2x3xf32>
    %32 = arith.mulf %27, %31 : vector<2x3xf32>
    %c0_19 = arith.constant 0 : index
    %c0_20 = arith.constant 0 : index
    %33 = vector.load %arg8[%c0_19, %c0_20] : memref<2x3xf32, #tpu.memory_space<vmem>>, vector<2x3xf32>
    tpu.vector_store %arg8[%c0_19, %c0_20], %32 {strides = array<i32>} : memref<2x3xf32, #tpu.memory_space<vmem>>, vector<2x3xf32>,
    return
  }
  func.func @transform_0(%arg0: i32) -> (i32, i32) {
    %c0_i32 = arith.constant 0 : i32
    %c0_i32_0 = arith.constant 0 : i32
    return %arg0, %c0_i32 : i32, i32
  }
  func.func @transform_1(%arg0: i32) -> (i32, i32) {
    %c0_i32 = arith.constant 0 : i32
    %c0_i32_0 = arith.constant 0 : i32
    %c0_i32_1 = arith.constant 0 : i32
    return %c0_i32, %c0_i32_0 : i32, i32
  }
  func.func @transform_2(%arg0: i32) -> (i32, i32) {
    %c0_i32 = arith.constant 0 : i32
    %c0_i32_0 = arith.constant 0 : i32
    %c0_i32_1 = arith.constant 0 : i32
    return %c0_i32, %c0_i32_0 : i32, i32
  }
  func.func @transform_3(%arg0: i32) -> (i32, i32) {
    %c0_i32 = arith.constant 0 : i32
    %c0_i32_0 = arith.constant 0 : i32
    %c0_i32_1 = arith.constant 0 : i32
    return %c0_i32, %c0_i32_0 : i32, i32
  }
  func.func @transform_4(%arg0: i32) -> (i32, i32) {
    %c0_i32 = arith.constant 0 : i32
    %c0_i32_0 = arith.constant 0 : i32
    %c0_i32_1 = arith.constant 0 : i32
    return %c0_i32, %c0_i32_0 : i32, i32
  }
  func.func @transform_5(%arg0: i32) -> (i32, i32) {
    %c0_i32 = arith.constant 0 : i32
    %c0_i32_0 = arith.constant 0 : i32
    %c0_i32_1 = arith.constant 0 : i32
    return %c0_i32, %c0_i32_0 : i32, i32
  }
  func.func @transform_6(%arg0: i32) -> (i32, i32) {
    %c0_i32 = arith.constant 0 : i32
    %c0_i32_0 = arith.constant 0 : i32
    %c0_i32_1 = arith.constant 0 : i32
    return %c0_i32, %c0_i32_0 : i32, i32
  }
  func.func @transform_7(%arg0: i32) -> (i32, i32) {
    %c0_i32 = arith.constant 0 : i32
    %c0_i32_0 = arith.constant 0 : i32
    return %arg0, %c0_i32 : i32, i32
  }
}

</mosaic_0001>

<llo_original>
// kernel: tpu_custom_call.1
$region0: #{tpu_custom_call.1}
  #allocation0 [shape = 'u32[]', space=smem, size = 0x4, offset = 0x4, fixed_abs, tag = 'smem constant byte address 0x4 - core index']
  #allocation1 [shape = 'u32[72,128]{1,0:T(1,128)}', space=vmem, size = 0x9000, scoped, tag = 'internal scratch']
  %s0 = inlined_call_operand.hbm [shape: f32[16,16], index: 0, kind: input, shape index: {}]
  %s1 = inlined_call_operand.hbm [shape: f32[8,16], index: 1, kind: input, shape index: {}]
  %s2 = inlined_call_operand.vmem [shape: f32[1,16], index: 2, kind: input, shape index: {}]
  %s3 = inlined_call_operand.hbm [shape: f32[16,16], index: 3, kind: output, shape index: {}]
  %s4 = sld [smem:[#allocation0]]
  $region53: #{tpu_custom_call.1} parent=0
    _
  %s6 = ssub.s32 1, %s4
  %s7 = scalar_select 0, %s6, %s4
  $region1: #{tpu_custom_call.1} parent=0
    #allocation2 [shape = 'u8[8192]{0}', space=vmem, size = 0x2000, scoped, tag = 'input window, operand 0']
    #allocation3 [shape = 's32[2]{0}', space=sflag, size = 0x8, scoped, tag = 'scoped memory for tpu_custom_call.1']
    #allocation4 [shape = 's32[2]{0}', space=sflag, size = 0x8, scoped, tag = 'scoped memory for tpu_custom_call.1']
    #allocation5 [shape = 'u8[4096]{0}', space=vmem, size = 0x1000, scoped, tag = 'input window, operand 1, single buffered']
    #allocation6 [shape = 's32[1]{0}', space=sflag, size = 0x4, scoped, tag = 'scoped memory for tpu_custom_call.1']
    #allocation7 [shape = 'u8[8192]{0}', space=vmem, size = 0x2000, scoped, tag = 'output window, operand 0']
    %8 = vsyncpa [#allocation3], 0
    %s9 = scalar_lea.sflag [#allocation3], 1
    %10 = vsyncpa %s9, 0
    %11 = vsyncpa [#allocation6], 0
    %12 = vsyncpa [#allocation4], 0
    %s13 = scalar_lea.sflag [#allocation4], 1
    %14 = vsyncpa %s13, 0
    loop: start=0, step=1, limit=4
    $region2: #{tpu_custom_call.1} parent=1 // loop_pre_header
      _
    $region3: #{tpu_custom_call.1} parent=1 // loop_header
      %s16 = sphi 0, %s20
      %p17 = scmp.ge.s32.totalorder %s16, 4
      %s26 = sphi 0, %s28
      %s29 = sphi 0, %s26
      %s30 = sphi 0, %s29
      %s46 = sphi 0, %s30
      %s50 = sphi 0, %s50
      %s52 = sphi 0, %s50
      %s53 = sphi 0, %s52
      %s67 = sphi 0, %s53
      %s71 = sphi 0, %s71
      %s73 = sphi 0, %s71
      %s74 = sphi 0, %s73
      %s88 = sphi 0, %s74
      %s94 = sphi 0, %s96
      %s97 = sphi 0, %s94
      %s98 = sphi 0, %s97
      %s114 = sphi 0, %s98
    $region4: #{tpu_custom_call.1} parent=1 // loop_header_branch
      %19 = sbr.rel (%p17) target = $region8
    $region5: #{tpu_custom_call.1} parent=1 // loop_body
      %s21 = ssub.s32 %s16, 1
      %s22 = ssub.s32 %s16, 2
      %s23 = sadd.s32 %s16, 1
      %s24 = ssub.s32 %s16, %s23
      %p25 = scmp.eq.s32.totalorder %s24, 0
      %s27 = sadd.s32 %s26, 1
      %s28 = scalar_select %p25, %s26, %s27
      %p31 = pneg %p25
      %p32 = scmp.eq.s32.totalorder %s16, 1
      %p33 = por %p31, %p32
      %p34 = scmp.ne.s32.totalorder %s26, %s29
      %p35 = scmp.eq.s32.totalorder %s16, 0
      %p36 = por %p34, %p35
      %p37 = scmp.ne.s32.totalorder %s26, %s29
      %p38 = scmp.eq.s32.totalorder %s21, 1
      %p39 = por %p37, %p38
      %p40 = scmp.ne.s32.totalorder %s29, %s30
      %p41 = scmp.eq.s32.totalorder %s21, 0
      %p42 = por %p40, %p41
      %p43 = scmp.ne.s32.totalorder %s29, %s30
      %p44 = scmp.eq.s32.totalorder %s22, 1
      %p45 = por %p43, %p44
      %p47 = scmp.ne.s32.totalorder %s30, %s46
      %p48 = scmp.eq.s32.totalorder %s22, 0
      %p49 = por %p47, %p48
      %s51 = sadd.s32 %s50, 1
      %p54 = scmp.eq.s32.totalorder %s16, 1
      %p55 = scmp.ne.s32.totalorder %s50, %s52
      %p56 = scmp.eq.s32.totalorder %s16, 0
      %p57 = por %p55, %p56
      %p58 = scmp.ne.s32.totalorder %s50, %s52
      %p59 = scmp.eq.s32.totalorder %s21, 1
      %p60 = por %p58, %p59
      %p61 = scmp.ne.s32.totalorder %s52, %s53
      %p62 = scmp.eq.s32.totalorder %s21, 0
      %p63 = por %p61, %p62
      %p64 = scmp.ne.s32.totalorder %s52, %s53
      %p65 = scmp.eq.s32.totalorder %s22, 1
      %p66 = por %p64, %p65
      %p68 = scmp.ne.s32.totalorder %s53, %s67
      %p69 = scmp.eq.s32.totalorder %s22, 0
      %p70 = por %p68, %p69
      %s72 = sadd.s32 %s71, 1
      %p75 = scmp.eq.s32.totalorder %s16, 1
      %p76 = scmp.ne.s32.totalorder %s71, %s73
      %p77 = scmp.eq.s32.totalorder %s16, 0
      %p78 = por %p76, %p77
      %p79 = scmp.ne.s32.totalorder %s71, %s73
      %p80 = scmp.eq.s32.totalorder %s21, 1
      %p81 = por %p79, %p80
      %p82 = scmp.ne.s32.totalorder %s73, %s74
      %p83 = scmp.eq.s32.totalorder %s21, 0
      %p84 = por %p82, %p83
      %p85 = scmp.ne.s32.totalorder %s73, %s74
      %p86 = scmp.eq.s32.totalorder %s22, 1
      %p87 = por %p85, %p86
      %p89 = scmp.ne.s32.totalorder %s74, %s88
      %p90 = scmp.eq.s32.totalorder %s22, 0
      %p91 = por %p89, %p90
      %s92 = ssub.s32 %s16, %s23
      %p93 = scmp.eq.s32.totalorder %s92, 0
      %s95 = sadd.s32 %s94, 1
      %s96 = scalar_select %p93, %s94, %s95
      %p99 = pneg %p93
      %p100 = scmp.eq.s32.totalorder %s16, 1
      %p101 = por %p99, %p100
      %p102 = scmp.ne.s32.totalorder %s94, %s97
      %p103 = scmp.eq.s32.totalorder %s16, 0
      %p104 = por %p102, %p103
      %p105 = scmp.ne.s32.totalorder %s94, %s97
      %p106 = scmp.eq.s32.totalorder %s21, 1
      %p107 = por %p105, %p106
      %p108 = scmp.ne.s32.totalorder %s97, %s98
      %p109 = scmp.eq.s32.totalorder %s21, 0
      %p110 = por %p108, %p109
      %p111 = scmp.ne.s32.totalorder %s97, %s98
      %p112 = scmp.eq.s32.totalorder %s22, 1
      %p113 = por %p111, %p112
      %p115 = scmp.ne.s32.totalorder %s98, %s114
      %p116 = scmp.eq.s32.totalorder %s22, 0
      %p117 = por %p115, %p116
      %p118 = scmp.le.s32.totalorder 1, %s16
      %p119 = scmp.lt.s32.totalorder %s16, 3
      %p120 = pnand %p118, %p119
      %p121 = pneg %p120
      // Predicated region
      $region9: #{tpu_custom_call.1} parent=5 // pred_check
        _
      $region10: #{tpu_custom_call.1} parent=5 // pred_check_branch
        %123 = sbr.rel (%p120) target = $region12
      $region11: #{tpu_custom_call.1} parent=5 // pred_region
        %s124 = ssub.s32 %s16, 1
        // Predicated region
        $region13: #{tpu_custom_call.1} parent=11 // pred_check
          %p125 = pneg %p63
        $region14: #{tpu_custom_call.1} parent=11 // pred_check_branch
          %127 = sbr.rel (%p125) target = $region16
        $region15: #{tpu_custom_call.1} parent=11 // pred_region
          %129 = vsyncadd [#allocation6], 0
          %s131 = sshll.u32 %s1, 4
          %s132 = int_to_ptr.hbm [resolvable:$true] %s131
          %s133 = sshll.u32 [#allocation5], 4
          %s134 = int_to_ptr.vmem [resolvable:$true] %s133
          %136 = dma.hbm_to_vmem [thread:$0]  %s132, 128, %s134, [#allocation6]
        $region16: #{tpu_custom_call.1} parent=11 // pred_fallthru
          _
        // Predicated region
        $region17: #{tpu_custom_call.1} parent=11 // pred_check
          %p137 = pneg %p84
        $region18: #{tpu_custom_call.1} parent=11 // pred_check_branch
          %139 = sbr.rel (%p137) target = $region20
        $region19: #{tpu_custom_call.1} parent=11 // pred_region
          _
        $region20: #{tpu_custom_call.1} parent=11 // pred_fallthru
          _
      $region12: #{tpu_custom_call.1} parent=5 // pred_fallthru
        _
      %p140 = scmp.lt.s32.totalorder %s16, 2
      // Predicated region
      $region21: #{tpu_custom_call.1} parent=5 // pred_check
        %p141 = pneg %p140
      $region22: #{tpu_custom_call.1} parent=5 // pred_check_branch
        %143 = sbr.rel (%p141) target = $region24
      $region23: #{tpu_custom_call.1} parent=5 // pred_region
        // Predicated region
        $region25: #{tpu_custom_call.1} parent=23 // pred_check
          %p144 = pneg %p36
        $region26: #{tpu_custom_call.1} parent=23 // pred_check_branch
          %146 = sbr.rel (%p144) target = $region28
        $region27: #{tpu_custom_call.1} parent=23 // pred_region
          %s147 = sand.u32 %s26, 1
          %s148 = scalar_lea.sflag [#allocation3], %s147
          %s149 = sand.u32 %s26, 1
          %s150 = smul.addr %s149, 8
          %s151 = scalar_lea.vmem [#allocation2], %s150
          %153 = vsyncadd %s148, 0
          %s154 = smul.addr %s16, 8
          %s155 = scalar_lea.hbm %s0, %s154
          %s157 = sshll.u32 %s155, 4
          %s158 = int_to_ptr.hbm [resolvable:$true] %s157
          %s159 = sshll.u32 %s151, 4
          %s160 = int_to_ptr.vmem [resolvable:$true] %s159
          %162 = dma.hbm_to_vmem [thread:$0]  %s158, 128, %s160, %s148
        $region28: #{tpu_custom_call.1} parent=23 // pred_fallthru
          _
      $region24: #{tpu_custom_call.1} parent=5 // pred_fallthru
        _
      %p163 = scmp.le.s32.totalorder 1, %s16
      %p164 = scmp.lt.s32.totalorder %s16, 3
      %p165 = pnand %p163, %p164
      %p166 = pneg %p165
      // Predicated region
      $region29: #{tpu_custom_call.1} parent=5 // pred_check
        _
      $region30: #{tpu_custom_call.1} parent=5 // pred_check_branch
        %168 = sbr.rel (%p165) target = $region32
      $region31: #{tpu_custom_call.1} parent=5 // pred_region
        %s169 = ssub.s32 %s16, 1
        %s170 = sand.u32 %s29, 1
        %s171 = scalar_lea.sflag [#allocation3], %s170
        %s172 = sand.u32 %s29, 1
        %s173 = smul.addr %s172, 8
        %s174 = scalar_lea.vmem [#allocation2], %s173
        // Predicated region
        $region33: #{tpu_custom_call.1} parent=31 // pred_check
          %p175 = pneg %p42
        $region34: #{tpu_custom_call.1} parent=31 // pred_check_branch
          %177 = sbr.rel (%p175) target = $region36
        $region35: #{tpu_custom_call.1} parent=31 // pred_region
          %179 = dma.done %s171, 128
        $region36: #{tpu_custom_call.1} parent=31 // pred_fallthru
          _
        // Predicated region
        $region37: #{tpu_custom_call.1} parent=31 // pred_check
          %p180 = pneg %p63
        $region38: #{tpu_custom_call.1} parent=31 // pred_check_branch
          %182 = sbr.rel (%p180) target = $region40
        $region39: #{tpu_custom_call.1} parent=31 // pred_region
          %184 = dma.done [#allocation6], 128
        $region40: #{tpu_custom_call.1} parent=31 // pred_fallthru
          _
        %s185 = sand.u32 %s29, 1
        %s186 = scalar_lea.sflag [#allocation3], %s185
        %s187 = sand.u32 %s29, 1
        %s188 = smul.addr %s187, 8
        %s189 = scalar_lea.vmem [#allocation2], %s188
        %p190 = pneg %p42
        %p191 = pneg %p39
        %p192 = pneg %p63
        %p193 = pneg %p60
        %p194 = pneg %p84
        %p195 = pneg %p81
        %p196 = pneg %p110
        %p197 = pneg %p107
        %s198 = sand.u32 %s97, 1
        %s199 = scalar_lea.sflag [#allocation4], %s198
        %s200 = sand.u32 %s97, 1
        %s201 = smul.addr %s200, 8
        %s202 = scalar_lea.vmem [#allocation7], %s201
        %v203 = vld [vmem:[%s174] sm:$0xff]
        %v204 = vld [vmem:[#allocation5] sm:$0xff]
        %v205 = vadd.f32 %v203, %v204
        %v206 = vld [vmem:[%s2] sm:$0x1]
        %v208 = vperm.slane %v206, 0
        %v210 = vadd.f32 %v205, %v208
        %vm211 = vcmask 130048
        %212 = vst.msk [vmem:[%s202] sm:$0xff] %vm211, %v210
        %s213 = sand.u32 %s97, 1
        %s214 = scalar_lea.sflag [#allocation4], %s213
        %s215 = sand.u32 %s97, 1
        %s216 = smul.addr %s215, 8
        %s217 = scalar_lea.vmem [#allocation7], %s216
        // Predicated region
        $region41: #{tpu_custom_call.1} parent=31 // pred_check
          %p218 = pneg %p107
        $region42: #{tpu_custom_call.1} parent=31 // pred_check_branch
          %220 = sbr.rel (%p218) target = $region44
        $region43: #{tpu_custom_call.1} parent=31 // pred_region
          %222 = vsyncadd %s214, 0
          %s223 = smul.addr %s21, 8
          %s224 = scalar_lea.hbm %s3, %s223
          %s226 = sshll.u32 %s217, 4
          %s227 = int_to_ptr.vmem [resolvable:$true] %s226
          %s228 = sshll.u32 %s224, 4
          %s229 = int_to_ptr.hbm [resolvable:$true] %s228
          %231 = dma.vmem_to_hbm [thread:$0]  %s227, 128, %s229, %s214
        $region44: #{tpu_custom_call.1} parent=31 // pred_fallthru
          _
      $region32: #{tpu_custom_call.1} parent=5 // pred_fallthru
        _
      %p232 = scmp.le.s32.totalorder 2, %s16
      // Predicated region
      $region45: #{tpu_custom_call.1} parent=5 // pred_check
        %p233 = pneg %p232
      $region46: #{tpu_custom_call.1} parent=5 // pred_check_branch
        %235 = sbr.rel (%p233) target = $region48
      $region47: #{tpu_custom_call.1} parent=5 // pred_region
        %s236 = ssub.s32 %s16, 2
        // Predicated region
        $region49: #{tpu_custom_call.1} parent=47 // pred_check
          %p237 = pneg %p113
        $region50: #{tpu_custom_call.1} parent=47 // pred_check_branch
          %239 = sbr.rel (%p237) target = $region52
        $region51: #{tpu_custom_call.1} parent=47 // pred_region
          %s240 = sand.u32 %s98, 1
          %s241 = scalar_lea.sflag [#allocation4], %s240
          %s242 = sand.u32 %s98, 1
          %s243 = smul.addr %s242, 8
          %s244 = scalar_lea.vmem [#allocation7], %s243
          %246 = dma.done %s241, 128
        $region52: #{tpu_custom_call.1} parent=47 // pred_fallthru
          _
      $region48: #{tpu_custom_call.1} parent=5 // pred_fallthru
        _
    $region6: #{tpu_custom_call.1} parent=1 // loop_footer
      %s20 = sadd.s32 1, %s16
    $region7: #{tpu_custom_call.1} parent=1 // loop_footer_branch
      %15 = sbr.rel target = $region3
    $region8: #{tpu_custom_call.1} parent=1 // loop_exit
      _
    %247 = vsyncpa [#allocation3], 1
    %s248 = scalar_lea.sflag [#allocation3], 1
    %249 = vsyncpa %s248, 1
    %250 = vsyncpa [#allocation6], 1
    %251 = vsyncpa [#allocation4], 1
    %s252 = scalar_lea.sflag [#allocation4], 1
    %253 = vsyncpa %s252, 1

// kernel: omics_forward.5
$region0: #{omics_forward.5}
  #allocation0 [shape = 'u32[]', space=smem, size = 0x4, offset = 0x4, fixed_abs, tag = 'smem constant byte address 0x4 - core index']
  #allocation1 [shape = 'u32[72,128]{1,0:T(1,128)}', space=vmem, size = 0x9000, scoped, tag = 'internal scratch']
  %s0 = inlined_call_operand.vmem [shape: f32[8,16], index: 0, kind: input, shape index: {}]
  %s1 = inlined_call_operand.vmem [shape: bf16[16,8], index: 1, kind: input, shape index: {}]
  %s2 = inlined_call_operand.vmem [shape: f32[1,8], index: 2, kind: input, shape index: {}]
  %s3 = inlined_call_operand.vmem [shape: f32[8,8], index: 3, kind: output, shape index: {}]
  %s4 = sld [smem:[#allocation0]]
  $region30: #{omics_forward.5} parent=0
    _
  %s6 = ssub.s32 1, %s4
  %s7 = scalar_select 0, %s6, %s4
  // Predicated region
  $region2: #{omics_forward.5} parent=0 // pred_check
    _
  $region3: #{omics_forward.5} parent=0 // pred_check_branch
    %9 = sbr.rel (0) target = $region5
  $region4: #{omics_forward.5} parent=0 // pred_region
    _
  $region5: #{omics_forward.5} parent=0 // pred_fallthru
    _
  // Predicated region
  $region6: #{omics_forward.5} parent=0 // pred_check
    _
  $region7: #{omics_forward.5} parent=0 // pred_check_branch
    %11 = sbr.rel (0) target = $region9
  $region8: #{omics_forward.5} parent=0 // pred_region
    _
  $region9: #{omics_forward.5} parent=0 // pred_fallthru
    _
  // Predicated region
  $region10: #{omics_forward.5} parent=0 // pred_check
    _
  $region11: #{omics_forward.5} parent=0 // pred_check_branch
    %13 = sbr.rel (0) target = $region13
  $region12: #{omics_forward.5} parent=0 // pred_region
    _
  $region13: #{omics_forward.5} parent=0 // pred_fallthru
    _
  %p15 = scmp.eq.s32.totalorder 0, 0
  // Predicated region
  $region14: #{omics_forward.5} parent=0 // pred_check
    %p16 = pneg %p15
  $region15: #{omics_forward.5} parent=0 // pred_check_branch
    %18 = sbr.rel (%p16) target = $region17
  $region16: #{omics_forward.5} parent=0 // pred_region
    %vm19 = vcmask 64512
    %20 = vst.msk [vmem:[%s3] sm:$0xff] %vm19, 0.0
  $region17: #{omics_forward.5} parent=0 // pred_fallthru
    _
  %v21 = vld [vmem:[%s3] sm:$0xff]
  %v22 = vld [vmem:[%s0] sm:$0xff]
  %v23 = vld [vmem:[%s1] sm:$0xf]
  %v24 = vld [vmem:[%s1 + $0x4] sm:$0xf]
  %v25 = vpack.c.bf16 %v22, %v22
  %v28 = vunpack.c.l.b16 %v23
  %v29 = vunpack.c.l.b16 %v24
  %v30 = vpack.c.b16 %v29, %v28
  %vm32 = vcmask 130048
  %v34 = vsel %vm32, %v25, 0
  %36 = vmatpush.bf16.msra.mxu0 0
  %37 = vmatpush.bf16.msra.mxu0 0
  %38 = vmatpush.bf16.msra.mxu0 0
  %39 = vmatpush.bf16.msra.mxu0 0
  %40 = vmatpush.bf16.msra.mxu0 0
  %41 = vmatpush.bf16.msra.mxu0 0
  %42 = vmatpush.bf16.msra.mxu0 0
  %43 = vmatpush.bf16.msra.mxu0 %v30
  %44 = vmatmul.bf16.gmra.mxu0 %v34
  %v45 = vpop.f32.mrf.mxu0
  %v46 = vadd.f32 0.0, %v45
  %v47 = vpop.f32.mrf.mxu0
  %48 = vdwg.mxu0
  %v49 = vadd.f32 %v21, %v46
  %vm50 = vcmask 64512
  %51 = vst.msk [vmem:[%s3] sm:$0xff] %vm50, %v49
  // Predicated region
  $region18: #{omics_forward.5} parent=0 // pred_check
    %p52 = pneg %p15
  $region19: #{omics_forward.5} parent=0 // pred_check_branch
    %54 = sbr.rel (%p52) target = $region21
  $region20: #{omics_forward.5} parent=0 // pred_region
    %v55 = vld [vmem:[%s3] sm:$0xff]
    %v56 = vld [vmem:[%s2] sm:$0x1]
    %v58 = vperm.slane %v56, 0
    %v60 = vadd.f32 %v55, %v58
    %61 = vst.msk [vmem:[%s3] sm:$0xff] %vm50, %v60
  $region21: #{omics_forward.5} parent=0 // pred_fallthru
    _
  // Predicated region
  $region22: #{omics_forward.5} parent=0 // pred_check
    _
  $region23: #{omics_forward.5} parent=0 // pred_check_branch
    %63 = sbr.rel (0) target = $region25
  $region24: #{omics_forward.5} parent=0 // pred_region
    _
  $region25: #{omics_forward.5} parent=0 // pred_fallthru
    _
  // Predicated region
  $region26: #{omics_forward.5} parent=0 // pred_check
    _
  $region27: #{omics_forward.5} parent=0 // pred_check_branch
    %65 = sbr.rel (0) target = $region29
  $region28: #{omics_forward.5} parent=0 // pred_region
    _
  $region29: #{omics_forward.5} parent=0 // pred_fallthru
    _

// kernel: omics_forward.8
$region0: #{omics_forward.8}
  #allocation0 [shape = 'u32[]', space=smem, size = 0x4, offset = 0x4, fixed_abs, tag = 'smem constant byte address 0x4 - core index']
  #allocation1 [shape = 'u32[72,128]{1,0:T(1,128)}', space=vmem, size = 0x9000, scoped, tag = 'internal scratch']
  %s0 = inlined_call_operand.vmem [shape: f32[2,32], index: 0, kind: input, shape index: {}]
  %s1 = inlined_call_operand.vmem [shape: bf16[32,128], index: 1, kind: input, shape index: {}]
  %s2 = inlined_call_operand.vmem [shape: f32[1,128], index: 2, kind: input, shape index: {}]
  %s3 = inlined_call_operand.vmem [shape: f32[2,128], index: 3, kind: output, shape index: {}]
  %s4 = sld [smem:[#allocation0]]
  $region30: #{omics_forward.8} parent=0
    _
  %s6 = ssub.s32 1, %s4
  %s7 = scalar_select 0, %s6, %s4
  // Predicated region
  $region2: #{omics_forward.8} parent=0 // pred_check
    _
  $region3: #{omics_forward.8} parent=0 // pred_check_branch
    %9 = sbr.rel (0) target = $region5
  $region4: #{omics_forward.8} parent=0 // pred_region
    _
  $region5: #{omics_forward.8} parent=0 // pred_fallthru
    _
  // Predicated region
  $region6: #{omics_forward.8} parent=0 // pred_check
    _
  $region7: #{omics_forward.8} parent=0 // pred_check_branch
    %11 = sbr.rel (0) target = $region9
  $region8: #{omics_forward.8} parent=0 // pred_region
    _
  $region9: #{omics_forward.8} parent=0 // pred_fallthru
    _
  // Predicated region
  $region10: #{omics_forward.8} parent=0 // pred_check
    _
  $region11: #{omics_forward.8} parent=0 // pred_check_branch
    %13 = sbr.rel (0) target = $region13
  $region12: #{omics_forward.8} parent=0 // pred_region
    _
  $region13: #{omics_forward.8} parent=0 // pred_fallthru
    _
  %p15 = scmp.eq.s32.totalorder 0, 0
  // Predicated region
  $region14: #{omics_forward.8} parent=0 // pred_check
    %p16 = pneg %p15
  $region15: #{omics_forward.8} parent=0 // pred_check_branch
    %18 = sbr.rel (%p16) target = $region17
  $region16: #{omics_forward.8} parent=0 // pred_region
    %19 = vst [vmem:[%s3] sm:$0x3] 0.0
  $region17: #{omics_forward.8} parent=0 // pred_fallthru
    _
  %v20 = vld [vmem:[%s3] sm:$0x3]
  %v21 = vld [vmem:[%s0] sm:$0x3]
  %v22 = vld [vmem:[%s1] sm:$0xf]
  %v23 = vld [vmem:[%s1 + $0x4] sm:$0xf]
  %v24 = vld [vmem:[%s1 + $0x8] sm:$0xf]
  %v25 = vld [vmem:[%s1 + $0xc] sm:$0xf]
  %v26 = vpack.c.bf16 %v21, %v21
  %v31 = vunpack.c.l.b16 %v22
  %v32 = vunpack.c.l.b16 %v23
  %v33 = vunpack.c.l.b16 %v24
  %v34 = vunpack.c.l.b16 %v25
  %v35 = vpack.c.b16 %v32, %v31
  %v36 = vpack.c.b16 %v34, %v33
  %vm39 = vcmask 261120
  %v41 = vsel %vm39, %v26, 0
  %43 = vmatpush.bf16.msra.mxu0 0
  %44 = vmatpush.bf16.msra.mxu0 0
  %45 = vmatpush.bf16.msra.mxu0 0
  %46 = vmatpush.bf16.msra.mxu0 0
  %47 = vmatpush.bf16.msra.mxu0 0
  %48 = vmatpush.bf16.msra.mxu0 0
  %49 = vmatpush.bf16.msra.mxu0 %v36
  %50 = vmatpush.bf16.msra.mxu0 %v35
  %51 = vmatmul.bf16.gmra.mxu0 %v41
  %v52 = vpop.f32.mrf.mxu0
  %v53 = vadd.f32 0.0, %v52
  %v54 = vpop.f32.mrf.mxu0
  %55 = vdwg.mxu0
  %v56 = vadd.f32 %v20, %v53
  %57 = vst [vmem:[%s3] sm:$0x3] %v56
  // Predicated region
  $region18: #{omics_forward.8} parent=0 // pred_check
    %p58 = pneg %p15
  $region19: #{omics_forward.8} parent=0 // pred_check_branch
    %60 = sbr.rel (%p58) target = $region21
  $region20: #{omics_forward.8} parent=0 // pred_region
    %v61 = vld [vmem:[%s3] sm:$0x3]
    %v62 = vld [vmem:[%s2] sm:$0x1]
    %v64 = vperm.slane %v62, 0
    %v66 = vadd.f32 %v61, %v64
    %v67 = vmax.f32 %v66, 0.0
    %68 = vst [vmem:[%s3] sm:$0x3] %v67
  $region21: #{omics_forward.8} parent=0 // pred_fallthru
    _
  // Predicated region
  $region22: #{omics_forward.8} parent=0 // pred_check
    _
  $region23: #{omics_forward.8} parent=0 // pred_check_branch
    %70 = sbr.rel (0) target = $region25
  $region24: #{omics_forward.8} parent=0 // pred_region
    _
  $region25: #{omics_forward.8} parent=0 // pred_fallthru
    _
  // Predicated region
  $region26: #{omics_forward.8} parent=0 // pred_check
    _
  $region27: #{omics_forward.8} parent=0 // pred_check_branch
    %72 = sbr.rel (0) target = $region29
  $region28: #{omics_forward.8} parent=0 // pred_region
    _
  $region29: #{omics_forward.8} parent=0 // pred_fallthru
    _

// kernel: omics_forward.7
$region0: #{omics_forward.7}
  #allocation0 [shape = 'u32[]', space=smem, size = 0x4, offset = 0x4, fixed_abs, tag = 'smem constant byte address 0x4 - core index']
  #allocation1 [shape = 'u32[72,128]{1,0:T(1,128)}', space=vmem, size = 0x9000, scoped, tag = 'internal scratch']
  %s0 = inlined_call_operand.vmem [shape: f32[2,4,8], index: 0, kind: input, shape index: {}, may-alias: {0,22}]
  %s1 = inlined_call_operand.vmem [shape: f32[2,8,8], index: 1, kind: input, shape index: {}, may-alias: {1,23}]
  %s2 = inlined_call_operand.vmem [shape: bf16[4,16], index: 2, kind: input, shape index: {}]
  %s3 = inlined_call_operand.vmem [shape: bf16[4,32], index: 3, kind: input, shape index: {}]
  %s4 = inlined_call_operand.vmem [shape: bf16[4,16], index: 4, kind: input, shape index: {}]
  %s5 = inlined_call_operand.vmem [shape: f32[1,16], index: 5, kind: input, shape index: {}]
  %s6 = inlined_call_operand.vmem [shape: bf16[16,4], index: 6, kind: input, shape index: {}]
  %s7 = inlined_call_operand.vmem [shape: f32[1,4], index: 7, kind: input, shape index: {}]
  %s8 = inlined_call_operand.vmem [shape: bf16[4,32], index: 8, kind: input, shape index: {}]
  %s9 = inlined_call_operand.vmem [shape: f32[1,32], index: 9, kind: input, shape index: {}]
  %s10 = inlined_call_operand.vmem [shape: bf16[16,4], index: 10, kind: input, shape index: {}]
  %s11 = inlined_call_operand.vmem [shape: f32[1,4], index: 11, kind: input, shape index: {}]
  %s12 = inlined_call_operand.vmem [shape: bf16[8,16], index: 12, kind: input, shape index: {}]
  %s13 = inlined_call_operand.vmem [shape: bf16[8,32], index: 13, kind: input, shape index: {}]
  %s14 = inlined_call_operand.vmem [shape: bf16[8,16], index: 14, kind: input, shape index: {}]
  %s15 = inlined_call_operand.vmem [shape: f32[1,16], index: 15, kind: input, shape index: {}]
  %s16 = inlined_call_operand.vmem [shape: bf16[16,8], index: 16, kind: input, shape index: {}]
  %s17 = inlined_call_operand.vmem [shape: f32[1,8], index: 17, kind: input, shape index: {}]
  %s18 = inlined_call_operand.vmem [shape: bf16[8,64], index: 18, kind: input, shape index: {}]
  %s19 = inlined_call_operand.vmem [shape: f32[1,64], index: 19, kind: input, shape index: {}]
  %s20 = inlined_call_operand.vmem [shape: bf16[32,8], index: 20, kind: input, shape index: {}]
  %s21 = inlined_call_operand.vmem [shape: f32[1,8], index: 21, kind: input, shape index: {}]
  %s22 = inlined_call_operand.vmem [shape: f32[2,4,8], index: 22, kind: output, shape index: {0}, may-alias: {0,22}]
  %s23 = inlined_call_operand.vmem [shape: f32[2,8,8], index: 23, kind: output, shape index: {1}, may-alias: {1,23}]
  %24 = xla_tuple %s22, %s23
  %s25 = sld [smem:[#allocation0]]
  $region129: #{omics_forward.7} parent=0
    _
  %s27 = ssub.s32 1, %s25
  %s28 = scalar_select 0, %s27, %s25
  loop: start=0, step=1, limit=4
  $region2: #{omics_forward.7} parent=0 // loop_pre_header
    _
  $region3: #{omics_forward.7} parent=0 // loop_header
    %s30 = sphi 0, %s34
    %p31 = scmp.ge.s32.totalorder %s30, 4
    %s40 = sphi 0, %s42
    %s43 = sphi 0, %s40
    %s44 = sphi 0, %s43
    %s60 = sphi 0, %s44
    %s66 = sphi 0, %s68
    %s69 = sphi 0, %s66
    %s70 = sphi 0, %s69
    %s86 = sphi 0, %s70
    %s90 = sphi 0, %s90
    %s92 = sphi 0, %s90
    %s93 = sphi 0, %s92
    %s107 = sphi 0, %s93
    %s111 = sphi 0, %s111
    %s113 = sphi 0, %s111
    %s114 = sphi 0, %s113
    %s128 = sphi 0, %s114
    %s132 = sphi 0, %s132
    %s134 = sphi 0, %s132
    %s135 = sphi 0, %s134
    %s149 = sphi 0, %s135
    %s153 = sphi 0, %s153
    %s155 = sphi 0, %s153
    %s156 = sphi 0, %s155
    %s170 = sphi 0, %s156
    %s174 = sphi 0, %s174
    %s176 = sphi 0, %s174
    %s177 = sphi 0, %s176
    %s191 = sphi 0, %s177
    %s195 = sphi 0, %s195
    %s197 = sphi 0, %s195
    %s198 = sphi 0, %s197
    %s212 = sphi 0, %s198
    %s216 = sphi 0, %s216
    %s218 = sphi 0, %s216
    %s219 = sphi 0, %s218
    %s233 = sphi 0, %s219
    %s237 = sphi 0, %s237
    %s239 = sphi 0, %s237
    %s240 = sphi 0, %s239
    %s254 = sphi 0, %s240
    %s258 = sphi 0, %s258
    %s260 = sphi 0, %s258
    %s261 = sphi 0, %s260
    %s275 = sphi 0, %s261
    %s279 = sphi 0, %s279
    %s281 = sphi 0, %s279
    %s282 = sphi 0, %s281
    %s296 = sphi 0, %s282
    %s300 = sphi 0, %s300
    %s302 = sphi 0, %s300
    %s303 = sphi 0, %s302
    %s317 = sphi 0, %s303
    %s321 = sphi 0, %s321
    %s323 = sphi 0, %s321
    %s324 = sphi 0, %s323
    %s338 = sphi 0, %s324
    %s342 = sphi 0, %s342
    %s344 = sphi 0, %s342
    %s345 = sphi 0, %s344
    %s359 = sphi 0, %s345
    %s363 = sphi 0, %s363
    %s365 = sphi 0, %s363
    %s366 = sphi 0, %s365
    %s380 = sphi 0, %s366
    %s384 = sphi 0, %s384
    %s386 = sphi 0, %s384
    %s387 = sphi 0, %s386
    %s401 = sphi 0, %s387
    %s405 = sphi 0, %s405
    %s407 = sphi 0, %s405
    %s408 = sphi 0, %s407
    %s422 = sphi 0, %s408
    %s426 = sphi 0, %s426
    %s428 = sphi 0, %s426
    %s429 = sphi 0, %s428
    %s443 = sphi 0, %s429
    %s447 = sphi 0, %s447
    %s449 = sphi 0, %s447
    %s450 = sphi 0, %s449
    %s464 = sphi 0, %s450
    %s468 = sphi 0, %s468
    %s470 = sphi 0, %s468
    %s471 = sphi 0, %s470
    %s485 = sphi 0, %s471
    %s489 = sphi 0, %s489
    %s491 = sphi 0, %s489
    %s492 = sphi 0, %s491
    %s506 = sphi 0, %s492
    %s512 = sphi 0, %s514
    %s515 = sphi 0, %s512
    %s516 = sphi 0, %s515
    %s532 = sphi 0, %s516
    %s538 = sphi 0, %s540
    %s541 = sphi 0, %s538
    %s542 = sphi 0, %s541
    %s558 = sphi 0, %s542
  $region4: #{omics_forward.7} parent=0 // loop_header_branch
    %33 = sbr.rel (%p31) target = $region8
  $region5: #{omics_forward.7} parent=0 // loop_body
    %s35 = ssub.s32 %s30, 1
    %s36 = ssub.s32 %s30, 2
    %s37 = sadd.s32 %s30, 1
    %s38 = ssub.s32 %s30, %s37
    %p39 = scmp.eq.s32.totalorder %s38, 0
    %s41 = sadd.s32 %s40, 1
    %s42 = scalar_select %p39, %s40, %s41
    %p45 = pneg %p39
    %p46 = scmp.eq.s32.totalorder %s30, 1
    %p47 = por %p45, %p46
    %p48 = scmp.ne.s32.totalorder %s40, %s43
    %p49 = scmp.eq.s32.totalorder %s30, 0
    %p50 = por %p48, %p49
    %p51 = scmp.ne.s32.totalorder %s40, %s43
    %p52 = scmp.eq.s32.totalorder %s35, 1
    %p53 = por %p51, %p52
    %p54 = scmp.ne.s32.totalorder %s43, %s44
    %p55 = scmp.eq.s32.totalorder %s35, 0
    %p56 = por %p54, %p55
    %p57 = scmp.ne.s32.totalorder %s43, %s44
    %p58 = scmp.eq.s32.totalorder %s36, 1
    %p59 = por %p57, %p58
    %p61 = scmp.ne.s32.totalorder %s44, %s60
    %p62 = scmp.eq.s32.totalorder %s36, 0
    %p63 = por %p61, %p62
    %s64 = ssub.s32 %s30, %s37
    %p65 = scmp.eq.s32.totalorder %s64, 0
    %s67 = sadd.s32 %s66, 1
    %s68 = scalar_select %p65, %s66, %s67
    %p71 = pneg %p65
    %p72 = scmp.eq.s32.totalorder %s30, 1
    %p73 = por %p71, %p72
    %p74 = scmp.ne.s32.totalorder %s66, %s69
    %p75 = scmp.eq.s32.totalorder %s30, 0
    %p76 = por %p74, %p75
    %p77 = scmp.ne.s32.totalorder %s66, %s69
    %p78 = scmp.eq.s32.totalorder %s35, 1
    %p79 = por %p77, %p78
    %p80 = scmp.ne.s32.totalorder %s69, %s70
    %p81 = scmp.eq.s32.totalorder %s35, 0
    %p82 = por %p80, %p81
    %p83 = scmp.ne.s32.totalorder %s69, %s70
    %p84 = scmp.eq.s32.totalorder %s36, 1
    %p85 = por %p83, %p84
    %p87 = scmp.ne.s32.totalorder %s70, %s86
    %p88 = scmp.eq.s32.totalorder %s36, 0
    %p89 = por %p87, %p88
    %s91 = sadd.s32 %s90, 1
    %p94 = scmp.eq.s32.totalorder %s30, 1
    %p95 = scmp.ne.s32.totalorder %s90, %s92
    %p96 = scmp.eq.s32.totalorder %s30, 0
    %p97 = por %p95, %p96
    %p98 = scmp.ne.s32.totalorder %s90, %s92
    %p99 = scmp.eq.s32.totalorder %s35, 1
    %p100 = por %p98, %p99
    %p101 = scmp.ne.s32.totalorder %s92, %s93
    %p102 = scmp.eq.s32.totalorder %s35, 0
    %p103 = por %p101, %p102
    %p104 = scmp.ne.s32.totalorder %s92, %s93
    %p105 = scmp.eq.s32.totalorder %s36, 1
    %p106 = por %p104, %p105
    %p108 = scmp.ne.s32.totalorder %s93, %s107
    %p109 = scmp.eq.s32.totalorder %s36, 0
    %p110 = por %p108, %p109
    %s112 = sadd.s32 %s111, 1
    %p115 = scmp.eq.s32.totalorder %s30, 1
    %p116 = scmp.ne.s32.totalorder %s111, %s113
    %p117 = scmp.eq.s32.totalorder %s30, 0
    %p118 = por %p116, %p117
    %p119 = scmp.ne.s32.totalorder %s111, %s113
    %p120 = scmp.eq.s32.totalorder %s35, 1
    %p121 = por %p119, %p120
    %p122 = scmp.ne.s32.totalorder %s113, %s114
    %p123 = scmp.eq.s32.totalorder %s35, 0
    %p124 = por %p122, %p123
    %p125 = scmp.ne.s32.totalorder %s113, %s114
    %p126 = scmp.eq.s32.totalorder %s36, 1
    %p127 = por %p125, %p126
    %p129 = scmp.ne.s32.totalorder %s114, %s128
    %p130 = scmp.eq.s32.totalorder %s36, 0
    %p131 = por %p129, %p130
    %s133 = sadd.s32 %s132, 1
    %p136 = scmp.eq.s32.totalorder %s30, 1
    %p137 = scmp.ne.s32.totalorder %s132, %s134
    %p138 = scmp.eq.s32.totalorder %s30, 0
    %p139 = por %p137, %p138
    %p140 = scmp.ne.s32.totalorder %s132, %s134
    %p141 = scmp.eq.s32.totalorder %s35, 1
    %p142 = por %p140, %p141
    %p143 = scmp.ne.s32.totalorder %s134, %s135
    %p144 = scmp.eq.s32.totalorder %s35, 0
    %p145 = por %p143, %p144
    %p146 = scmp.ne.s32.totalorder %s134, %s135
    %p147 = scmp.eq.s32.totalorder %s36, 1
    %p148 = por %p146, %p147
    %p150 = scmp.ne.s32.totalorder %s135, %s149
    %p151 = scmp.eq.s32.totalorder %s36, 0
    %p152 = por %p150, %p151
    %s154 = sadd.s32 %s153, 1
    %p157 = scmp.eq.s32.totalorder %s30, 1
    %p158 = scmp.ne.s32.totalorder %s153, %s155
    %p159 = scmp.eq.s32.totalorder %s30, 0
    %p160 = por %p158, %p159
    %p161 = scmp.ne.s32.totalorder %s153, %s155
    %p162 = scmp.eq.s32.totalorder %s35, 1
    %p163 = por %p161, %p162
    %p164 = scmp.ne.s32.totalorder %s155, %s156
    %p165 = scmp.eq.s32.totalorder %s35, 0
    %p166 = por %p164, %p165
    %p167 = scmp.ne.s32.totalorder %s155, %s156
    %p168 = scmp.eq.s32.totalorder %s36, 1
    %p169 = por %p167, %p168
    %p171 = scmp.ne.s32.totalorder %s156, %s170
    %p172 = scmp.eq.s32.totalorder %s36, 0
    %p173 = por %p171, %p172
    %s175 = sadd.s32 %s174, 1
    %p178 = scmp.eq.s32.totalorder %s30, 1
    %p179 = scmp.ne.s32.totalorder %s174, %s176
    %p180 = scmp.eq.s32.totalorder %s30, 0
    %p181 = por %p179, %p180
    %p182 = scmp.ne.s32.totalorder %s174, %s176
    %p183 = scmp.eq.s32.totalorder %s35, 1
    %p184 = por %p182, %p183
    %p185 = scmp.ne.s32.totalorder %s176, %s177
    %p186 = scmp.eq.s32.totalorder %s35, 0
    %p187 = por %p185, %p186
    %p188 = scmp.ne.s32.totalorder %s176, %s177
    %p189 = scmp.eq.s32.totalorder %s36, 1
    %p190 = por %p188, %p189
    %p192 = scmp.ne.s32.totalorder %s177, %s191
    %p193 = scmp.eq.s32.totalorder %s36, 0
    %p194 = por %p192, %p193
    %s196 = sadd.s32 %s195, 1
    %p199 = scmp.eq.s32.totalorder %s30, 1
    %p200 = scmp.ne.s32.totalorder %s195, %s197
    %p201 = scmp.eq.s32.totalorder %s30, 0
    %p202 = por %p200, %p201
    %p203 = scmp.ne.s32.totalorder %s195, %s197
    %p204 = scmp.eq.s32.totalorder %s35, 1
    %p205 = por %p203, %p204
    %p206 = scmp.ne.s32.totalorder %s197, %s198
    %p207 = scmp.eq.s32.totalorder %s35, 0
    %p208 = por %p206, %p207
    %p209 = scmp.ne.s32.totalorder %s197, %s198
    %p210 = scmp.eq.s32.totalorder %s36, 1
    %p211 = por %p209, %p210
    %p213 = scmp.ne.s32.totalorder %s198, %s212
    %p214 = scmp.eq.s32.totalorder %s36, 0
    %p215 = por %p213, %p214
    %s217 = sadd.s32 %s216, 1
    %p220 = scmp.eq.s32.totalorder %s30, 1
    %p221 = scmp.ne.s32.totalorder %s216, %s218
    %p222 = scmp.eq.s32.totalorder %s30, 0
    %p223 = por %p221, %p222
    %p224 = scmp.ne.s32.totalorder %s216, %s218
    %p225 = scmp.eq.s32.totalorder %s35, 1
    %p226 = por %p224, %p225
    %p227 = scmp.ne.s32.totalorder %s218, %s219
    %p228 = scmp.eq.s32.totalorder %s35, 0
    %p229 = por %p227, %p228
    %p230 = scmp.ne.s32.totalorder %s218, %s219
    %p231 = scmp.eq.s32.totalorder %s36, 1
    %p232 = por %p230, %p231
    %p234 = scmp.ne.s32.totalorder %s219, %s233
    %p235 = scmp.eq.s32.totalorder %s36, 0
    %p236 = por %p234, %p235
    %s238 = sadd.s32 %s237, 1
    %p241 = scmp.eq.s32.totalorder %s30, 1
    %p242 = scmp.ne.s32.totalorder %s237, %s239
    %p243 = scmp.eq.s32.totalorder %s30, 0
    %p244 = por %p242, %p243
    %p245 = scmp.ne.s32.totalorder %s237, %s239
    %p246 = scmp.eq.s32.totalorder %s35, 1
    %p247 = por %p245, %p246
    %p248 = scmp.ne.s32.totalorder %s239, %s240
    %p249 = scmp.eq.s32.totalorder %s35, 0
    %p250 = por %p248, %p249
    %p251 = scmp.ne.s32.totalorder %s239, %s240
    %p252 = scmp.eq.s32.totalorder %s36, 1
    %p253 = por %p251, %p252
    %p255 = scmp.ne.s32.totalorder %s240, %s254
    %p256 = scmp.eq.s32.totalorder %s36, 0
    %p257 = por %p255, %p256
    %s259 = sadd.s32 %s258, 1
    %p262 = scmp.eq.s32.totalorder %s30, 1
    %p263 = scmp.ne.s32.totalorder %s258, %s260
    %p264 = scmp.eq.s32.totalorder %s30, 0
    %p265 = por %p263, %p264
    %p266 = scmp.ne.s32.totalorder %s258, %s260
    %p267 = scmp.eq.s32.totalorder %s35, 1
    %p268 = por %p266, %p267
    %p269 = scmp.ne.s32.totalorder %s260, %s261
    %p270 = scmp.eq.s32.totalorder %s35, 0
    %p271 = por %p269, %p270
    %p272 = scmp.ne.s32.totalorder %s260, %s261
    %p273 = scmp.eq.s32.totalorder %s36, 1
    %p274 = por %p272, %p273
    %p276 = scmp.ne.s32.totalorder %s261, %s275
    %p277 = scmp.eq.s32.totalorder %s36, 0
    %p278 = por %p276, %p277
    %s280 = sadd.s32 %s279, 1
    %p283 = scmp.eq.s32.totalorder %s30, 1
    %p284 = scmp.ne.s32.totalorder %s279, %s281
    %p285 = scmp.eq.s32.totalorder %s30, 0
    %p286 = por %p284, %p285
    %p287 = scmp.ne.s32.totalorder %s279, %s281
    %p288 = scmp.eq.s32.totalorder %s35, 1
    %p289 = por %p287, %p288
    %p290 = scmp.ne.s32.totalorder %s281, %s282
    %p291 = scmp.eq.s32.totalorder %s35, 0
    %p292 = por %p290, %p291
    %p293 = scmp.ne.s32.totalorder %s281, %s282
    %p294 = scmp.eq.s32.totalorder %s36, 1
    %p295 = por %p293, %p294
    %p297 = scmp.ne.s32.totalorder %s282, %s296
    %p298 = scmp.eq.s32.totalorder %s36, 0
    %p299 = por %p297, %p298
    %s301 = sadd.s32 %s300, 1
    %p304 = scmp.eq.s32.totalorder %s30, 1
    %p305 = scmp.ne.s32.totalorder %s300, %s302
    %p306 = scmp.eq.s32.totalorder %s30, 0
    %p307 = por %p305, %p306
    %p308 = scmp.ne.s32.totalorder %s300, %s302
    %p309 = scmp.eq.s32.totalorder %s35, 1
    %p310 = por %p308, %p309
    %p311 = scmp.ne.s32.totalorder %s302, %s303
    %p312 = scmp.eq.s32.totalorder %s35, 0
    %p313 = por %p311, %p312
    %p314 = scmp.ne.s32.totalorder %s302, %s303
    %p315 = scmp.eq.s32.totalorder %s36, 1
    %p316 = por %p314, %p315
    %p318 = scmp.ne.s32.totalorder %s303, %s317
    %p319 = scmp.eq.s32.totalorder %s36, 0
    %p320 = por %p318, %p319
    %s322 = sadd.s32 %s321, 1
    %p325 = scmp.eq.s32.totalorder %s30, 1
    %p326 = scmp.ne.s32.totalorder %s321, %s323
    %p327 = scmp.eq.s32.totalorder %s30, 0
    %p328 = por %p326, %p327
    %p329 = scmp.ne.s32.totalorder %s321, %s323
    %p330 = scmp.eq.s32.totalorder %s35, 1
    %p331 = por %p329, %p330
    %p332 = scmp.ne.s32.totalorder %s323, %s324
    %p333 = scmp.eq.s32.totalorder %s35, 0
    %p334 = por %p332, %p333
    %p335 = scmp.ne.s32.totalorder %s323, %s324
    %p336 = scmp.eq.s32.totalorder %s36, 1
    %p337 = por %p335, %p336
    %p339 = scmp.ne.s32.totalorder %s324, %s338
    %p340 = scmp.eq.s32.totalorder %s36, 0
    %p341 = por %p339, %p340
    %s343 = sadd.s32 %s342, 1
    %p346 = scmp.eq.s32.totalorder %s30, 1
    %p347 = scmp.ne.s32.totalorder %s342, %s344
    %p348 = scmp.eq.s32.totalorder %s30, 0
    %p349 = por %p347, %p348
    %p350 = scmp.ne.s32.totalorder %s342, %s344
    %p351 = scmp.eq.s32.totalorder %s35, 1
    %p352 = por %p350, %p351
    %p353 = scmp.ne.s32.totalorder %s344, %s345
    %p354 = scmp.eq.s32.totalorder %s35, 0
    %p355 = por %p353, %p354
    %p356 = scmp.ne.s32.totalorder %s344, %s345
    %p357 = scmp.eq.s32.totalorder %s36, 1
    %p358 = por %p356, %p357
    %p360 = scmp.ne.s32.totalorder %s345, %s359
    %p361 = scmp.eq.s32.totalorder %s36, 0
    %p362 = por %p360, %p361
    %s364 = sadd.s32 %s363, 1
    %p367 = scmp.eq.s32.totalorder %s30, 1
    %p368 = scmp.ne.s32.totalorder %s363, %s365
    %p369 = scmp.eq.s32.totalorder %s30, 0
    %p370 = por %p368, %p369
    %p371 = scmp.ne.s32.totalorder %s363, %s365
    %p372 = scmp.eq.s32.totalorder %s35, 1
    %p373 = por %p371, %p372
    %p374 = scmp.ne.s32.totalorder %s365, %s366
    %p375 = scmp.eq.s32.totalorder %s35, 0
    %p376 = por %p374, %p375
    %p377 = scmp.ne.s32.totalorder %s365, %s366
    %p378 = scmp.eq.s32.totalorder %s36, 1
    %p379 = por %p377, %p378
    %p381 = scmp.ne.s32.totalorder %s366, %s380
    %p382 = scmp.eq.s32.totalorder %s36, 0
    %p383 = por %p381, %p382
    %s385 = sadd.s32 %s384, 1
    %p388 = scmp.eq.s32.totalorder %s30, 1
    %p389 = scmp.ne.s32.totalorder %s384, %s386
    %p390 = scmp.eq.s32.totalorder %s30, 0
    %p391 = por %p389, %p390
    %p392 = scmp.ne.s32.totalorder %s384, %s386
    %p393 = scmp.eq.s32.totalorder %s35, 1
    %p394 = por %p392, %p393
    %p395 = scmp.ne.s32.totalorder %s386, %s387
    %p396 = scmp.eq.s32.totalorder %s35, 0
    %p397 = por %p395, %p396
    %p398 = scmp.ne.s32.totalorder %s386, %s387
    %p399 = scmp.eq.s32.totalorder %s36, 1
    %p400 = por %p398, %p399
    %p402 = scmp.ne.s32.totalorder %s387, %s401
    %p403 = scmp.eq.s32.totalorder %s36, 0
    %p404 = por %p402, %p403
    %s406 = sadd.s32 %s405, 1
    %p409 = scmp.eq.s32.totalorder %s30, 1
    %p410 = scmp.ne.s32.totalorder %s405, %s407
    %p411 = scmp.eq.s32.totalorder %s30, 0
    %p412 = por %p410, %p411
    %p413 = scmp.ne.s32.totalorder %s405, %s407
    %p414 = scmp.eq.s32.totalorder %s35, 1
    %p415 = por %p413, %p414
    %p416 = scmp.ne.s32.totalorder %s407, %s408
    %p417 = scmp.eq.s32.totalorder %s35, 0
    %p418 = por %p416, %p417
    %p419 = scmp.ne.s32.totalorder %s407, %s408
    %p420 = scmp.eq.s32.totalorder %s36, 1
    %p421 = por %p419, %p420
    %p423 = scmp.ne.s32.totalorder %s408, %s422
    %p424 = scmp.eq.s32.totalorder %s36, 0
    %p425 = por %p423, %p424
    %s427 = sadd.s32 %s426, 1
    %p430 = scmp.eq.s32.totalorder %s30, 1
    %p431 = scmp.ne.s32.totalorder %s426, %s428
    %p432 = scmp.eq.s32.totalorder %s30, 0
    %p433 = por %p431, %p432
    %p434 = scmp.ne.s32.totalorder %s426, %s428
    %p435 = scmp.eq.s32.totalorder %s35, 1
    %p436 = por %p434, %p435
    %p437 = scmp.ne.s32.totalorder %s428, %s429
    %p438 = scmp.eq.s32.totalorder %s35, 0
    %p439 = por %p437, %p438
    %p440 = scmp.ne.s32.totalorder %s428, %s429
    %p441 = scmp.eq.s32.totalorder %s36, 1
    %p442 = por %p440, %p441
    %p444 = scmp.ne.s32.totalorder %s429, %s443
    %p445 = scmp.eq.s32.totalorder %s36, 0
    %p446 = por %p444, %p445
    %s448 = sadd.s32 %s447, 1
    %p451 = scmp.eq.s32.totalorder %s30, 1
    %p452 = scmp.ne.s32.totalorder %s447, %s449
    %p453 = scmp.eq.s32.totalorder %s30, 0
    %p454 = por %p452, %p453
    %p455 = scmp.ne.s32.totalorder %s447, %s449
    %p456 = scmp.eq.s32.totalorder %s35, 1
    %p457 = por %p455, %p456
    %p458 = scmp.ne.s32.totalorder %s449, %s450
    %p459 = scmp.eq.s32.totalorder %s35, 0
    %p460 = por %p458, %p459
    %p461 = scmp.ne.s32.totalorder %s449, %s450
    %p462 = scmp.eq.s32.totalorder %s36, 1
    %p463 = por %p461, %p462
    %p465 = scmp.ne.s32.totalorder %s450, %s464
    %p466 = scmp.eq.s32.totalorder %s36, 0
    %p467 = por %p465, %p466
    %s469 = sadd.s32 %s468, 1
    %p472 = scmp.eq.s32.totalorder %s30, 1
    %p473 = scmp.ne.s32.totalorder %s468, %s470
    %p474 = scmp.eq.s32.totalorder %s30, 0
    %p475 = por %p473, %p474
    %p476 = scmp.ne.s32.totalorder %s468, %s470
    %p477 = scmp.eq.s32.totalorder %s35, 1
    %p478 = por %p476, %p477
    %p479 = scmp.ne.s32.totalorder %s470, %s471
    %p480 = scmp.eq.s32.totalorder %s35, 0
    %p481 = por %p479, %p480
    %p482 = scmp.ne.s32.totalorder %s470, %s471
    %p483 = scmp.eq.s32.totalorder %s36, 1
    %p484 = por %p482, %p483
    %p486 = scmp.ne.s32.totalorder %s471, %s485
    %p487 = scmp.eq.s32.totalorder %s36, 0
    %p488 = por %p486, %p487
    %s490 = sadd.s32 %s489, 1
    %p493 = scmp.eq.s32.totalorder %s30, 1
    %p494 = scmp.ne.s32.totalorder %s489, %s491
    %p495 = scmp.eq.s32.totalorder %s30, 0
    %p496 = por %p494, %p495
    %p497 = scmp.ne.s32.totalorder %s489, %s491
    %p498 = scmp.eq.s32.totalorder %s35, 1
    %p499 = por %p497, %p498
    %p500 = scmp.ne.s32.totalorder %s491, %s492
    %p501 = scmp.eq.s32.totalorder %s35, 0
    %p502 = por %p500, %p501
    %p503 = scmp.ne.s32.totalorder %s491, %s492
    %p504 = scmp.eq.s32.totalorder %s36, 1
    %p505 = por %p503, %p504
    %p507 = scmp.ne.s32.totalorder %s492, %s506
    %p508 = scmp.eq.s32.totalorder %s36, 0
    %p509 = por %p507, %p508
    %s510 = ssub.s32 %s30, %s37
    %p511 = scmp.eq.s32.totalorder %s510, 0
    %s513 = sadd.s32 %s512, 1
    %s514 = scalar_select %p511, %s512, %s513
    %p517 = pneg %p511
    %p518 = scmp.eq.s32.totalorder %s30, 1
    %p519 = por %p517, %p518
    %p520 = scmp.ne.s32.totalorder %s512, %s515
    %p521 = scmp.eq.s32.totalorder %s30, 0
    %p522 = por %p520, %p521
    %p523 = scmp.ne.s32.totalorder %s512, %s515
    %p524 = scmp.eq.s32.totalorder %s35, 1
    %p525 = por %p523, %p524
    %p526 = scmp.ne.s32.totalorder %s515, %s516
    %p527 = scmp.eq.s32.totalorder %s35, 0
    %p528 = por %p526, %p527
    %p529 = scmp.ne.s32.totalorder %s515, %s516
    %p530 = scmp.eq.s32.totalorder %s36, 1
    %p531 = por %p529, %p530
    %p533 = scmp.ne.s32.totalorder %s516, %s532
    %p534 = scmp.eq.s32.totalorder %s36, 0
    %p535 = por %p533, %p534
    %s536 = ssub.s32 %s30, %s37
    %p537 = scmp.eq.s32.totalorder %s536, 0
    %s539 = sadd.s32 %s538, 1
    %s540 = scalar_select %p537, %s538, %s539
    %p543 = pneg %p537
    %p544 = scmp.eq.s32.totalorder %s30, 1
    %p545 = por %p543, %p544
    %p546 = scmp.ne.s32.totalorder %s538, %s541
    %p547 = scmp.eq.s32.totalorder %s30, 0
    %p548 = por %p546, %p547
    %p549 = scmp.ne.s32.totalorder %s538, %s541
    %p550 = scmp.eq.s32.totalorder %s35, 1
    %p551 = por %p549, %p550
    %p552 = scmp.ne.s32.totalorder %s541, %s542
    %p553 = scmp.eq.s32.totalorder %s35, 0
    %p554 = por %p552, %p553
    %p555 = scmp.ne.s32.totalorder %s541, %s542
    %p556 = scmp.eq.s32.totalorder %s36, 1
    %p557 = por %p555, %p556
    %p559 = scmp.ne.s32.totalorder %s542, %s558
    %p560 = scmp.eq.s32.totalorder %s36, 0
    %p561 = por %p559, %p560
    %p562 = scmp.le.s32.totalorder 1, %s30
    %p563 = scmp.lt.s32.totalorder %s30, 3
    %p564 = pnand %p562, %p563
    %p565 = pneg %p564
    // Predicated region
    $region9: #{omics_forward.7} parent=5 // pred_check
      _
    $region10: #{omics_forward.7} parent=5 // pred_check_branch
      %567 = sbr.rel (%p564) target = $region12
    $region11: #{omics_forward.7} parent=5 // pred_region
      %s568 = ssub.s32 %s30, 1
      // Predicated region
      $region13: #{omics_forward.7} parent=11 // pred_check
        %p569 = pneg %p103
      $region14: #{omics_forward.7} parent=11 // pred_check_branch
        %571 = sbr.rel (%p569) target = $region16
      $region15: #{omics_forward.7} parent=11 // pred_region
        _
      $region16: #{omics_forward.7} parent=11 // pred_fallthru
        _
      // Predicated region
      $region17: #{omics_forward.7} parent=11 // pred_check
        %p572 = pneg %p124
      $region18: #{omics_forward.7} parent=11 // pred_check_branch
        %574 = sbr.rel (%p572) target = $region20
      $region19: #{omics_forward.7} parent=11 // pred_region
        _
      $region20: #{omics_forward.7} parent=11 // pred_fallthru
        _
      // Predicated region
      $region21: #{omics_forward.7} parent=11 // pred_check
        %p575 = pneg %p145
      $region22: #{omics_forward.7} parent=11 // pred_check_branch
        %577 = sbr.rel (%p575) target = $region24
      $region23: #{omics_forward.7} parent=11 // pred_region
        _
      $region24: #{omics_forward.7} parent=11 // pred_fallthru
        _
      // Predicated region
      $region25: #{omics_forward.7} parent=11 // pred_check
        %p578 = pneg %p166
      $region26: #{omics_forward.7} parent=11 // pred_check_branch
        %580 = sbr.rel (%p578) target = $region28
      $region27: #{omics_forward.7} parent=11 // pred_region
        _
      $region28: #{omics_forward.7} parent=11 // pred_fallthru
        _
      // Predicated region
      $region29: #{omics_forward.7} parent=11 // pred_check
        %p581 = pneg %p187
      $region30: #{omics_forward.7} parent=11 // pred_check_branch
        %583 = sbr.rel (%p581) target = $region32
      $region31: #{omics_forward.7} parent=11 // pred_region
        _
      $region32: #{omics_forward.7} parent=11 // pred_fallthru
        _
      // Predicated region
      $region33: #{omics_forward.7} parent=11 // pred_check
        %p584 = pneg %p208
      $region34: #{omics_forward.7} parent=11 // pred_check_branch
        %586 = sbr.rel (%p584) target = $region36
      $region35: #{omics_forward.7} parent=11 // pred_region
        _
      $region36: #{omics_forward.7} parent=11 // pred_fallthru
        _
      // Predicated region
      $region37: #{omics_forward.7} parent=11 // pred_check
        %p587 = pneg %p229
      $region38: #{omics_forward.7} parent=11 // pred_check_branch
        %589 = sbr.rel (%p587) target = $region40
      $region39: #{omics_forward.7} parent=11 // pred_region
        _
      $region40: #{omics_forward.7} parent=11 // pred_fallthru
        _
      // Predicated region
      $region41: #{omics_forward.7} parent=11 // pred_check
        %p590 = pneg %p250
      $region42: #{omics_forward.7} parent=11 // pred_check_branch
        %592 = sbr.rel (%p590) target = $region44
      $region43: #{omics_forward.7} parent=11 // pred_region
        _
      $region44: #{omics_forward.7} parent=11 // pred_fallthru
        _
      // Predicated region
      $region45: #{omics_forward.7} parent=11 // pred_check
        %p593 = pneg %p271
      $region46: #{omics_forward.7} parent=11 // pred_check_branch
        %595 = sbr.rel (%p593) target = $region48
      $region47: #{omics_forward.7} parent=11 // pred_region
        _
      $region48: #{omics_forward.7} parent=11 // pred_fallthru
        _
      // Predicated region
      $region49: #{omics_forward.7} parent=11 // pred_check
        %p596 = pneg %p292
      $region50: #{omics_forward.7} parent=11 // pred_check_branch
        %598 = sbr.rel (%p596) target = $region52
      $region51: #{omics_forward.7} parent=11 // pred_region
        _
      $region52: #{omics_forward.7} parent=11 // pred_fallthru
        _
      // Predicated region
      $region53: #{omics_forward.7} parent=11 // pred_check
        %p599 = pneg %p313
      $region54: #{omics_forward.7} parent=11 // pred_check_branch
        %601 = sbr.rel (%p599) target = $region56
      $region55: #{omics_forward.7} parent=11 // pred_region
        _
      $region56: #{omics_forward.7} parent=11 // pred_fallthru
        _
      // Predicated region
      $region57: #{omics_forward.7} parent=11 // pred_check
        %p602 = pneg %p334
      $region58: #{omics_forward.7} parent=11 // pred_check_branch
        %604 = sbr.rel (%p602) target = $region60
      $region59: #{omics_forward.7} parent=11 // pred_region
        _
      $region60: #{omics_forward.7} parent=11 // pred_fallthru
        _
      // Predicated region
      $region61: #{omics_forward.7} parent=11 // pred_check
        %p605 = pneg %p355
      $region62: #{omics_forward.7} parent=11 // pred_check_branch
        %607 = sbr.rel (%p605) target = $region64
      $region63: #{omics_forward.7} parent=11 // pred_region
        _
      $region64: #{omics_forward.7} parent=11 // pred_fallthru
        _
      // Predicated region
      $region65: #{omics_forward.7} parent=11 // pred_check
        %p608 = pneg %p376
      $region66: #{omics_forward.7} parent=11 // pred_check_branch
        %610 = sbr.rel (%p608) target = $region68
      $region67: #{omics_forward.7} parent=11 // pred_region
        _
      $region68: #{omics_forward.7} parent=11 // pred_fallthru
        _
      // Predicated region
      $region69: #{omics_forward.7} parent=11 // pred_check
        %p611 = pneg %p397
      $region70: #{omics_forward.7} parent=11 // pred_check_branch
        %613 = sbr.rel (%p611) target = $region72
      $region71: #{omics_forward.7} parent=11 // pred_region
        _
      $region72: #{omics_forward.7} parent=11 // pred_fallthru
        _
      // Predicated region
      $region73: #{omics_forward.7} parent=11 // pred_check
        %p614 = pneg %p418
      $region74: #{omics_forward.7} parent=11 // pred_check_branch
        %616 = sbr.rel (%p614) target = $region76
      $region75: #{omics_forward.7} parent=11 // pred_region
        _
      $region76: #{omics_forward.7} parent=11 // pred_fallthru
        _
      // Predicated region
      $region77: #{omics_forward.7} parent=11 // pred_check
        %p617 = pneg %p439
      $region78: #{omics_forward.7} parent=11 // pred_check_branch
        %619 = sbr.rel (%p617) target = $region80
      $region79: #{omics_forward.7} parent=11 // pred_region
        _
      $region80: #{omics_forward.7} parent=11 // pred_fallthru
        _
      // Predicated region
      $region81: #{omics_forward.7} parent=11 // pred_check
        %p620 = pneg %p460
      $region82: #{omics_forward.7} parent=11 // pred_check_branch
        %622 = sbr.rel (%p620) target = $region84
      $region83: #{omics_forward.7} parent=11 // pred_region
        _
      $region84: #{omics_forward.7} parent=11 // pred_fallthru
        _
      // Predicated region
      $region85: #{omics_forward.7} parent=11 // pred_check
        %p623 = pneg %p481
      $region86: #{omics_forward.7} parent=11 // pred_check_branch
        %625 = sbr.rel (%p623) target = $region88
      $region87: #{omics_forward.7} parent=11 // pred_region
        _
      $region88: #{omics_forward.7} parent=11 // pred_fallthru
        _
      // Predicated region
      $region89: #{omics_forward.7} parent=11 // pred_check
        %p626 = pneg %p502
      $region90: #{omics_forward.7} parent=11 // pred_check_branch
        %628 = sbr.rel (%p626) target = $region92
      $region91: #{omics_forward.7} parent=11 // pred_region
        _
      $region92: #{omics_forward.7} parent=11 // pred_fallthru
        _
    $region12: #{omics_forward.7} parent=5 // pred_fallthru
      _
    %p629 = scmp.lt.s32.totalorder %s30, 2
    // Predicated region
    $region93: #{omics_forward.7} parent=5 // pred_check
      %p630 = pneg %p629
    $region94: #{omics_forward.7} parent=5 // pred_check_branch
      %632 = sbr.rel (%p630) target = $region96
    $region95: #{omics_forward.7} parent=5 // pred_region
      // Predicated region
      $region97: #{omics_forward.7} parent=95 // pred_check
        %p633 = pneg %p50
      $region98: #{omics_forward.7} parent=95 // pred_check_branch
        %635 = sbr.rel (%p633) target = $region100
      $region99: #{omics_forward.7} parent=95 // pred_region
        %p636 = scmp.lt.s32.totalorder %s30, 1
        %s637 = scalar_select %p636, %s30, 1
        %s638 = smul.addr %s637, 4
        %s639 = scalar_lea.vmem %s0, %s638
      $region100: #{omics_forward.7} parent=95 // pred_fallthru
        _
      // Predicated region
      $region101: #{omics_forward.7} parent=95 // pred_check
        %p640 = pneg %p76
      $region102: #{omics_forward.7} parent=95 // pred_check_branch
        %642 = sbr.rel (%p640) target = $region104
      $region103: #{omics_forward.7} parent=95 // pred_region
        %p643 = scmp.lt.s32.totalorder %s30, 1
        %s644 = scalar_select %p643, %s30, 1
        %s645 = smul.addr %s644, 8
        %s646 = scalar_lea.vmem %s1, %s645
      $region104: #{omics_forward.7} parent=95 // pred_fallthru
        _
    $region96: #{omics_forward.7} parent=5 // pred_fallthru
      _
    %p647 = scmp.le.s32.totalorder 1, %s30
    %p648 = scmp.lt.s32.totalorder %s30, 3
    %p649 = pnand %p647, %p648
    %p650 = pneg %p649
    // Predicated region
    $region105: #{omics_forward.7} parent=5 // pred_check
      _
    $region106: #{omics_forward.7} parent=5 // pred_check_branch
      %652 = sbr.rel (%p649) target = $region108
    $region107: #{omics_forward.7} parent=5 // pred_region
      %s653 = ssub.s32 %s30, 1
      %p654 = scmp.lt.s32.totalorder %s35, 1
      %s655 = scalar_select %p654, %s35, 1
      %s656 = smul.addr %s655, 4
      %s657 = scalar_lea.vmem %s0, %s656
      %p658 = pneg %p56
      %p659 = pneg %p53
      %p660 = scmp.lt.s32.totalorder %s35, 1
      %s661 = scalar_select %p660, %s35, 1
      %s662 = smul.addr %s661, 8
      %s663 = scalar_lea.vmem %s1, %s662
      %p664 = pneg %p82
      %p665 = pneg %p79
      %p666 = pneg %p103
      %p667 = pneg %p100
      %p668 = pneg %p124
      %p669 = pneg %p121
      %p670 = pneg %p145
      %p671 = pneg %p142
      %p672 = pneg %p166
      %p673 = pneg %p163
      %p674 = pneg %p187
      %p675 = pneg %p184
      %p676 = pneg %p208
      %p677 = pneg %p205
      %p678 = pneg %p229
      %p679 = pneg %p226
      %p680 = pneg %p250
      %p681 = pneg %p247
      %p682 = pneg %p271
      %p683 = pneg %p268
      %p684 = pneg %p292
      %p685 = pneg %p289
      %p686 = pneg %p313
      %p687 = pneg %p310
      %p688 = pneg %p334
      %p689 = pneg %p331
      %p690 = pneg %p355
      %p691 = pneg %p352
      %p692 = pneg %p376
      %p693 = pneg %p373
      %p694 = pneg %p397
      %p695 = pneg %p394
      %p696 = pneg %p418
      %p697 = pneg %p415
      %p698 = pneg %p439
      %p699 = pneg %p436
      %p700 = pneg %p460
      %p701 = pneg %p457
      %p702 = pneg %p481
      %p703 = pneg %p478
      %p704 = pneg %p502
      %p705 = pneg %p499
      %p706 = pneg %p528
      %p707 = pneg %p525
      %p708 = scmp.lt.s32.totalorder %s35, 1
      %s709 = scalar_select %p708, %s35, 1
      %s710 = smul.addr %s709, 4
      %s711 = scalar_lea.vmem %s22, %s710
      %p712 = pneg %p554
      %p713 = pneg %p551
      %p714 = scmp.lt.s32.totalorder %s35, 1
      %s715 = scalar_select %p714, %s35, 1
      %s716 = smul.addr %s715, 8
      %s717 = scalar_lea.vmem %s23, %s716
      %p718 = scmp.lt.s32.totalorder %s35, 1
      %s719 = scalar_select %p718, %s35, 1
      %s720 = smul.addr %s719, 4
      %s721 = scalar_lea.vmem %s0, %s720
      %p722 = scmp.lt.s32.totalorder %s35, 1
      %s723 = scalar_select %p722, %s35, 1
      %s724 = smul.addr %s723, 8
      %s725 = scalar_lea.vmem %s1, %s724
      %p726 = scmp.lt.s32.totalorder %s35, 1
      %s727 = scalar_select %p726, %s35, 1
      %s728 = smul.addr %s727, 4
      %s729 = scalar_lea.vmem %s22, %s728
      %p730 = scmp.lt.s32.totalorder %s35, 1
      %s731 = scalar_select %p730, %s35, 1
      %s732 = smul.addr %s731, 8
      %s733 = scalar_lea.vmem %s23, %s732
      %v735 = vld [vmem:[%s721] sm:$0xf]
      %v736 = vld [vmem:[%s725] sm:$0xff]
      %737 = vxpose.xlu0.b32.start [1/16] %v735, 128
      %738 = vxpose.xlu0.b32.cont [2/16] 0.0, 128
      %739 = vxpose.xlu0.b32.cont [3/16] 0.0, 128
      %740 = vxpose.xlu0.b32.cont [4/16] 0.0, 128
      %741 = vxpose.xlu0.b32.cont [5/16] 0.0, 128
      %742 = vxpose.xlu0.b32.cont [6/16] 0.0, 128
      %743 = vxpose.xlu0.b32.cont [7/16] 0.0, 128
      %744 = vxpose.xlu0.b32.cont [8/16] 0.0, 128
      %745 = vxpose.xlu0.b32.cont [9/16] 0.0, 128
      %746 = vxpose.xlu0.b32.cont [10/16] 0.0, 128
      %747 = vxpose.xlu0.b32.cont [11/16] 0.0, 128
      %748 = vxpose.xlu0.b32.cont [12/16] 0.0, 128
      %749 = vxpose.xlu0.b32.cont [13/16] 0.0, 128
      %750 = vxpose.xlu0.b32.cont [14/16] 0.0, 128
      %751 = vxpose.xlu0.b32.cont [15/16] 0.0, 128
      %752 = vxpose.xlu0.b32.end [16/16] 0.0, 128
      %v753 = vpop.trf.xlu0
      %v754 = vpop.trf.xlu0
      %v755 = vpop.trf.xlu0
      %v756 = vpop.trf.xlu0
      %v757 = vpop.trf.xlu0
      %v758 = vpop.trf.xlu0
      %v759 = vpop.trf.xlu0
      %v760 = vpop.trf.xlu0
      %v761 = vpop.trf.xlu0
      %v762 = vpop.trf.xlu0
      %v763 = vpop.trf.xlu0
      %v764 = vpop.trf.xlu0
      %v765 = vpop.trf.xlu0
      %v766 = vpop.trf.xlu0
      %v767 = vpop.trf.xlu0
      %v768 = vpop.trf.xlu0
      %v769 = vld [vmem:[%s2] sm:$0x3]
      %v770 = vld [vmem:[%s3] sm:$0x3]
      %v771 = vld [vmem:[%s4] sm:$0x3]
      %v772 = vld [vmem:[%s5] sm:$0x1]
      %v773 = vld [vmem:[%s6] sm:$0xf]
      %v774 = vld [vmem:[%s6 + $0x4] sm:$0xf]
      %v775 = vld [vmem:[%s7] sm:$0x1]
      %v776 = vpack.c.bf16 %v753, %v753
      %vm777 = vcmask 31744
      %v779 = vsel %vm777, %v776, 0
      %vm781 = vcmask 1041408
      %v783 = vsel %vm781, %v770, 0
      %785 = vmatpush.bf16.msra.mxu0 0
      %786 = vmatpush.bf16.msra.mxu0 0
      %787 = vmatpush.bf16.msra.mxu0 0
      %788 = vmatpush.bf16.msra.mxu0 0
      %789 = vmatpush.bf16.msra.mxu0 0
      %790 = vmatpush.bf16.msra.mxu0 0
      %791 = vmatpush.bf16.msra.mxu0 0
      %792 = vmatpush.bf16.msra.mxu0 %v783
      %793 = vmatmul.bf16.gmra.mxu0 %v779
      %v794 = vpop.f32.mrf.mxu0
      %v795 = vadd.f32 0.0, %v794
      %v796 = vpop.f32.mrf.mxu0
      %797 = vdwg.mxu0
      %v798 = vpack.c.bf16 %v795, %v795
      %v800 = vsel %vm781, %v769, 0
      %802 = vmatpush.bf16.msra.mxu0 0
      %803 = vmatpush.bf16.msra.mxu0 0
      %804 = vmatpush.bf16.msra.mxu0 0
      %805 = vmatpush.bf16.msra.mxu0 0
      %806 = vmatpush.bf16.msra.mxu0 0
      %807 = vmatpush.bf16.msra.mxu0 0
      %808 = vmatpush.bf16.msra.mxu0 0
      %809 = vmatpush.bf16.msra.mxu0 %v800
      %810 = vmatmul.bf16.gmra.mxu0 %v779
      %v811 = vpop.f32.mrf.mxu0
      %v812 = vadd.f32 0.0, %v811
      %v813 = vpop.f32.mrf.mxu0
      %814 = vdwg.mxu0
      %v816 = vperm.slane %v772, 0
      %v819 = vsel %vm781, %v771, 0
      %821 = vmatpush.bf16.msra.mxu0 0
      %822 = vmatpush.bf16.msra.mxu0 0
      %823 = vmatpush.bf16.msra.mxu0 0
      %824 = vmatpush.bf16.msra.mxu0 0
      %825 = vmatpush.bf16.msra.mxu0 0
      %826 = vmatpush.bf16.msra.mxu0 0
      %827 = vmatpush.bf16.msra.mxu0 0
      %828 = vmatpush.bf16.msra.mxu0 %v819
      %829 = vmatmul.bf16.gmra.mxu0 %v779
      %v830 = vpop.f32.mrf.mxu0
      %v831 = vadd.f32 %v816, %v830
      %v832 = vpop.f32.mrf.mxu0
      %833 = vdwg.mxu0
      %v834 = vxor.u32 %v831, 2147483648
      %v835 = vmul.f32 %v834, 1.442695
      %v836 = vpow.pop %v835
      %v837 = vadd.f32 %v836, 1.0
      %v838 = vrcp.pop %v837
      %v839 = vmul.f32 %v837, %v838
      %v840 = vsub.f32 1.0, %v839
      %v841 = vmul.f32 %v838, %v840
      %v842 = vadd.f32 %v838, %v841
      %vm843 = vweird.f32 %v837
      %vm844 = vweird.f32 %v838
      %vm845 = vmor %vm843, %vm844
      %v846 = vsel %vm845, %v838, %v842
      %v847 = vand.u32 2147483647, %v837
      %vm848 = vcmp.eq.f32.partialorder %v847, 8.507059e+37
      %v849 = vand.u32 %v837, 2147483648
      %v850 = vor.u32 1.1754944e-38, %v849
      %v851 = vsel %vm848, %v850, %v846
      %v852 = vmul.f32 1.0, %v851
      %v853 = vpack.c.bf16 %v812, %v812
      %vm854 = vcmask 64512
      %v856 = vsel %vm854, %v853, 0
      %v859 = vsel %vm854, %v798, 0
      %861 = vmatpush.bf16.xpose.msra.mxu0 0
      %862 = vmatpush.bf16.xpose.msra.mxu0 0
      %863 = vmatpush.bf16.xpose.msra.mxu0 0
      %864 = vmatpush.bf16.xpose.msra.mxu0 0
      %865 = vmatpush.bf16.xpose.msra.mxu0 0
      %866 = vmatpush.bf16.xpose.msra.mxu0 0
      %867 = vmatpush.bf16.xpose.msra.mxu0 0
      %868 = vmatpush.bf16.xpose.msra.mxu0 %v859
      %869 = vmatmul.bf16.gmra.mxu0 %v856
      %v870 = vpop.f32.mrf.mxu0
      %v871 = vadd.f32 %v736, %v870
      %v872 = vpop.f32.mrf.mxu0
      %873 = vdwg.mxu0
      %v874 = vsel %vm854, %v871, -inf
      %875 = vmax.xlane.f32.xlu0 %v874
      %v876 = vpop.xlane.xlu0 %875
      %v877 = vsub.f32 %v871, %v876
      %v878 = vmul.f32 %v877, 1.442695
      %v879 = vpow.pop %v878
      %v880 = vsel %vm854, %v879, 0.0
      %881 = vadd.xlane.f32.xlu0 %v880
      %v882 = vpop.xlane.xlu0 %881
      %v883 = vrcp.pop %v882
      %v884 = vmul.f32 %v879, %v883
      %v885 = vpack.c.bf16 %v884, %v884
      %v887 = vunpack.c.l.b16 %v798
      %v888 = vpack.c.b16 %v887, %v887
      %889 = vrot.lane.b32.xlu0 %v888, 112
      %v890 = vpop.permute.xlu0 %889
      %v892 = vsel %vm854, %v885, 0
      %vm894 = vcmask 1043456
      %v896 = vsel %vm894, %v890, 0
      %898 = vmatpush.bf16.msra.mxu0 0
      %899 = vmatpush.bf16.msra.mxu0 0
      %900 = vmatpush.bf16.msra.mxu0 0
      %901 = vmatpush.bf16.msra.mxu0 0
      %902 = vmatpush.bf16.msra.mxu0 0
      %903 = vmatpush.bf16.msra.mxu0 0
      %904 = vmatpush.bf16.msra.mxu0 0
      %905 = vmatpush.bf16.msra.mxu0 %v896
      %906 = vmatmul.bf16.gmra.mxu0 %v892
      %v907 = vpop.f32.mrf.mxu0
      %v908 = vadd.f32 0.0, %v907
      %v909 = vpop.f32.mrf.mxu0
      %910 = vdwg.mxu0
      %912 = vrot.lane.b32.xlu0 %v853, 120
      %v913 = vpop.permute.xlu0 %912
      %914 = vrot.lane.b32.xlu0 %v888, 120
      %v915 = vpop.permute.xlu0 %914
      %v917 = vsel %vm854, %v913, 0
      %v920 = vsel %vm854, %v915, 0
      %922 = vmatpush.bf16.xpose.msra.mxu0 0
      %923 = vmatpush.bf16.xpose.msra.mxu0 0
      %924 = vmatpush.bf16.xpose.msra.mxu0 0
      %925 = vmatpush.bf16.xpose.msra.mxu0 0
      %926 = vmatpush.bf16.xpose.msra.mxu0 0
      %927 = vmatpush.bf16.xpose.msra.mxu0 0
      %928 = vmatpush.bf16.xpose.msra.mxu0 0
      %929 = vmatpush.bf16.xpose.msra.mxu0 %v920
      %930 = vmatmul.bf16.gmra.mxu0 %v917
      %v931 = vpop.f32.mrf.mxu0
      %v932 = vadd.f32 %v736, %v931
      %v933 = vpop.f32.mrf.mxu0
      %934 = vdwg.mxu0
      %v935 = vsel %vm854, %v932, -inf
      %936 = vmax.xlane.f32.xlu0 %v935
      %v937 = vpop.xlane.xlu0 %936
      %v938 = vsub.f32 %v932, %v937
      %v939 = vmul.f32 %v938, 1.442695
      %v940 = vpow.pop %v939
      %v941 = vsel %vm854, %v940, 0.0
      %942 = vadd.xlane.f32.xlu0 %v941
      %v943 = vpop.xlane.xlu0 %942
      %v944 = vrcp.pop %v943
      %v945 = vmul.f32 %v940, %v944
      %v946 = vpack.c.bf16 %v945, %v945
      %947 = vrot.lane.b32.xlu0 %v888, 104
      %v948 = vpop.permute.xlu0 %947
      %v950 = vsel %vm854, %v946, 0
      %v953 = vsel %vm894, %v948, 0
      %955 = vmatpush.bf16.msra.mxu0 0
      %956 = vmatpush.bf16.msra.mxu0 0
      %957 = vmatpush.bf16.msra.mxu0 0
      %958 = vmatpush.bf16.msra.mxu0 0
      %959 = vmatpush.bf16.msra.mxu0 0
      %960 = vmatpush.bf16.msra.mxu0 0
      %961 = vmatpush.bf16.msra.mxu0 0
      %962 = vmatpush.bf16.msra.mxu0 %v953
      %963 = vmatmul.bf16.gmra.mxu0 %v950
      %v964 = vpop.f32.mrf.mxu0
      %v965 = vadd.f32 0.0, %v964
      %v966 = vpop.f32.mrf.mxu0
      %967 = vdwg.mxu0
      %969 = vrot.lane.b32.xlu0 %v965, 8
      %v970 = vpop.permute.xlu0 %969
      %v972 = vsel %vm854, %v908, %v970
      %v973 = vmul.f32 %v972, %v852
      %v974 = vpack.c.bf16 %v973, %v973
      %v976 = vperm.slane %v775, 0
      %v980 = vunpack.c.l.b16 %v773
      %v981 = vunpack.c.l.b16 %v774
      %v982 = vpack.c.b16 %v981, %v980
      %vm984 = vcmask 130048
      %v986 = vsel %vm984, %v974, 0
      %988 = vmatpush.bf16.msra.mxu0 0
      %989 = vmatpush.bf16.msra.mxu0 0
      %990 = vmatpush.bf16.msra.mxu0 0
      %991 = vmatpush.bf16.msra.mxu0 0
      %992 = vmatpush.bf16.msra.mxu0 0
      %993 = vmatpush.bf16.msra.mxu0 0
      %994 = vmatpush.bf16.msra.mxu0 0
      %995 = vmatpush.bf16.msra.mxu0 %v982
      %996 = vmatmul.bf16.gmra.mxu0 %v986
      %v997 = vpop.f32.mrf.mxu0
      %v998 = vadd.f32 %v976, %v997
      %v999 = vpop.f32.mrf.mxu0
      %1000 = vdwg.mxu0
      %v1001 = vadd.f32 %v998, %v753
      %v1002 = vpack.c.bf16 %v1001, %v1001
      %v1003 = vld [vmem:[%s8] sm:$0x3]
      %v1004 = vld [vmem:[%s9] sm:$0x1]
      %v1006 = vperm.slane %v1004, 0
      %v1009 = vsel %vm777, %v1002, 0
      %v1012 = vsel %vm781, %v1003, 0
      %1014 = vmatpush.bf16.msra.mxu0 0
      %1015 = vmatpush.bf16.msra.mxu0 0
      %1016 = vmatpush.bf16.msra.mxu0 0
      %1017 = vmatpush.bf16.msra.mxu0 0
      %1018 = vmatpush.bf16.msra.mxu0 0
      %1019 = vmatpush.bf16.msra.mxu0 0
      %1020 = vmatpush.bf16.msra.mxu0 0
      %1021 = vmatpush.bf16.msra.mxu0 %v1012
      %1022 = vmatmul.bf16.gmra.mxu0 %v1009
      %v1023 = vpop.f32.mrf.mxu0
      %v1024 = vadd.f32 %v1006, %v1023
      %v1025 = vpop.f32.mrf.mxu0
      %1026 = vdwg.mxu0
      %1027 = vst [vmem:[#allocation1] ss:$4 sm:$0xff] %v1003
      %v1028 = vld.sshfl [vmem:[#allocation1] sm:$0xff pattern:$0x73625140]
      %1030 = vrot.lane.b32.xlu0 %v1028, 112
      %v1031 = vpop.permute.xlu0 %1030
      %1032 = vrot.lane.b32.xlu0 %v1006, 112
      %v1033 = vpop.permute.xlu0 %1032
      %v1036 = vsel %vm781, %v1031, 0
      %1038 = vmatpush.bf16.msra.mxu0 0
      %1039 = vmatpush.bf16.msra.mxu0 0
      %1040 = vmatpush.bf16.msra.mxu0 0
      %1041 = vmatpush.bf16.msra.mxu0 0
      %1042 = vmatpush.bf16.msra.mxu0 0
      %1043 = vmatpush.bf16.msra.mxu0 0
      %1044 = vmatpush.bf16.msra.mxu0 0
      %1045 = vmatpush.bf16.msra.mxu0 %v1036
      %1046 = vmatmul.bf16.gmra.mxu0 %v1009
      %v1047 = vpop.f32.mrf.mxu0
      %v1048 = vadd.f32 %v1033, %v1047
      %v1049 = vpop.f32.mrf.mxu0
      %1050 = vdwg.mxu0
      %v1051 = vmul.f32 %v1048, 0.5
      %v1052 = vmul.f32 %v1048, 0.70710677
      %v1053 = vmul.f32 %v1052, %v1052
      %v1054 = vmin.f32 16.0, %v1053
      %v1055 = vmul.f32 %v1054, 2.1237322e-06
      %v1056 = vadd.f32 %v1055, 0.00028619796
      %v1057 = vmul.f32 %v1054, %v1056
      %v1058 = vadd.f32 %v1057, 0.0036580483
      %v1059 = vmul.f32 %v1054, %v1058
      %v1060 = vadd.f32 %v1059, 0.05243302
      %v1061 = vmul.f32 %v1054, %v1060
      %v1062 = vadd.f32 %v1061, 0.18741608
      %v1063 = vmul.f32 %v1054, %v1062
      %v1064 = vadd.f32 %v1063, 1.1283791
      %v1065 = vmul.f32 %v1052, %v1064
      %v1066 = vmul.f32 %v1054, 3.8918573e-05
      %v1067 = vadd.f32 %v1066, 0.001143296
      %v1068 = vmul.f32 %v1054, %v1067
      %v1069 = vadd.f32 %v1068, 0.014752088
      %v1070 = vmul.f32 %v1054, %v1069
      %v1071 = vadd.f32 %v1070, 0.112945676
      %v1072 = vmul.f32 %v1054, %v1071
      %v1073 = vadd.f32 %v1072, 0.4994258
      %v1074 = vmul.f32 %v1054, %v1073
      %v1075 = vadd.f32 %v1074, 1.0
      %v1076 = vrcp.pop %v1075
      %v1077 = vmul.f32 %v1075, %v1076
      %v1078 = vsub.f32 1.0, %v1077
      %v1079 = vmul.f32 %v1076, %v1078
      %v1080 = vadd.f32 %v1076, %v1079
      %vm1081 = vweird.f32 %v1075
      %vm1082 = vweird.f32 %v1076
      %vm1083 = vmor %vm1081, %vm1082
      %v1084 = vsel %vm1083, %v1076, %v1080
      %v1085 = vand.u32 2147483647, %v1075
      %vm1086 = vcmp.eq.f32.partialorder %v1085, 8.507059e+37
      %v1087 = vand.u32 %v1075, 2147483648
      %v1088 = vor.u32 1.1754944e-38, %v1087
      %v1089 = vsel %vm1086, %v1088, %v1084
      %v1090 = vmul.f32 %v1065, %v1089
      %v1091 = vmin.f32 %v1090, 1.0
      %v1092 = vmax.f32 %v1091, -1.0
      %v1093 = vadd.f32 %v1092, 1.0
      %v1094 = vmul.f32 %v1051, %v1093
      %v1095 = vmul.f32 %v1024, %v1094
      %v1096 = vpack.c.bf16 %v1095, %v1095
      %v1097 = vld [vmem:[%s10] sm:$0xf]
      %v1098 = vld [vmem:[%s10 + $0x4] sm:$0xf]
      %v1099 = vld [vmem:[%s11] sm:$0x1]
      %v1101 = vperm.slane %v1099, 0
      %v1105 = vunpack.c.l.b16 %v1097
      %v1106 = vunpack.c.l.b16 %v1098
      %v1107 = vpack.c.b16 %v1106, %v1105
      %v1110 = vsel %vm984, %v1096, 0
      %1112 = vmatpush.bf16.msra.mxu0 0
      %1113 = vmatpush.bf16.msra.mxu0 0
      %1114 = vmatpush.bf16.msra.mxu0 0
      %1115 = vmatpush.bf16.msra.mxu0 0
      %1116 = vmatpush.bf16.msra.mxu0 0
      %1117 = vmatpush.bf16.msra.mxu0 0
      %1118 = vmatpush.bf16.msra.mxu0 0
      %1119 = vmatpush.bf16.msra.mxu0 %v1107
      %1120 = vmatmul.bf16.gmra.mxu0 %v1110
      %v1121 = vpop.f32.mrf.mxu0
      %v1122 = vadd.f32 %v1101, %v1121
      %v1123 = vpop.f32.mrf.mxu0
      %1124 = vdwg.mxu0
      %v1125 = vadd.f32 %v1122, %v1001
      %1126 = vxpose.xlu0.b32.start [1/16] %v1125, 128
      %1127 = vxpose.xlu0.b32.cont [2/16] 0.0, 128
      %1128 = vxpose.xlu0.b32.cont [3/16] 0.0, 128
      %1129 = vxpose.xlu0.b32.cont [4/16] 0.0, 128
      %1130 = vxpose.xlu0.b32.cont [5/16] 0.0, 128
      %1131 = vxpose.xlu0.b32.cont [6/16] 0.0, 128
      %1132 = vxpose.xlu0.b32.cont [7/16] 0.0, 128
      %1133 = vxpose.xlu0.b32.cont [8/16] 0.0, 128
      %1134 = vxpose.xlu0.b32.cont [9/16] 0.0, 128
      %1135 = vxpose.xlu0.b32.cont [10/16] 0.0, 128
      %1136 = vxpose.xlu0.b32.cont [11/16] 0.0, 128
      %1137 = vxpose.xlu0.b32.cont [12/16] 0.0, 128
      %1138 = vxpose.xlu0.b32.cont [13/16] 0.0, 128
      %1139 = vxpose.xlu0.b32.cont [14/16] 0.0, 128
      %1140 = vxpose.xlu0.b32.cont [15/16] 0.0, 128
      %1141 = vxpose.xlu0.b32.end [16/16] 0.0, 128
      %v1142 = vpop.trf.xlu0
      %v1143 = vpop.trf.xlu0
      %v1144 = vpop.trf.xlu0
      %v1145 = vpop.trf.xlu0
      %v1146 = vpop.trf.xlu0
      %v1147 = vpop.trf.xlu0
      %v1148 = vpop.trf.xlu0
      %v1149 = vpop.trf.xlu0
      %v1150 = vpop.trf.xlu0
      %v1151 = vpop.trf.xlu0
      %v1152 = vpop.trf.xlu0
      %v1153 = vpop.trf.xlu0
      %v1154 = vpop.trf.xlu0
      %v1155 = vpop.trf.xlu0
      %v1156 = vpop.trf.xlu0
      %v1157 = vpop.trf.xlu0
      %v1158 = vld [vmem:[%s12] sm:$0xf]
      %v1159 = vld [vmem:[%s13] sm:$0xf]
      %v1160 = vld [vmem:[%s14] sm:$0xf]
      %v1161 = vld [vmem:[%s15] sm:$0x1]
      %v1162 = vld [vmem:[%s16] sm:$0xf]
      %v1163 = vld [vmem:[%s16 + $0x4] sm:$0xf]
      %v1164 = vld [vmem:[%s17] sm:$0x1]
      %v1165 = vpack.c.bf16 %v1142, %v1142
      %v1167 = vsel %vm854, %v1165, 0
      %v1170 = vsel %vm894, %v1159, 0
      %1172 = vmatpush.bf16.msra.mxu0 0
      %1173 = vmatpush.bf16.msra.mxu0 0
      %1174 = vmatpush.bf16.msra.mxu0 0
      %1175 = vmatpush.bf16.msra.mxu0 0
      %1176 = vmatpush.bf16.msra.mxu0 0
      %1177 = vmatpush.bf16.msra.mxu0 0
      %1178 = vmatpush.bf16.msra.mxu0 0
      %1179 = vmatpush.bf16.msra.mxu0 %v1170
      %1180 = vmatmul.bf16.gmra.mxu0 %v1167
      %v1181 = vpop.f32.mrf.mxu0
      %v1182 = vadd.f32 0.0, %v1181
      %v1183 = vpop.f32.mrf.mxu0
      %1184 = vdwg.mxu0
      %v1185 = vpack.c.bf16 %v1182, %v1182
      %v1187 = vsel %vm894, %v1158, 0
      %1189 = vmatpush.bf16.msra.mxu0 0
      %1190 = vmatpush.bf16.msra.mxu0 0
      %1191 = vmatpush.bf16.msra.mxu0 0
      %1192 = vmatpush.bf16.msra.mxu0 0
      %1193 = vmatpush.bf16.msra.mxu0 0
      %1194 = vmatpush.bf16.msra.mxu0 0
      %1195 = vmatpush.bf16.msra.mxu0 0
      %1196 = vmatpush.bf16.msra.mxu0 %v1187
      %1197 = vmatmul.bf16.gmra.mxu0 %v1167
      %v1198 = vpop.f32.mrf.mxu0
      %v1199 = vadd.f32 0.0, %v1198
      %v1200 = vpop.f32.mrf.mxu0
      %1201 = vdwg.mxu0
      %v1203 = vperm.slane %v1161, 0
      %v1206 = vsel %vm894, %v1160, 0
      %1208 = vmatpush.bf16.msra.mxu0 0
      %1209 = vmatpush.bf16.msra.mxu0 0
      %1210 = vmatpush.bf16.msra.mxu0 0
      %1211 = vmatpush.bf16.msra.mxu0 0
      %1212 = vmatpush.bf16.msra.mxu0 0
      %1213 = vmatpush.bf16.msra.mxu0 0
      %1214 = vmatpush.bf16.msra.mxu0 0
      %1215 = vmatpush.bf16.msra.mxu0 %v1206
      %1216 = vmatmul.bf16.gmra.mxu0 %v1167
      %v1217 = vpop.f32.mrf.mxu0
      %v1218 = vadd.f32 %v1203, %v1217
      %v1219 = vpop.f32.mrf.mxu0
      %1220 = vdwg.mxu0
      %v1221 = vxor.u32 %v1218, 2147483648
      %v1222 = vmul.f32 %v1221, 1.442695
      %v1223 = vpow.pop %v1222
      %v1224 = vadd.f32 %v1223, 1.0
      %v1225 = vrcp.pop %v1224
      %v1226 = vmul.f32 %v1224, %v1225
      %v1227 = vsub.f32 1.0, %v1226
      %v1228 = vmul.f32 %v1225, %v1227
      %v1229 = vadd.f32 %v1225, %v1228
      %vm1230 = vweird.f32 %v1224
      %vm1231 = vweird.f32 %v1225
      %vm1232 = vmor %vm1230, %vm1231
      %v1233 = vsel %vm1232, %v1225, %v1229
      %v1234 = vand.u32 2147483647, %v1224
      %vm1235 = vcmp.eq.f32.partialorder %v1234, 8.507059e+37
      %v1236 = vand.u32 %v1224, 2147483648
      %v1237 = vor.u32 1.1754944e-38, %v1236
      %v1238 = vsel %vm1235, %v1237, %v1233
      %v1239 = vmul.f32 1.0, %v1238
      %v1240 = vpack.c.bf16 %v1199, %v1199
      %v1242 = vsel %vm854, %v1240, 0
      %v1245 = vsel %vm854, %v1185, 0
      %1247 = vmatpush.bf16.xpose.msra.mxu0 0
      %1248 = vmatpush.bf16.xpose.msra.mxu0 0
      %1249 = vmatpush.bf16.xpose.msra.mxu0 0
      %1250 = vmatpush.bf16.xpose.msra.mxu0 0
      %1251 = vmatpush.bf16.xpose.msra.mxu0 0
      %1252 = vmatpush.bf16.xpose.msra.mxu0 0
      %1253 = vmatpush.bf16.xpose.msra.mxu0 0
      %1254 = vmatpush.bf16.xpose.msra.mxu0 %v1245
      %1255 = vmatmul.bf16.gmra.mxu0 %v1242
      %v1256 = vpop.f32.mrf.mxu0
      %v1257 = vadd.f32 0.0, %v1256
      %v1258 = vpop.f32.mrf.mxu0
      %1259 = vdwg.mxu0
      %vm1260 = vcmask 27648
      %v1261 = vsel %vm1260, %v1257, -inf
      %1262 = vmax.xlane.f32.xlu0 %v1261
      %v1263 = vpop.xlane.xlu0 %1262
      %v1264 = vsub.f32 %v1257, %v1263
      %v1265 = vmul.f32 %v1264, 1.442695
      %v1266 = vpow.pop %v1265
      %v1267 = vsel %vm1260, %v1266, 0.0
      %1268 = vadd.xlane.f32.xlu0 %v1267
      %v1269 = vpop.xlane.xlu0 %1268
      %v1270 = vrcp.pop %v1269
      %v1271 = vmul.f32 %v1266, %v1270
      %v1272 = vpack.c.bf16 %v1271, %v1271
      %v1274 = vunpack.c.l.b16 %v1185
      %v1275 = vpack.c.b16 %v1274, %v1274
      %1276 = vrot.lane.b32.xlu0 %v1275, 112
      %v1277 = vpop.permute.xlu0 %1276
      %v1279 = vsel %vm777, %v1272, 0
      %v1282 = vsel %vm781, %v1277, 0
      %1284 = vmatpush.bf16.msra.mxu0 0
      %1285 = vmatpush.bf16.msra.mxu0 0
      %1286 = vmatpush.bf16.msra.mxu0 0
      %1287 = vmatpush.bf16.msra.mxu0 0
      %1288 = vmatpush.bf16.msra.mxu0 0
      %1289 = vmatpush.bf16.msra.mxu0 0
      %1290 = vmatpush.bf16.msra.mxu0 0
      %1291 = vmatpush.bf16.msra.mxu0 %v1282
      %1292 = vmatmul.bf16.gmra.mxu0 %v1279
      %v1293 = vpop.f32.mrf.mxu0
      %v1294 = vadd.f32 0.0, %v1293
      %v1295 = vpop.f32.mrf.mxu0
      %1296 = vdwg.mxu0
      %1298 = vrot.lane.b32.xlu0 %v1240, 120
      %v1299 = vpop.permute.xlu0 %1298
      %1300 = vrot.lane.b32.xlu0 %v1275, 120
      %v1301 = vpop.permute.xlu0 %1300
      %v1303 = vsel %vm854, %v1299, 0
      %v1306 = vsel %vm854, %v1301, 0
      %1308 = vmatpush.bf16.xpose.msra.mxu0 0
      %1309 = vmatpush.bf16.xpose.msra.mxu0 0
      %1310 = vmatpush.bf16.xpose.msra.mxu0 0
      %1311 = vmatpush.bf16.xpose.msra.mxu0 0
      %1312 = vmatpush.bf16.xpose.msra.mxu0 0
      %1313 = vmatpush.bf16.xpose.msra.mxu0 0
      %1314 = vmatpush.bf16.xpose.msra.mxu0 0
      %1315 = vmatpush.bf16.xpose.msra.mxu0 %v1306
      %1316 = vmatmul.bf16.gmra.mxu0 %v1303
      %v1317 = vpop.f32.mrf.mxu0
      %v1318 = vadd.f32 0.0, %v1317
      %v1319 = vpop.f32.mrf.mxu0
      %1320 = vdwg.mxu0
      %v1321 = vsel %vm1260, %v1318, -inf
      %1322 = vmax.xlane.f32.xlu0 %v1321
      %v1323 = vpop.xlane.xlu0 %1322
      %v1324 = vsub.f32 %v1318, %v1323
      %v1325 = vmul.f32 %v1324, 1.442695
      %v1326 = vpow.pop %v1325
      %v1327 = vsel %vm1260, %v1326, 0.0
      %1328 = vadd.xlane.f32.xlu0 %v1327
      %v1329 = vpop.xlane.xlu0 %1328
      %v1330 = vrcp.pop %v1329
      %v1331 = vmul.f32 %v1326, %v1330
      %v1332 = vpack.c.bf16 %v1331, %v1331
      %1333 = vrot.lane.b32.xlu0 %v1275, 104
      %v1334 = vpop.permute.xlu0 %1333
      %v1336 = vsel %vm777, %v1332, 0
      %v1339 = vsel %vm781, %v1334, 0
      %1341 = vmatpush.bf16.msra.mxu0 0
      %1342 = vmatpush.bf16.msra.mxu0 0
      %1343 = vmatpush.bf16.msra.mxu0 0
      %1344 = vmatpush.bf16.msra.mxu0 0
      %1345 = vmatpush.bf16.msra.mxu0 0
      %1346 = vmatpush.bf16.msra.mxu0 0
      %1347 = vmatpush.bf16.msra.mxu0 0
      %1348 = vmatpush.bf16.msra.mxu0 %v1339
      %1349 = vmatmul.bf16.gmra.mxu0 %v1336
      %v1350 = vpop.f32.mrf.mxu0
      %v1351 = vadd.f32 0.0, %v1350
      %v1352 = vpop.f32.mrf.mxu0
      %1353 = vdwg.mxu0
      %1355 = vrot.lane.b32.xlu0 %v1351, 8
      %v1356 = vpop.permute.xlu0 %1355
      %v1358 = vsel %vm854, %v1294, %v1356
      %v1359 = vmul.f32 %v1358, %v1239
      %v1360 = vpack.c.bf16 %v1359, %v1359
      %v1362 = vperm.slane %v1164, 0
      %v1366 = vunpack.c.l.b16 %v1162
      %v1367 = vunpack.c.l.b16 %v1163
      %v1368 = vpack.c.b16 %v1367, %v1366
      %v1371 = vsel %vm984, %v1360, 0
      %1373 = vmatpush.bf16.msra.mxu0 0
      %1374 = vmatpush.bf16.msra.mxu0 0
      %1375 = vmatpush.bf16.msra.mxu0 0
      %1376 = vmatpush.bf16.msra.mxu0 0
      %1377 = vmatpush.bf16.msra.mxu0 0
      %1378 = vmatpush.bf16.msra.mxu0 0
      %1379 = vmatpush.bf16.msra.mxu0 0
      %1380 = vmatpush.bf16.msra.mxu0 %v1368
      %1381 = vmatmul.bf16.gmra.mxu0 %v1371
      %v1382 = vpop.f32.mrf.mxu0
      %v1383 = vadd.f32 %v1362, %v1382
      %v1384 = vpop.f32.mrf.mxu0
      %1385 = vdwg.mxu0
      %v1386 = vadd.f32 %v1383, %v1142
      %v1387 = vpack.c.bf16 %v1386, %v1386
      %v1388 = vld [vmem:[%s18] sm:$0xf]
      %v1389 = vld [vmem:[%s19] sm:$0x1]
      %v1391 = vperm.slane %v1389, 0
      %v1394 = vsel %vm854, %v1387, 0
      %v1397 = vsel %vm894, %v1388, 0
      %1399 = vmatpush.bf16.msra.mxu0 0
      %1400 = vmatpush.bf16.msra.mxu0 0
      %1401 = vmatpush.bf16.msra.mxu0 0
      %1402 = vmatpush.bf16.msra.mxu0 0
      %1403 = vmatpush.bf16.msra.mxu0 0
      %1404 = vmatpush.bf16.msra.mxu0 0
      %1405 = vmatpush.bf16.msra.mxu0 0
      %1406 = vmatpush.bf16.msra.mxu0 %v1397
      %1407 = vmatmul.bf16.gmra.mxu0 %v1394
      %v1408 = vpop.f32.mrf.mxu0
      %v1409 = vadd.f32 %v1391, %v1408
      %v1410 = vpop.f32.mrf.mxu0
      %1411 = vdwg.mxu0
      %v1413 = vunpack.c.l.b16 %v1388
      %v1414 = vpack.c.b16 %v1413, %v1413
      %1415 = vrot.lane.b32.xlu0 %v1414, 96
      %v1416 = vpop.permute.xlu0 %1415
      %1417 = vrot.lane.b32.xlu0 %v1391, 96
      %v1418 = vpop.permute.xlu0 %1417
      %v1421 = vsel %vm894, %v1416, 0
      %1423 = vmatpush.bf16.msra.mxu0 0
      %1424 = vmatpush.bf16.msra.mxu0 0
      %1425 = vmatpush.bf16.msra.mxu0 0
      %1426 = vmatpush.bf16.msra.mxu0 0
      %1427 = vmatpush.bf16.msra.mxu0 0
      %1428 = vmatpush.bf16.msra.mxu0 0
      %1429 = vmatpush.bf16.msra.mxu0 0
      %1430 = vmatpush.bf16.msra.mxu0 %v1421
      %1431 = vmatmul.bf16.gmra.mxu0 %v1394
      %v1432 = vpop.f32.mrf.mxu0
      %v1433 = vadd.f32 %v1418, %v1432
      %v1434 = vpop.f32.mrf.mxu0
      %1435 = vdwg.mxu0
      %v1436 = vmul.f32 %v1433, 0.5
      %v1437 = vmul.f32 %v1433, 0.70710677
      %v1438 = vmul.f32 %v1437, %v1437
      %v1439 = vmin.f32 16.0, %v1438
      %v1440 = vmul.f32 %v1439, 2.1237322e-06
      %v1441 = vadd.f32 %v1440, 0.00028619796
      %v1442 = vmul.f32 %v1439, %v1441
      %v1443 = vadd.f32 %v1442, 0.0036580483
      %v1444 = vmul.f32 %v1439, %v1443
      %v1445 = vadd.f32 %v1444, 0.05243302
      %v1446 = vmul.f32 %v1439, %v1445
      %v1447 = vadd.f32 %v1446, 0.18741608
      %v1448 = vmul.f32 %v1439, %v1447
      %v1449 = vadd.f32 %v1448, 1.1283791
      %v1450 = vmul.f32 %v1437, %v1449
      %v1451 = vmul.f32 %v1439, 3.8918573e-05
      %v1452 = vadd.f32 %v1451, 0.001143296
      %v1453 = vmul.f32 %v1439, %v1452
      %v1454 = vadd.f32 %v1453, 0.014752088
      %v1455 = vmul.f32 %v1439, %v1454
      %v1456 = vadd.f32 %v1455, 0.112945676
      %v1457 = vmul.f32 %v1439, %v1456
      %v1458 = vadd.f32 %v1457, 0.4994258
      %v1459 = vmul.f32 %v1439, %v1458
      %v1460 = vadd.f32 %v1459, 1.0
      %v1461 = vrcp.pop %v1460
      %v1462 = vmul.f32 %v1460, %v1461
      %v1463 = vsub.f32 1.0, %v1462
      %v1464 = vmul.f32 %v1461, %v1463
      %v1465 = vadd.f32 %v1461, %v1464
      %vm1466 = vweird.f32 %v1460
      %vm1467 = vweird.f32 %v1461
      %vm1468 = vmor %vm1466, %vm1467
      %v1469 = vsel %vm1468, %v1461, %v1465
      %v1470 = vand.u32 2147483647, %v1460
      %vm1471 = vcmp.eq.f32.partialorder %v1470, 8.507059e+37
      %v1472 = vand.u32 %v1460, 2147483648
      %v1473 = vor.u32 1.1754944e-38, %v1472
      %v1474 = vsel %vm1471, %v1473, %v1469
      %v1475 = vmul.f32 %v1450, %v1474
      %v1476 = vmin.f32 %v1475, 1.0
      %v1477 = vmax.f32 %v1476, -1.0
      %v1478 = vadd.f32 %v1477, 1.0
      %v1479 = vmul.f32 %v1436, %v1478
      %v1480 = vmul.f32 %v1409, %v1479
      %v1481 = vpack.c.bf16 %v1480, %v1480
      %v1482 = vld [vmem:[%s20] sm:$0xf]
      %v1483 = vld [vmem:[%s20 + $0x4] sm:$0xf]
      %v1484 = vld [vmem:[%s20 + $0x8] sm:$0xf]
      %v1485 = vld [vmem:[%s20 + $0xc] sm:$0xf]
      %v1486 = vld [vmem:[%s21] sm:$0x1]
      %v1488 = vperm.slane %v1486, 0
      %v1494 = vunpack.c.l.b16 %v1482
      %v1495 = vunpack.c.l.b16 %v1483
      %v1496 = vunpack.c.l.b16 %v1484
      %v1497 = vunpack.c.l.b16 %v1485
      %v1498 = vpack.c.b16 %v1495, %v1494
      %v1499 = vpack.c.b16 %v1497, %v1496
      %vm1502 = vcmask 261120
      %v1504 = vsel %vm1502, %v1481, 0
      %1506 = vmatpush.bf16.msra.mxu0 0
      %1507 = vmatpush.bf16.msra.mxu0 0
      %1508 = vmatpush.bf16.msra.mxu0 0
      %1509 = vmatpush.bf16.msra.mxu0 0
      %1510 = vmatpush.bf16.msra.mxu0 0
      %1511 = vmatpush.bf16.msra.mxu0 0
      %1512 = vmatpush.bf16.msra.mxu0 %v1499
      %1513 = vmatpush.bf16.msra.mxu0 %v1498
      %1514 = vmatmul.bf16.gmra.mxu0 %v1504
      %v1515 = vpop.f32.mrf.mxu0
      %v1516 = vadd.f32 %v1488, %v1515
      %v1517 = vpop.f32.mrf.mxu0
      %1518 = vdwg.mxu0
      %v1519 = vadd.f32 %v1516, %v1386
      %v1520 = vmul.f32 %v1519, 0.25
      %1521 = vxpose.xlu0.b32.start [1/16] %v1520, 128
      %1522 = vxpose.xlu0.b32.cont [2/16] 0.0, 128
      %1523 = vxpose.xlu0.b32.cont [3/16] 0.0, 128
      %1524 = vxpose.xlu0.b32.cont [4/16] 0.0, 128
      %1525 = vxpose.xlu0.b32.cont [5/16] 0.0, 128
      %1526 = vxpose.xlu0.b32.cont [6/16] 0.0, 128
      %1527 = vxpose.xlu0.b32.cont [7/16] 0.0, 128
      %1528 = vxpose.xlu0.b32.cont [8/16] 0.0, 128
      %1529 = vxpose.xlu0.b32.cont [9/16] 0.0, 128
      %1530 = vxpose.xlu0.b32.cont [10/16] 0.0, 128
      %1531 = vxpose.xlu0.b32.cont [11/16] 0.0, 128
      %1532 = vxpose.xlu0.b32.cont [12/16] 0.0, 128
      %1533 = vxpose.xlu0.b32.cont [13/16] 0.0, 128
      %1534 = vxpose.xlu0.b32.cont [14/16] 0.0, 128
      %1535 = vxpose.xlu0.b32.cont [15/16] 0.0, 128
      %1536 = vxpose.xlu0.b32.end [16/16] 0.0, 128
      %v1537 = vpop.trf.xlu0
      %v1538 = vpop.trf.xlu0
      %v1539 = vpop.trf.xlu0
      %v1540 = vpop.trf.xlu0
      %v1541 = vpop.trf.xlu0
      %v1542 = vpop.trf.xlu0
      %v1543 = vpop.trf.xlu0
      %v1544 = vpop.trf.xlu0
      %v1545 = vpop.trf.xlu0
      %v1546 = vpop.trf.xlu0
      %v1547 = vpop.trf.xlu0
      %v1548 = vpop.trf.xlu0
      %v1549 = vpop.trf.xlu0
      %v1550 = vpop.trf.xlu0
      %v1551 = vpop.trf.xlu0
      %v1552 = vpop.trf.xlu0
      %v1554 = vsel %vm777, %v1537, 0
      %v1557 = vsel %vm894, %v1519, 0
      %1559 = vmatpush.msra.mxu0 0.0
      %1560 = vmatpush.msra.mxu0 0.0
      %1561 = vmatpush.msra.mxu0 0.0
      %1562 = vmatpush.msra.mxu0 0.0
      %1563 = vmatpush.msra.mxu0 0.0
      %1564 = vmatpush.msra.mxu0 0.0
      %1565 = vmatpush.msra.mxu0 0.0
      %1566 = vmatpush.msra.mxu0 0.0
      %1567 = vmatpush.msra.mxu0 0.0
      %1568 = vmatpush.msra.mxu0 0.0
      %1569 = vmatpush.msra.mxu0 0.0
      %1570 = vmatpush.msra.mxu0 0.0
      %1571 = vmatpush.msra.mxu0 0.0
      %1572 = vmatpush.msra.mxu0 0.0
      %1573 = vmatpush.msra.mxu0 0.0
      %1574 = vmatpush.msra.mxu0 %v1557
      %1575 = vmatmul.f32.gmra.mxu0 %v1554
      %v1576 = vpop.f32.mrf.mxu0
      %v1577 = vadd.f32 0.0, %v1576
      %1578 = vdwg.mxu0
      %v1579 = vadd.f32 %v736, %v1577
      %1580 = vst.msk [vmem:[%s733] sm:$0xff] %vm854, %v1579
      %vm1581 = vcmask 60416
      %1582 = vst.msk [vmem:[%s729] sm:$0xf] %vm1581, %v1519
      %p1583 = scmp.lt.s32.totalorder %s35, 1
      %s1584 = scalar_select %p1583, %s35, 1
      %s1585 = smul.addr %s1584, 4
      %s1586 = scalar_lea.vmem %s22, %s1585
      %p1587 = scmp.lt.s32.totalorder %s35, 1
      %s1588 = scalar_select %p1587, %s35, 1
      %s1589 = smul.addr %s1588, 8
      %s1590 = scalar_lea.vmem %s23, %s1589
      // Predicated region
      $region109: #{omics_forward.7} parent=107 // pred_check
        %p1591 = pneg %p525
      $region110: #{omics_forward.7} parent=107 // pred_check_branch
        %1593 = sbr.rel (%p1591) target = $region112
      $region111: #{omics_forward.7} parent=107 // pred_region
        _
      $region112: #{omics_forward.7} parent=107 // pred_fallthru
        _
      // Predicated region
      $region113: #{omics_forward.7} parent=107 // pred_check
        %p1594 = pneg %p551
      $region114: #{omics_forward.7} parent=107 // pred_check_branch
        %1596 = sbr.rel (%p1594) target = $region116
      $region115: #{omics_forward.7} parent=107 // pred_region
        _
      $region116: #{omics_forward.7} parent=107 // pred_fallthru
        _
    $region108: #{omics_forward.7} parent=5 // pred_fallthru
      _
    %p1597 = scmp.le.s32.totalorder 2, %s30
    // Predicated region
    $region117: #{omics_forward.7} parent=5 // pred_check
      %p1598 = pneg %p1597
    $region118: #{omics_forward.7} parent=5 // pred_check_branch
      %1600 = sbr.rel (%p1598) target = $region120
    $region119: #{omics_forward.7} parent=5 // pred_region
      %s1601 = ssub.s32 %s30, 2
      // Predicated region
      $region121: #{omics_forward.7} parent=119 // pred_check
        %p1602 = pneg %p531
      $region122: #{omics_forward.7} parent=119 // pred_check_branch
        %1604 = sbr.rel (%p1602) target = $region124
      $region123: #{omics_forward.7} parent=119 // pred_region
        %p1605 = scmp.lt.s32.totalorder %s36, 1
        %s1606 = scalar_select %p1605, %s36, 1
        %s1607 = smul.addr %s1606, 4
        %s1608 = scalar_lea.vmem %s22, %s1607
      $region124: #{omics_forward.7} parent=119 // pred_fallthru
        _
      // Predicated region
      $region125: #{omics_forward.7} parent=119 // pred_check
        %p1609 = pneg %p557
      $region126: #{omics_forward.7} parent=119 // pred_check_branch
        %1611 = sbr.rel (%p1609) target = $region128
      $region127: #{omics_forward.7} parent=119 // pred_region
        %p1612 = scmp.lt.s32.totalorder %s36, 1
        %s1613 = scalar_select %p1612, %s36, 1
        %s1614 = smul.addr %s1613, 8
        %s1615 = scalar_lea.vmem %s23, %s1614
      $region128: #{omics_forward.7} parent=119 // pred_fallthru
        _
    $region120: #{omics_forward.7} parent=5 // pred_fallthru
      _
  $region6: #{omics_forward.7} parent=0 // loop_footer
    %s34 = sadd.s32 1, %s30
  $region7: #{omics_forward.7} parent=0 // loop_footer_branch
    %29 = sbr.rel target = $region3
  $region8: #{omics_forward.7} parent=0 // loop_exit
    _

// kernel: omics_forward.6
$region0: #{omics_forward.6}
  #allocation0 [shape = 'u32[]', space=smem, size = 0x4, offset = 0x4, fixed_abs, tag = 'smem constant byte address 0x4 - core index']
  #allocation1 [shape = 'u32[72,128]{1,0:T(1,128)}', space=vmem, size = 0x9000, scoped, tag = 'internal scratch']
  %s0 = inlined_call_operand.vmem [shape: f32[2,4,8], index: 0, kind: input, shape index: {}, may-alias: {0,22}]
  %s1 = inlined_call_operand.vmem [shape: f32[1,8,8], index: 1, kind: input, shape index: {}]
  %s2 = inlined_call_operand.vmem [shape: bf16[4,16], index: 2, kind: input, shape index: {}]
  %s3 = inlined_call_operand.vmem [shape: bf16[4,32], index: 3, kind: input, shape index: {}]
  %s4 = inlined_call_operand.vmem [shape: bf16[4,16], index: 4, kind: input, shape index: {}]
  %s5 = inlined_call_operand.vmem [shape: f32[1,16], index: 5, kind: input, shape index: {}]
  %s6 = inlined_call_operand.vmem [shape: bf16[16,4], index: 6, kind: input, shape index: {}]
  %s7 = inlined_call_operand.vmem [shape: f32[1,4], index: 7, kind: input, shape index: {}]
  %s8 = inlined_call_operand.vmem [shape: bf16[4,32], index: 8, kind: input, shape index: {}]
  %s9 = inlined_call_operand.vmem [shape: f32[1,32], index: 9, kind: input, shape index: {}]
  %s10 = inlined_call_operand.vmem [shape: bf16[16,4], index: 10, kind: input, shape index: {}]
  %s11 = inlined_call_operand.vmem [shape: f32[1,4], index: 11, kind: input, shape index: {}]
  %s12 = inlined_call_operand.vmem [shape: bf16[8,16], index: 12, kind: input, shape index: {}]
  %s13 = inlined_call_operand.vmem [shape: bf16[8,32], index: 13, kind: input, shape index: {}]
  %s14 = inlined_call_operand.vmem [shape: bf16[8,16], index: 14, kind: input, shape index: {}]
  %s15 = inlined_call_operand.vmem [shape: f32[1,16], index: 15, kind: input, shape index: {}]
  %s16 = inlined_call_operand.vmem [shape: bf16[16,8], index: 16, kind: input, shape index: {}]
  %s17 = inlined_call_operand.vmem [shape: f32[1,8], index: 17, kind: input, shape index: {}]
  %s18 = inlined_call_operand.vmem [shape: bf16[8,64], index: 18, kind: input, shape index: {}]
  %s19 = inlined_call_operand.vmem [shape: f32[1,64], index: 19, kind: input, shape index: {}]
  %s20 = inlined_call_operand.vmem [shape: bf16[32,8], index: 20, kind: input, shape index: {}]
  %s21 = inlined_call_operand.vmem [shape: f32[1,8], index: 21, kind: input, shape index: {}]
  %s22 = inlined_call_operand.vmem [shape: f32[2,4,8], index: 22, kind: output, shape index: {0}, may-alias: {0,22}]
  %s23 = inlined_call_operand.vmem [shape: f32[2,8,8], index: 23, kind: output, shape index: {1}]
  %24 = xla_tuple %s22, %s23
  %s25 = sld [smem:[#allocation0]]
  $region129: #{omics_forward.6} parent=0
    _
  %s27 = ssub.s32 1, %s25
  %s28 = scalar_select 0, %s27, %s25
  loop: start=0, step=1, limit=4
  $region2: #{omics_forward.6} parent=0 // loop_pre_header
    _
  $region3: #{omics_forward.6} parent=0 // loop_header
    %s30 = sphi 0, %s34
    %p31 = scmp.ge.s32.totalorder %s30, 4
    %s40 = sphi 0, %s42
    %s43 = sphi 0, %s40
    %s44 = sphi 0, %s43
    %s60 = sphi 0, %s44
    %s64 = sphi 0, %s64
    %s66 = sphi 0, %s64
    %s67 = sphi 0, %s66
    %s81 = sphi 0, %s67
    %s85 = sphi 0, %s85
    %s87 = sphi 0, %s85
    %s88 = sphi 0, %s87
    %s102 = sphi 0, %s88
    %s106 = sphi 0, %s106
    %s108 = sphi 0, %s106
    %s109 = sphi 0, %s108
    %s123 = sphi 0, %s109
    %s127 = sphi 0, %s127
    %s129 = sphi 0, %s127
    %s130 = sphi 0, %s129
    %s144 = sphi 0, %s130
    %s148 = sphi 0, %s148
    %s150 = sphi 0, %s148
    %s151 = sphi 0, %s150
    %s165 = sphi 0, %s151
    %s169 = sphi 0, %s169
    %s171 = sphi 0, %s169
    %s172 = sphi 0, %s171
    %s186 = sphi 0, %s172
    %s190 = sphi 0, %s190
    %s192 = sphi 0, %s190
    %s193 = sphi 0, %s192
    %s207 = sphi 0, %s193
    %s211 = sphi 0, %s211
    %s213 = sphi 0, %s211
    %s214 = sphi 0, %s213
    %s228 = sphi 0, %s214
    %s232 = sphi 0, %s232
    %s234 = sphi 0, %s232
    %s235 = sphi 0, %s234
    %s249 = sphi 0, %s235
    %s253 = sphi 0, %s253
    %s255 = sphi 0, %s253
    %s256 = sphi 0, %s255
    %s270 = sphi 0, %s256
    %s274 = sphi 0, %s274
    %s276 = sphi 0, %s274
    %s277 = sphi 0, %s276
    %s291 = sphi 0, %s277
    %s295 = sphi 0, %s295
    %s297 = sphi 0, %s295
    %s298 = sphi 0, %s297
    %s312 = sphi 0, %s298
    %s316 = sphi 0, %s316
    %s318 = sphi 0, %s316
    %s319 = sphi 0, %s318
    %s333 = sphi 0, %s319
    %s337 = sphi 0, %s337
    %s339 = sphi 0, %s337
    %s340 = sphi 0, %s339
    %s354 = sphi 0, %s340
    %s358 = sphi 0, %s358
    %s360 = sphi 0, %s358
    %s361 = sphi 0, %s360
    %s375 = sphi 0, %s361
    %s379 = sphi 0, %s379
    %s381 = sphi 0, %s379
    %s382 = sphi 0, %s381
    %s396 = sphi 0, %s382
    %s400 = sphi 0, %s400
    %s402 = sphi 0, %s400
    %s403 = sphi 0, %s402
    %s417 = sphi 0, %s403
    %s421 = sphi 0, %s421
    %s423 = sphi 0, %s421
    %s424 = sphi 0, %s423
    %s438 = sphi 0, %s424
    %s442 = sphi 0, %s442
    %s444 = sphi 0, %s442
    %s445 = sphi 0, %s444
    %s459 = sphi 0, %s445
    %s463 = sphi 0, %s463
    %s465 = sphi 0, %s463
    %s466 = sphi 0, %s465
    %s480 = sphi 0, %s466
    %s484 = sphi 0, %s484
    %s486 = sphi 0, %s484
    %s487 = sphi 0, %s486
    %s501 = sphi 0, %s487
    %s507 = sphi 0, %s509
    %s510 = sphi 0, %s507
    %s511 = sphi 0, %s510
    %s527 = sphi 0, %s511
    %s533 = sphi 0, %s535
    %s536 = sphi 0, %s533
    %s537 = sphi 0, %s536
    %s553 = sphi 0, %s537
  $region4: #{omics_forward.6} parent=0 // loop_header_branch
    %33 = sbr.rel (%p31) target = $region8
  $region5: #{omics_forward.6} parent=0 // loop_body
    %s35 = ssub.s32 %s30, 1
    %s36 = ssub.s32 %s30, 2
    %s37 = sadd.s32 %s30, 1
    %s38 = ssub.s32 %s30, %s37
    %p39 = scmp.eq.s32.totalorder %s38, 0
    %s41 = sadd.s32 %s40, 1
    %s42 = scalar_select %p39, %s40, %s41
    %p45 = pneg %p39
    %p46 = scmp.eq.s32.totalorder %s30, 1
    %p47 = por %p45, %p46
    %p48 = scmp.ne.s32.totalorder %s40, %s43
    %p49 = scmp.eq.s32.totalorder %s30, 0
    %p50 = por %p48, %p49
    %p51 = scmp.ne.s32.totalorder %s40, %s43
    %p52 = scmp.eq.s32.totalorder %s35, 1
    %p53 = por %p51, %p52
    %p54 = scmp.ne.s32.totalorder %s43, %s44
    %p55 = scmp.eq.s32.totalorder %s35, 0
    %p56 = por %p54, %p55
    %p57 = scmp.ne.s32.totalorder %s43, %s44
    %p58 = scmp.eq.s32.totalorder %s36, 1
    %p59 = por %p57, %p58
    %p61 = scmp.ne.s32.totalorder %s44, %s60
    %p62 = scmp.eq.s32.totalorder %s36, 0
    %p63 = por %p61, %p62
    %s65 = sadd.s32 %s64, 1
    %p68 = scmp.eq.s32.totalorder %s30, 1
    %p69 = scmp.ne.s32.totalorder %s64, %s66
    %p70 = scmp.eq.s32.totalorder %s30, 0
    %p71 = por %p69, %p70
    %p72 = scmp.ne.s32.totalorder %s64, %s66
    %p73 = scmp.eq.s32.totalorder %s35, 1
    %p74 = por %p72, %p73
    %p75 = scmp.ne.s32.totalorder %s66, %s67
    %p76 = scmp.eq.s32.totalorder %s35, 0
    %p77 = por %p75, %p76
    %p78 = scmp.ne.s32.totalorder %s66, %s67
    %p79 = scmp.eq.s32.totalorder %s36, 1
    %p80 = por %p78, %p79
    %p82 = scmp.ne.s32.totalorder %s67, %s81
    %p83 = scmp.eq.s32.totalorder %s36, 0
    %p84 = por %p82, %p83
    %s86 = sadd.s32 %s85, 1
    %p89 = scmp.eq.s32.totalorder %s30, 1
    %p90 = scmp.ne.s32.totalorder %s85, %s87
    %p91 = scmp.eq.s32.totalorder %s30, 0
    %p92 = por %p90, %p91
    %p93 = scmp.ne.s32.totalorder %s85, %s87
    %p94 = scmp.eq.s32.totalorder %s35, 1
    %p95 = por %p93, %p94
    %p96 = scmp.ne.s32.totalorder %s87, %s88
    %p97 = scmp.eq.s32.totalorder %s35, 0
    %p98 = por %p96, %p97
    %p99 = scmp.ne.s32.totalorder %s87, %s88
    %p100 = scmp.eq.s32.totalorder %s36, 1
    %p101 = por %p99, %p100
    %p103 = scmp.ne.s32.totalorder %s88, %s102
    %p104 = scmp.eq.s32.totalorder %s36, 0
    %p105 = por %p103, %p104
    %s107 = sadd.s32 %s106, 1
    %p110 = scmp.eq.s32.totalorder %s30, 1
    %p111 = scmp.ne.s32.totalorder %s106, %s108
    %p112 = scmp.eq.s32.totalorder %s30, 0
    %p113 = por %p111, %p112
    %p114 = scmp.ne.s32.totalorder %s106, %s108
    %p115 = scmp.eq.s32.totalorder %s35, 1
    %p116 = por %p114, %p115
    %p117 = scmp.ne.s32.totalorder %s108, %s109
    %p118 = scmp.eq.s32.totalorder %s35, 0
    %p119 = por %p117, %p118
    %p120 = scmp.ne.s32.totalorder %s108, %s109
    %p121 = scmp.eq.s32.totalorder %s36, 1
    %p122 = por %p120, %p121
    %p124 = scmp.ne.s32.totalorder %s109, %s123
    %p125 = scmp.eq.s32.totalorder %s36, 0
    %p126 = por %p124, %p125
    %s128 = sadd.s32 %s127, 1
    %p131 = scmp.eq.s32.totalorder %s30, 1
    %p132 = scmp.ne.s32.totalorder %s127, %s129
    %p133 = scmp.eq.s32.totalorder %s30, 0
    %p134 = por %p132, %p133
    %p135 = scmp.ne.s32.totalorder %s127, %s129
    %p136 = scmp.eq.s32.totalorder %s35, 1
    %p137 = por %p135, %p136
    %p138 = scmp.ne.s32.totalorder %s129, %s130
    %p139 = scmp.eq.s32.totalorder %s35, 0
    %p140 = por %p138, %p139
    %p141 = scmp.ne.s32.totalorder %s129, %s130
    %p142 = scmp.eq.s32.totalorder %s36, 1
    %p143 = por %p141, %p142
    %p145 = scmp.ne.s32.totalorder %s130, %s144
    %p146 = scmp.eq.s32.totalorder %s36, 0
    %p147 = por %p145, %p146
    %s149 = sadd.s32 %s148, 1
    %p152 = scmp.eq.s32.totalorder %s30, 1
    %p153 = scmp.ne.s32.totalorder %s148, %s150
    %p154 = scmp.eq.s32.totalorder %s30, 0
    %p155 = por %p153, %p154
    %p156 = scmp.ne.s32.totalorder %s148, %s150
    %p157 = scmp.eq.s32.totalorder %s35, 1
    %p158 = por %p156, %p157
    %p159 = scmp.ne.s32.totalorder %s150, %s151
    %p160 = scmp.eq.s32.totalorder %s35, 0
    %p161 = por %p159, %p160
    %p162 = scmp.ne.s32.totalorder %s150, %s151
    %p163 = scmp.eq.s32.totalorder %s36, 1
    %p164 = por %p162, %p163
    %p166 = scmp.ne.s32.totalorder %s151, %s165
    %p167 = scmp.eq.s32.totalorder %s36, 0
    %p168 = por %p166, %p167
    %s170 = sadd.s32 %s169, 1
    %p173 = scmp.eq.s32.totalorder %s30, 1
    %p174 = scmp.ne.s32.totalorder %s169, %s171
    %p175 = scmp.eq.s32.totalorder %s30, 0
    %p176 = por %p174, %p175
    %p177 = scmp.ne.s32.totalorder %s169, %s171
    %p178 = scmp.eq.s32.totalorder %s35, 1
    %p179 = por %p177, %p178
    %p180 = scmp.ne.s32.totalorder %s171, %s172
    %p181 = scmp.eq.s32.totalorder %s35, 0
    %p182 = por %p180, %p181
    %p183 = scmp.ne.s32.totalorder %s171, %s172
    %p184 = scmp.eq.s32.totalorder %s36, 1
    %p185 = por %p183, %p184
    %p187 = scmp.ne.s32.totalorder %s172, %s186
    %p188 = scmp.eq.s32.totalorder %s36, 0
    %p189 = por %p187, %p188
    %s191 = sadd.s32 %s190, 1
    %p194 = scmp.eq.s32.totalorder %s30, 1
    %p195 = scmp.ne.s32.totalorder %s190, %s192
    %p196 = scmp.eq.s32.totalorder %s30, 0
    %p197 = por %p195, %p196
    %p198 = scmp.ne.s32.totalorder %s190, %s192
    %p199 = scmp.eq.s32.totalorder %s35, 1
    %p200 = por %p198, %p199
    %p201 = scmp.ne.s32.totalorder %s192, %s193
    %p202 = scmp.eq.s32.totalorder %s35, 0
    %p203 = por %p201, %p202
    %p204 = scmp.ne.s32.totalorder %s192, %s193
    %p205 = scmp.eq.s32.totalorder %s36, 1
    %p206 = por %p204, %p205
    %p208 = scmp.ne.s32.totalorder %s193, %s207
    %p209 = scmp.eq.s32.totalorder %s36, 0
    %p210 = por %p208, %p209
    %s212 = sadd.s32 %s211, 1
    %p215 = scmp.eq.s32.totalorder %s30, 1
    %p216 = scmp.ne.s32.totalorder %s211, %s213
    %p217 = scmp.eq.s32.totalorder %s30, 0
    %p218 = por %p216, %p217
    %p219 = scmp.ne.s32.totalorder %s211, %s213
    %p220 = scmp.eq.s32.totalorder %s35, 1
    %p221 = por %p219, %p220
    %p222 = scmp.ne.s32.totalorder %s213, %s214
    %p223 = scmp.eq.s32.totalorder %s35, 0
    %p224 = por %p222, %p223
    %p225 = scmp.ne.s32.totalorder %s213, %s214
    %p226 = scmp.eq.s32.totalorder %s36, 1
    %p227 = por %p225, %p226
    %p229 = scmp.ne.s32.totalorder %s214, %s228
    %p230 = scmp.eq.s32.totalorder %s36, 0
    %p231 = por %p229, %p230
    %s233 = sadd.s32 %s232, 1
    %p236 = scmp.eq.s32.totalorder %s30, 1
    %p237 = scmp.ne.s32.totalorder %s232, %s234
    %p238 = scmp.eq.s32.totalorder %s30, 0
    %p239 = por %p237, %p238
    %p240 = scmp.ne.s32.totalorder %s232, %s234
    %p241 = scmp.eq.s32.totalorder %s35, 1
    %p242 = por %p240, %p241
    %p243 = scmp.ne.s32.totalorder %s234, %s235
    %p244 = scmp.eq.s32.totalorder %s35, 0
    %p245 = por %p243, %p244
    %p246 = scmp.ne.s32.totalorder %s234, %s235
    %p247 = scmp.eq.s32.totalorder %s36, 1
    %p248 = por %p246, %p247
    %p250 = scmp.ne.s32.totalorder %s235, %s249
    %p251 = scmp.eq.s32.totalorder %s36, 0
    %p252 = por %p250, %p251
    %s254 = sadd.s32 %s253, 1
    %p257 = scmp.eq.s32.totalorder %s30, 1
    %p258 = scmp.ne.s32.totalorder %s253, %s255
    %p259 = scmp.eq.s32.totalorder %s30, 0
    %p260 = por %p258, %p259
    %p261 = scmp.ne.s32.totalorder %s253, %s255
    %p262 = scmp.eq.s32.totalorder %s35, 1
    %p263 = por %p261, %p262
    %p264 = scmp.ne.s32.totalorder %s255, %s256
    %p265 = scmp.eq.s32.totalorder %s35, 0
    %p266 = por %p264, %p265
    %p267 = scmp.ne.s32.totalorder %s255, %s256
    %p268 = scmp.eq.s32.totalorder %s36, 1
    %p269 = por %p267, %p268
    %p271 = scmp.ne.s32.totalorder %s256, %s270
    %p272 = scmp.eq.s32.totalorder %s36, 0
    %p273 = por %p271, %p272
    %s275 = sadd.s32 %s274, 1
    %p278 = scmp.eq.s32.totalorder %s30, 1
    %p279 = scmp.ne.s32.totalorder %s274, %s276
    %p280 = scmp.eq.s32.totalorder %s30, 0
    %p281 = por %p279, %p280
    %p282 = scmp.ne.s32.totalorder %s274, %s276
    %p283 = scmp.eq.s32.totalorder %s35, 1
    %p284 = por %p282, %p283
    %p285 = scmp.ne.s32.totalorder %s276, %s277
    %p286 = scmp.eq.s32.totalorder %s35, 0
    %p287 = por %p285, %p286
    %p288 = scmp.ne.s32.totalorder %s276, %s277
    %p289 = scmp.eq.s32.totalorder %s36, 1
    %p290 = por %p288, %p289
    %p292 = scmp.ne.s32.totalorder %s277, %s291
    %p293 = scmp.eq.s32.totalorder %s36, 0
    %p294 = por %p292, %p293
    %s296 = sadd.s32 %s295, 1
    %p299 = scmp.eq.s32.totalorder %s30, 1
    %p300 = scmp.ne.s32.totalorder %s295, %s297
    %p301 = scmp.eq.s32.totalorder %s30, 0
    %p302 = por %p300, %p301
    %p303 = scmp.ne.s32.totalorder %s295, %s297
    %p304 = scmp.eq.s32.totalorder %s35, 1
    %p305 = por %p303, %p304
    %p306 = scmp.ne.s32.totalorder %s297, %s298
    %p307 = scmp.eq.s32.totalorder %s35, 0
    %p308 = por %p306, %p307
    %p309 = scmp.ne.s32.totalorder %s297, %s298
    %p310 = scmp.eq.s32.totalorder %s36, 1
    %p311 = por %p309, %p310
    %p313 = scmp.ne.s32.totalorder %s298, %s312
    %p314 = scmp.eq.s32.totalorder %s36, 0
    %p315 = por %p313, %p314
    %s317 = sadd.s32 %s316, 1
    %p320 = scmp.eq.s32.totalorder %s30, 1
    %p321 = scmp.ne.s32.totalorder %s316, %s318
    %p322 = scmp.eq.s32.totalorder %s30, 0
    %p323 = por %p321, %p322
    %p324 = scmp.ne.s32.totalorder %s316, %s318
    %p325 = scmp.eq.s32.totalorder %s35, 1
    %p326 = por %p324, %p325
    %p327 = scmp.ne.s32.totalorder %s318, %s319
    %p328 = scmp.eq.s32.totalorder %s35, 0
    %p329 = por %p327, %p328
    %p330 = scmp.ne.s32.totalorder %s318, %s319
    %p331 = scmp.eq.s32.totalorder %s36, 1
    %p332 = por %p330, %p331
    %p334 = scmp.ne.s32.totalorder %s319, %s333
    %p335 = scmp.eq.s32.totalorder %s36, 0
    %p336 = por %p334, %p335
    %s338 = sadd.s32 %s337, 1
    %p341 = scmp.eq.s32.totalorder %s30, 1
    %p342 = scmp.ne.s32.totalorder %s337, %s339
    %p343 = scmp.eq.s32.totalorder %s30, 0
    %p344 = por %p342, %p343
    %p345 = scmp.ne.s32.totalorder %s337, %s339
    %p346 = scmp.eq.s32.totalorder %s35, 1
    %p347 = por %p345, %p346
    %p348 = scmp.ne.s32.totalorder %s339, %s340
    %p349 = scmp.eq.s32.totalorder %s35, 0
    %p350 = por %p348, %p349
    %p351 = scmp.ne.s32.totalorder %s339, %s340
    %p352 = scmp.eq.s32.totalorder %s36, 1
    %p353 = por %p351, %p352
    %p355 = scmp.ne.s32.totalorder %s340, %s354
    %p356 = scmp.eq.s32.totalorder %s36, 0
    %p357 = por %p355, %p356
    %s359 = sadd.s32 %s358, 1
    %p362 = scmp.eq.s32.totalorder %s30, 1
    %p363 = scmp.ne.s32.totalorder %s358, %s360
    %p364 = scmp.eq.s32.totalorder %s30, 0
    %p365 = por %p363, %p364
    %p366 = scmp.ne.s32.totalorder %s358, %s360
    %p367 = scmp.eq.s32.totalorder %s35, 1
    %p368 = por %p366, %p367
    %p369 = scmp.ne.s32.totalorder %s360, %s361
    %p370 = scmp.eq.s32.totalorder %s35, 0
    %p371 = por %p369, %p370
    %p372 = scmp.ne.s32.totalorder %s360, %s361
    %p373 = scmp.eq.s32.totalorder %s36, 1
    %p374 = por %p372, %p373
    %p376 = scmp.ne.s32.totalorder %s361, %s375
    %p377 = scmp.eq.s32.totalorder %s36, 0
    %p378 = por %p376, %p377
    %s380 = sadd.s32 %s379, 1
    %p383 = scmp.eq.s32.totalorder %s30, 1
    %p384 = scmp.ne.s32.totalorder %s379, %s381
    %p385 = scmp.eq.s32.totalorder %s30, 0
    %p386 = por %p384, %p385
    %p387 = scmp.ne.s32.totalorder %s379, %s381
    %p388 = scmp.eq.s32.totalorder %s35, 1
    %p389 = por %p387, %p388
    %p390 = scmp.ne.s32.totalorder %s381, %s382
    %p391 = scmp.eq.s32.totalorder %s35, 0
    %p392 = por %p390, %p391
    %p393 = scmp.ne.s32.totalorder %s381, %s382
    %p394 = scmp.eq.s32.totalorder %s36, 1
    %p395 = por %p393, %p394
    %p397 = scmp.ne.s32.totalorder %s382, %s396
    %p398 = scmp.eq.s32.totalorder %s36, 0
    %p399 = por %p397, %p398
    %s401 = sadd.s32 %s400, 1
    %p404 = scmp.eq.s32.totalorder %s30, 1
    %p405 = scmp.ne.s32.totalorder %s400, %s402
    %p406 = scmp.eq.s32.totalorder %s30, 0
    %p407 = por %p405, %p406
    %p408 = scmp.ne.s32.totalorder %s400, %s402
    %p409 = scmp.eq.s32.totalorder %s35, 1
    %p410 = por %p408, %p409
    %p411 = scmp.ne.s32.totalorder %s402, %s403
    %p412 = scmp.eq.s32.totalorder %s35, 0
    %p413 = por %p411, %p412
    %p414 = scmp.ne.s32.totalorder %s402, %s403
    %p415 = scmp.eq.s32.totalorder %s36, 1
    %p416 = por %p414, %p415
    %p418 = scmp.ne.s32.totalorder %s403, %s417
    %p419 = scmp.eq.s32.totalorder %s36, 0
    %p420 = por %p418, %p419
    %s422 = sadd.s32 %s421, 1
    %p425 = scmp.eq.s32.totalorder %s30, 1
    %p426 = scmp.ne.s32.totalorder %s421, %s423
    %p427 = scmp.eq.s32.totalorder %s30, 0
    %p428 = por %p426, %p427
    %p429 = scmp.ne.s32.totalorder %s421, %s423
    %p430 = scmp.eq.s32.totalorder %s35, 1
    %p431 = por %p429, %p430
    %p432 = scmp.ne.s32.totalorder %s423, %s424
    %p433 = scmp.eq.s32.totalorder %s35, 0
    %p434 = por %p432, %p433
    %p435 = scmp.ne.s32.totalorder %s423, %s424
    %p436 = scmp.eq.s32.totalorder %s36, 1
    %p437 = por %p435, %p436
    %p439 = scmp.ne.s32.totalorder %s424, %s438
    %p440 = scmp.eq.s32.totalorder %s36, 0
    %p441 = por %p439, %p440
    %s443 = sadd.s32 %s442, 1
    %p446 = scmp.eq.s32.totalorder %s30, 1
    %p447 = scmp.ne.s32.totalorder %s442, %s444
    %p448 = scmp.eq.s32.totalorder %s30, 0
    %p449 = por %p447, %p448
    %p450 = scmp.ne.s32.totalorder %s442, %s444
    %p451 = scmp.eq.s32.totalorder %s35, 1
    %p452 = por %p450, %p451
    %p453 = scmp.ne.s32.totalorder %s444, %s445
    %p454 = scmp.eq.s32.totalorder %s35, 0
    %p455 = por %p453, %p454
    %p456 = scmp.ne.s32.totalorder %s444, %s445
    %p457 = scmp.eq.s32.totalorder %s36, 1
    %p458 = por %p456, %p457
    %p460 = scmp.ne.s32.totalorder %s445, %s459
    %p461 = scmp.eq.s32.totalorder %s36, 0
    %p462 = por %p460, %p461
    %s464 = sadd.s32 %s463, 1
    %p467 = scmp.eq.s32.totalorder %s30, 1
    %p468 = scmp.ne.s32.totalorder %s463, %s465
    %p469 = scmp.eq.s32.totalorder %s30, 0
    %p470 = por %p468, %p469
    %p471 = scmp.ne.s32.totalorder %s463, %s465
    %p472 = scmp.eq.s32.totalorder %s35, 1
    %p473 = por %p471, %p472
    %p474 = scmp.ne.s32.totalorder %s465, %s466
    %p475 = scmp.eq.s32.totalorder %s35, 0
    %p476 = por %p474, %p475
    %p477 = scmp.ne.s32.totalorder %s465, %s466
    %p478 = scmp.eq.s32.totalorder %s36, 1
    %p479 = por %p477, %p478
    %p481 = scmp.ne.s32.totalorder %s466, %s480
    %p482 = scmp.eq.s32.totalorder %s36, 0
    %p483 = por %p481, %p482
    %s485 = sadd.s32 %s484, 1
    %p488 = scmp.eq.s32.totalorder %s30, 1
    %p489 = scmp.ne.s32.totalorder %s484, %s486
    %p490 = scmp.eq.s32.totalorder %s30, 0
    %p491 = por %p489, %p490
    %p492 = scmp.ne.s32.totalorder %s484, %s486
    %p493 = scmp.eq.s32.totalorder %s35, 1
    %p494 = por %p492, %p493
    %p495 = scmp.ne.s32.totalorder %s486, %s487
    %p496 = scmp.eq.s32.totalorder %s35, 0
    %p497 = por %p495, %p496
    %p498 = scmp.ne.s32.totalorder %s486, %s487
    %p499 = scmp.eq.s32.totalorder %s36, 1
    %p500 = por %p498, %p499
    %p502 = scmp.ne.s32.totalorder %s487, %s501
    %p503 = scmp.eq.s32.totalorder %s36, 0
    %p504 = por %p502, %p503
    %s505 = ssub.s32 %s30, %s37
    %p506 = scmp.eq.s32.totalorder %s505, 0
    %s508 = sadd.s32 %s507, 1
    %s509 = scalar_select %p506, %s507, %s508
    %p512 = pneg %p506
    %p513 = scmp.eq.s32.totalorder %s30, 1
    %p514 = por %p512, %p513
    %p515 = scmp.ne.s32.totalorder %s507, %s510
    %p516 = scmp.eq.s32.totalorder %s30, 0
    %p517 = por %p515, %p516
    %p518 = scmp.ne.s32.totalorder %s507, %s510
    %p519 = scmp.eq.s32.totalorder %s35, 1
    %p520 = por %p518, %p519
    %p521 = scmp.ne.s32.totalorder %s510, %s511
    %p522 = scmp.eq.s32.totalorder %s35, 0
    %p523 = por %p521, %p522
    %p524 = scmp.ne.s32.totalorder %s510, %s511
    %p525 = scmp.eq.s32.totalorder %s36, 1
    %p526 = por %p524, %p525
    %p528 = scmp.ne.s32.totalorder %s511, %s527
    %p529 = scmp.eq.s32.totalorder %s36, 0
    %p530 = por %p528, %p529
    %s531 = ssub.s32 %s30, %s37
    %p532 = scmp.eq.s32.totalorder %s531, 0
    %s534 = sadd.s32 %s533, 1
    %s535 = scalar_select %p532, %s533, %s534
    %p538 = pneg %p532
    %p539 = scmp.eq.s32.totalorder %s30, 1
    %p540 = por %p538, %p539
    %p541 = scmp.ne.s32.totalorder %s533, %s536
    %p542 = scmp.eq.s32.totalorder %s30, 0
    %p543 = por %p541, %p542
    %p544 = scmp.ne.s32.totalorder %s533, %s536
    %p545 = scmp.eq.s32.totalorder %s35, 1
    %p546 = por %p544, %p545
    %p547 = scmp.ne.s32.totalorder %s536, %s537
    %p548 = scmp.eq.s32.totalorder %s35, 0
    %p549 = por %p547, %p548
    %p550 = scmp.ne.s32.totalorder %s536, %s537
    %p551 = scmp.eq.s32.totalorder %s36, 1
    %p552 = por %p550, %p551
    %p554 = scmp.ne.s32.totalorder %s537, %s553
    %p555 = scmp.eq.s32.totalorder %s36, 0
    %p556 = por %p554, %p555
    %p557 = scmp.le.s32.totalorder 1, %s30
    %p558 = scmp.lt.s32.totalorder %s30, 3
    %p559 = pnand %p557, %p558
    %p560 = pneg %p559
    // Predicated region
    $region9: #{omics_forward.6} parent=5 // pred_check
      _
    $region10: #{omics_forward.6} parent=5 // pred_check_branch
      %562 = sbr.rel (%p559) target = $region12
    $region11: #{omics_forward.6} parent=5 // pred_region
      %s563 = ssub.s32 %s30, 1
      // Predicated region
      $region13: #{omics_forward.6} parent=11 // pred_check
        %p564 = pneg %p77
      $region14: #{omics_forward.6} parent=11 // pred_check_branch
        %566 = sbr.rel (%p564) target = $region16
      $region15: #{omics_forward.6} parent=11 // pred_region
        _
      $region16: #{omics_forward.6} parent=11 // pred_fallthru
        _
      // Predicated region
      $region17: #{omics_forward.6} parent=11 // pred_check
        %p567 = pneg %p98
      $region18: #{omics_forward.6} parent=11 // pred_check_branch
        %569 = sbr.rel (%p567) target = $region20
      $region19: #{omics_forward.6} parent=11 // pred_region
        _
      $region20: #{omics_forward.6} parent=11 // pred_fallthru
        _
      // Predicated region
      $region21: #{omics_forward.6} parent=11 // pred_check
        %p570 = pneg %p119
      $region22: #{omics_forward.6} parent=11 // pred_check_branch
        %572 = sbr.rel (%p570) target = $region24
      $region23: #{omics_forward.6} parent=11 // pred_region
        _
      $region24: #{omics_forward.6} parent=11 // pred_fallthru
        _
      // Predicated region
      $region25: #{omics_forward.6} parent=11 // pred_check
        %p573 = pneg %p140
      $region26: #{omics_forward.6} parent=11 // pred_check_branch
        %575 = sbr.rel (%p573) target = $region28
      $region27: #{omics_forward.6} parent=11 // pred_region
        _
      $region28: #{omics_forward.6} parent=11 // pred_fallthru
        _
      // Predicated region
      $region29: #{omics_forward.6} parent=11 // pred_check
        %p576 = pneg %p161
      $region30: #{omics_forward.6} parent=11 // pred_check_branch
        %578 = sbr.rel (%p576) target = $region32
      $region31: #{omics_forward.6} parent=11 // pred_region
        _
      $region32: #{omics_forward.6} parent=11 // pred_fallthru
        _
      // Predicated region
      $region33: #{omics_forward.6} parent=11 // pred_check
        %p579 = pneg %p182
      $region34: #{omics_forward.6} parent=11 // pred_check_branch
        %581 = sbr.rel (%p579) target = $region36
      $region35: #{omics_forward.6} parent=11 // pred_region
        _
      $region36: #{omics_forward.6} parent=11 // pred_fallthru
        _
      // Predicated region
      $region37: #{omics_forward.6} parent=11 // pred_check
        %p582 = pneg %p203
      $region38: #{omics_forward.6} parent=11 // pred_check_branch
        %584 = sbr.rel (%p582) target = $region40
      $region39: #{omics_forward.6} parent=11 // pred_region
        _
      $region40: #{omics_forward.6} parent=11 // pred_fallthru
        _
      // Predicated region
      $region41: #{omics_forward.6} parent=11 // pred_check
        %p585 = pneg %p224
      $region42: #{omics_forward.6} parent=11 // pred_check_branch
        %587 = sbr.rel (%p585) target = $region44
      $region43: #{omics_forward.6} parent=11 // pred_region
        _
      $region44: #{omics_forward.6} parent=11 // pred_fallthru
        _
      // Predicated region
      $region45: #{omics_forward.6} parent=11 // pred_check
        %p588 = pneg %p245
      $region46: #{omics_forward.6} parent=11 // pred_check_branch
        %590 = sbr.rel (%p588) target = $region48
      $region47: #{omics_forward.6} parent=11 // pred_region
        _
      $region48: #{omics_forward.6} parent=11 // pred_fallthru
        _
      // Predicated region
      $region49: #{omics_forward.6} parent=11 // pred_check
        %p591 = pneg %p266
      $region50: #{omics_forward.6} parent=11 // pred_check_branch
        %593 = sbr.rel (%p591) target = $region52
      $region51: #{omics_forward.6} parent=11 // pred_region
        _
      $region52: #{omics_forward.6} parent=11 // pred_fallthru
        _
      // Predicated region
      $region53: #{omics_forward.6} parent=11 // pred_check
        %p594 = pneg %p287
      $region54: #{omics_forward.6} parent=11 // pred_check_branch
        %596 = sbr.rel (%p594) target = $region56
      $region55: #{omics_forward.6} parent=11 // pred_region
        _
      $region56: #{omics_forward.6} parent=11 // pred_fallthru
        _
      // Predicated region
      $region57: #{omics_forward.6} parent=11 // pred_check
        %p597 = pneg %p308
      $region58: #{omics_forward.6} parent=11 // pred_check_branch
        %599 = sbr.rel (%p597) target = $region60
      $region59: #{omics_forward.6} parent=11 // pred_region
        _
      $region60: #{omics_forward.6} parent=11 // pred_fallthru
        _
      // Predicated region
      $region61: #{omics_forward.6} parent=11 // pred_check
        %p600 = pneg %p329
      $region62: #{omics_forward.6} parent=11 // pred_check_branch
        %602 = sbr.rel (%p600) target = $region64
      $region63: #{omics_forward.6} parent=11 // pred_region
        _
      $region64: #{omics_forward.6} parent=11 // pred_fallthru
        _
      // Predicated region
      $region65: #{omics_forward.6} parent=11 // pred_check
        %p603 = pneg %p350
      $region66: #{omics_forward.6} parent=11 // pred_check_branch
        %605 = sbr.rel (%p603) target = $region68
      $region67: #{omics_forward.6} parent=11 // pred_region
        _
      $region68: #{omics_forward.6} parent=11 // pred_fallthru
        _
      // Predicated region
      $region69: #{omics_forward.6} parent=11 // pred_check
        %p606 = pneg %p371
      $region70: #{omics_forward.6} parent=11 // pred_check_branch
        %608 = sbr.rel (%p606) target = $region72
      $region71: #{omics_forward.6} parent=11 // pred_region
        _
      $region72: #{omics_forward.6} parent=11 // pred_fallthru
        _
      // Predicated region
      $region73: #{omics_forward.6} parent=11 // pred_check
        %p609 = pneg %p392
      $region74: #{omics_forward.6} parent=11 // pred_check_branch
        %611 = sbr.rel (%p609) target = $region76
      $region75: #{omics_forward.6} parent=11 // pred_region
        _
      $region76: #{omics_forward.6} parent=11 // pred_fallthru
        _
      // Predicated region
      $region77: #{omics_forward.6} parent=11 // pred_check
        %p612 = pneg %p413
      $region78: #{omics_forward.6} parent=11 // pred_check_branch
        %614 = sbr.rel (%p612) target = $region80
      $region79: #{omics_forward.6} parent=11 // pred_region
        _
      $region80: #{omics_forward.6} parent=11 // pred_fallthru
        _
      // Predicated region
      $region81: #{omics_forward.6} parent=11 // pred_check
        %p615 = pneg %p434
      $region82: #{omics_forward.6} parent=11 // pred_check_branch
        %617 = sbr.rel (%p615) target = $region84
      $region83: #{omics_forward.6} parent=11 // pred_region
        _
      $region84: #{omics_forward.6} parent=11 // pred_fallthru
        _
      // Predicated region
      $region85: #{omics_forward.6} parent=11 // pred_check
        %p618 = pneg %p455
      $region86: #{omics_forward.6} parent=11 // pred_check_branch
        %620 = sbr.rel (%p618) target = $region88
      $region87: #{omics_forward.6} parent=11 // pred_region
        _
      $region88: #{omics_forward.6} parent=11 // pred_fallthru
        _
      // Predicated region
      $region89: #{omics_forward.6} parent=11 // pred_check
        %p621 = pneg %p476
      $region90: #{omics_forward.6} parent=11 // pred_check_branch
        %623 = sbr.rel (%p621) target = $region92
      $region91: #{omics_forward.6} parent=11 // pred_region
        _
      $region92: #{omics_forward.6} parent=11 // pred_fallthru
        _
      // Predicated region
      $region93: #{omics_forward.6} parent=11 // pred_check
        %p624 = pneg %p497
      $region94: #{omics_forward.6} parent=11 // pred_check_branch
        %626 = sbr.rel (%p624) target = $region96
      $region95: #{omics_forward.6} parent=11 // pred_region
        _
      $region96: #{omics_forward.6} parent=11 // pred_fallthru
        _
    $region12: #{omics_forward.6} parent=5 // pred_fallthru
      _
    %p627 = scmp.lt.s32.totalorder %s30, 2
    // Predicated region
    $region97: #{omics_forward.6} parent=5 // pred_check
      %p628 = pneg %p627
    $region98: #{omics_forward.6} parent=5 // pred_check_branch
      %630 = sbr.rel (%p628) target = $region100
    $region99: #{omics_forward.6} parent=5 // pred_region
      // Predicated region
      $region101: #{omics_forward.6} parent=99 // pred_check
        %p631 = pneg %p50
      $region102: #{omics_forward.6} parent=99 // pred_check_branch
        %633 = sbr.rel (%p631) target = $region104
      $region103: #{omics_forward.6} parent=99 // pred_region
        %p634 = scmp.lt.s32.totalorder %s30, 1
        %s635 = scalar_select %p634, %s30, 1
        %s636 = smul.addr %s635, 4
        %s637 = scalar_lea.vmem %s0, %s636
      $region104: #{omics_forward.6} parent=99 // pred_fallthru
        _
    $region100: #{omics_forward.6} parent=5 // pred_fallthru
      _
    %p638 = scmp.le.s32.totalorder 1, %s30
    %p639 = scmp.lt.s32.totalorder %s30, 3
    %p640 = pnand %p638, %p639
    %p641 = pneg %p640
    // Predicated region
    $region105: #{omics_forward.6} parent=5 // pred_check
      _
    $region106: #{omics_forward.6} parent=5 // pred_check_branch
      %643 = sbr.rel (%p640) target = $region108
    $region107: #{omics_forward.6} parent=5 // pred_region
      %s644 = ssub.s32 %s30, 1
      %p645 = scmp.lt.s32.totalorder %s35, 1
      %s646 = scalar_select %p645, %s35, 1
      %s647 = smul.addr %s646, 4
      %s648 = scalar_lea.vmem %s0, %s647
      %p649 = pneg %p56
      %p650 = pneg %p53
      %p651 = pneg %p77
      %p652 = pneg %p74
      %p653 = pneg %p98
      %p654 = pneg %p95
      %p655 = pneg %p119
      %p656 = pneg %p116
      %p657 = pneg %p140
      %p658 = pneg %p137
      %p659 = pneg %p161
      %p660 = pneg %p158
      %p661 = pneg %p182
      %p662 = pneg %p179
      %p663 = pneg %p203
      %p664 = pneg %p200
      %p665 = pneg %p224
      %p666 = pneg %p221
      %p667 = pneg %p245
      %p668 = pneg %p242
      %p669 = pneg %p266
      %p670 = pneg %p263
      %p671 = pneg %p287
      %p672 = pneg %p284
      %p673 = pneg %p308
      %p674 = pneg %p305
      %p675 = pneg %p329
      %p676 = pneg %p326
      %p677 = pneg %p350
      %p678 = pneg %p347
      %p679 = pneg %p371
      %p680 = pneg %p368
      %p681 = pneg %p392
      %p682 = pneg %p389
      %p683 = pneg %p413
      %p684 = pneg %p410
      %p685 = pneg %p434
      %p686 = pneg %p431
      %p687 = pneg %p455
      %p688 = pneg %p452
      %p689 = pneg %p476
      %p690 = pneg %p473
      %p691 = pneg %p497
      %p692 = pneg %p494
      %p693 = pneg %p523
      %p694 = pneg %p520
      %p695 = scmp.lt.s32.totalorder %s35, 1
      %s696 = scalar_select %p695, %s35, 1
      %s697 = smul.addr %s696, 4
      %s698 = scalar_lea.vmem %s22, %s697
      %p699 = pneg %p549
      %p700 = pneg %p546
      %p701 = scmp.lt.s32.totalorder %s35, 1
      %s702 = scalar_select %p701, %s35, 1
      %s703 = smul.addr %s702, 8
      %s704 = scalar_lea.vmem %s23, %s703
      %p705 = scmp.lt.s32.totalorder %s35, 1
      %s706 = scalar_select %p705, %s35, 1
      %s707 = smul.addr %s706, 4
      %s708 = scalar_lea.vmem %s0, %s707
      %p709 = scmp.lt.s32.totalorder %s35, 1
      %s710 = scalar_select %p709, %s35, 1
      %s711 = smul.addr %s710, 4
      %s712 = scalar_lea.vmem %s22, %s711
      %p713 = scmp.lt.s32.totalorder %s35, 1
      %s714 = scalar_select %p713, %s35, 1
      %s715 = smul.addr %s714, 8
      %s716 = scalar_lea.vmem %s23, %s715
      %v718 = vld [vmem:[%s708] sm:$0xf]
      %v719 = vld [vmem:[%s1] sm:$0xff]
      %720 = vxpose.xlu0.b32.start [1/16] %v718, 128
      %721 = vxpose.xlu0.b32.cont [2/16] 0.0, 128
      %722 = vxpose.xlu0.b32.cont [3/16] 0.0, 128
      %723 = vxpose.xlu0.b32.cont [4/16] 0.0, 128
      %724 = vxpose.xlu0.b32.cont [5/16] 0.0, 128
      %725 = vxpose.xlu0.b32.cont [6/16] 0.0, 128
      %726 = vxpose.xlu0.b32.cont [7/16] 0.0, 128
      %727 = vxpose.xlu0.b32.cont [8/16] 0.0, 128
      %728 = vxpose.xlu0.b32.cont [9/16] 0.0, 128
      %729 = vxpose.xlu0.b32.cont [10/16] 0.0, 128
      %730 = vxpose.xlu0.b32.cont [11/16] 0.0, 128
      %731 = vxpose.xlu0.b32.cont [12/16] 0.0, 128
      %732 = vxpose.xlu0.b32.cont [13/16] 0.0, 128
      %733 = vxpose.xlu0.b32.cont [14/16] 0.0, 128
      %734 = vxpose.xlu0.b32.cont [15/16] 0.0, 128
      %735 = vxpose.xlu0.b32.end [16/16] 0.0, 128
      %v736 = vpop.trf.xlu0
      %v737 = vpop.trf.xlu0
      %v738 = vpop.trf.xlu0
      %v739 = vpop.trf.xlu0
      %v740 = vpop.trf.xlu0
      %v741 = vpop.trf.xlu0
      %v742 = vpop.trf.xlu0
      %v743 = vpop.trf.xlu0
      %v744 = vpop.trf.xlu0
      %v745 = vpop.trf.xlu0
      %v746 = vpop.trf.xlu0
      %v747 = vpop.trf.xlu0
      %v748 = vpop.trf.xlu0
      %v749 = vpop.trf.xlu0
      %v750 = vpop.trf.xlu0
      %v751 = vpop.trf.xlu0
      %v752 = vld [vmem:[%s2] sm:$0x3]
      %v753 = vld [vmem:[%s3] sm:$0x3]
      %v754 = vld [vmem:[%s4] sm:$0x3]
      %v755 = vld [vmem:[%s5] sm:$0x1]
      %v756 = vld [vmem:[%s6] sm:$0xf]
      %v757 = vld [vmem:[%s6 + $0x4] sm:$0xf]
      %v758 = vld [vmem:[%s7] sm:$0x1]
      %v759 = vpack.c.bf16 %v736, %v736
      %vm760 = vcmask 31744
      %v762 = vsel %vm760, %v759, 0
      %vm764 = vcmask 1041408
      %v766 = vsel %vm764, %v753, 0
      %768 = vmatpush.bf16.msra.mxu0 0
      %769 = vmatpush.bf16.msra.mxu0 0
      %770 = vmatpush.bf16.msra.mxu0 0
      %771 = vmatpush.bf16.msra.mxu0 0
      %772 = vmatpush.bf16.msra.mxu0 0
      %773 = vmatpush.bf16.msra.mxu0 0
      %774 = vmatpush.bf16.msra.mxu0 0
      %775 = vmatpush.bf16.msra.mxu0 %v766
      %776 = vmatmul.bf16.gmra.mxu0 %v762
      %v777 = vpop.f32.mrf.mxu0
      %v778 = vadd.f32 0.0, %v777
      %v779 = vpop.f32.mrf.mxu0
      %780 = vdwg.mxu0
      %v781 = vpack.c.bf16 %v778, %v778
      %v783 = vsel %vm764, %v752, 0
      %785 = vmatpush.bf16.msra.mxu0 0
      %786 = vmatpush.bf16.msra.mxu0 0
      %787 = vmatpush.bf16.msra.mxu0 0
      %788 = vmatpush.bf16.msra.mxu0 0
      %789 = vmatpush.bf16.msra.mxu0 0
      %790 = vmatpush.bf16.msra.mxu0 0
      %791 = vmatpush.bf16.msra.mxu0 0
      %792 = vmatpush.bf16.msra.mxu0 %v783
      %793 = vmatmul.bf16.gmra.mxu0 %v762
      %v794 = vpop.f32.mrf.mxu0
      %v795 = vadd.f32 0.0, %v794
      %v796 = vpop.f32.mrf.mxu0
      %797 = vdwg.mxu0
      %v799 = vperm.slane %v755, 0
      %v802 = vsel %vm764, %v754, 0
      %804 = vmatpush.bf16.msra.mxu0 0
      %805 = vmatpush.bf16.msra.mxu0 0
      %806 = vmatpush.bf16.msra.mxu0 0
      %807 = vmatpush.bf16.msra.mxu0 0
      %808 = vmatpush.bf16.msra.mxu0 0
      %809 = vmatpush.bf16.msra.mxu0 0
      %810 = vmatpush.bf16.msra.mxu0 0
      %811 = vmatpush.bf16.msra.mxu0 %v802
      %812 = vmatmul.bf16.gmra.mxu0 %v762
      %v813 = vpop.f32.mrf.mxu0
      %v814 = vadd.f32 %v799, %v813
      %v815 = vpop.f32.mrf.mxu0
      %816 = vdwg.mxu0
      %v817 = vxor.u32 %v814, 2147483648
      %v818 = vmul.f32 %v817, 1.442695
      %v819 = vpow.pop %v818
      %v820 = vadd.f32 %v819, 1.0
      %v821 = vrcp.pop %v820
      %v822 = vmul.f32 %v820, %v821
      %v823 = vsub.f32 1.0, %v822
      %v824 = vmul.f32 %v821, %v823
      %v825 = vadd.f32 %v821, %v824
      %vm826 = vweird.f32 %v820
      %vm827 = vweird.f32 %v821
      %vm828 = vmor %vm826, %vm827
      %v829 = vsel %vm828, %v821, %v825
      %v830 = vand.u32 2147483647, %v820
      %vm831 = vcmp.eq.f32.partialorder %v830, 8.507059e+37
      %v832 = vand.u32 %v820, 2147483648
      %v833 = vor.u32 1.1754944e-38, %v832
      %v834 = vsel %vm831, %v833, %v829
      %v835 = vmul.f32 1.0, %v834
      %v836 = vpack.c.bf16 %v795, %v795
      %vm837 = vcmask 64512
      %v839 = vsel %vm837, %v836, 0
      %v842 = vsel %vm837, %v781, 0
      %844 = vmatpush.bf16.xpose.msra.mxu0 0
      %845 = vmatpush.bf16.xpose.msra.mxu0 0
      %846 = vmatpush.bf16.xpose.msra.mxu0 0
      %847 = vmatpush.bf16.xpose.msra.mxu0 0
      %848 = vmatpush.bf16.xpose.msra.mxu0 0
      %849 = vmatpush.bf16.xpose.msra.mxu0 0
      %850 = vmatpush.bf16.xpose.msra.mxu0 0
      %851 = vmatpush.bf16.xpose.msra.mxu0 %v842
      %852 = vmatmul.bf16.gmra.mxu0 %v839
      %v853 = vpop.f32.mrf.mxu0
      %v854 = vadd.f32 %v719, %v853
      %v855 = vpop.f32.mrf.mxu0
      %856 = vdwg.mxu0
      %v857 = vsel %vm837, %v854, -inf
      %858 = vmax.xlane.f32.xlu0 %v857
      %v859 = vpop.xlane.xlu0 %858
      %v860 = vsub.f32 %v854, %v859
      %v861 = vmul.f32 %v860, 1.442695
      %v862 = vpow.pop %v861
      %v863 = vsel %vm837, %v862, 0.0
      %864 = vadd.xlane.f32.xlu0 %v863
      %v865 = vpop.xlane.xlu0 %864
      %v866 = vrcp.pop %v865
      %v867 = vmul.f32 %v862, %v866
      %v868 = vpack.c.bf16 %v867, %v867
      %v870 = vunpack.c.l.b16 %v781
      %v871 = vpack.c.b16 %v870, %v870
      %872 = vrot.lane.b32.xlu0 %v871, 112
      %v873 = vpop.permute.xlu0 %872
      %v875 = vsel %vm837, %v868, 0
      %vm877 = vcmask 1043456
      %v879 = vsel %vm877, %v873, 0
      %881 = vmatpush.bf16.msra.mxu0 0
      %882 = vmatpush.bf16.msra.mxu0 0
      %883 = vmatpush.bf16.msra.mxu0 0
      %884 = vmatpush.bf16.msra.mxu0 0
      %885 = vmatpush.bf16.msra.mxu0 0
      %886 = vmatpush.bf16.msra.mxu0 0
      %887 = vmatpush.bf16.msra.mxu0 0
      %888 = vmatpush.bf16.msra.mxu0 %v879
      %889 = vmatmul.bf16.gmra.mxu0 %v875
      %v890 = vpop.f32.mrf.mxu0
      %v891 = vadd.f32 0.0, %v890
      %v892 = vpop.f32.mrf.mxu0
      %893 = vdwg.mxu0
      %895 = vrot.lane.b32.xlu0 %v836, 120
      %v896 = vpop.permute.xlu0 %895
      %897 = vrot.lane.b32.xlu0 %v871, 120
      %v898 = vpop.permute.xlu0 %897
      %v900 = vsel %vm837, %v896, 0
      %v903 = vsel %vm837, %v898, 0
      %905 = vmatpush.bf16.xpose.msra.mxu0 0
      %906 = vmatpush.bf16.xpose.msra.mxu0 0
      %907 = vmatpush.bf16.xpose.msra.mxu0 0
      %908 = vmatpush.bf16.xpose.msra.mxu0 0
      %909 = vmatpush.bf16.xpose.msra.mxu0 0
      %910 = vmatpush.bf16.xpose.msra.mxu0 0
      %911 = vmatpush.bf16.xpose.msra.mxu0 0
      %912 = vmatpush.bf16.xpose.msra.mxu0 %v903
      %913 = vmatmul.bf16.gmra.mxu0 %v900
      %v914 = vpop.f32.mrf.mxu0
      %v915 = vadd.f32 %v719, %v914
      %v916 = vpop.f32.mrf.mxu0
      %917 = vdwg.mxu0
      %v918 = vsel %vm837, %v915, -inf
      %919 = vmax.xlane.f32.xlu0 %v918
      %v920 = vpop.xlane.xlu0 %919
      %v921 = vsub.f32 %v915, %v920
      %v922 = vmul.f32 %v921, 1.442695
      %v923 = vpow.pop %v922
      %v924 = vsel %vm837, %v923, 0.0
      %925 = vadd.xlane.f32.xlu0 %v924
      %v926 = vpop.xlane.xlu0 %925
      %v927 = vrcp.pop %v926
      %v928 = vmul.f32 %v923, %v927
      %v929 = vpack.c.bf16 %v928, %v928
      %930 = vrot.lane.b32.xlu0 %v871, 104
      %v931 = vpop.permute.xlu0 %930
      %v933 = vsel %vm837, %v929, 0
      %v936 = vsel %vm877, %v931, 0
      %938 = vmatpush.bf16.msra.mxu0 0
      %939 = vmatpush.bf16.msra.mxu0 0
      %940 = vmatpush.bf16.msra.mxu0 0
      %941 = vmatpush.bf16.msra.mxu0 0
      %942 = vmatpush.bf16.msra.mxu0 0
      %943 = vmatpush.bf16.msra.mxu0 0
      %944 = vmatpush.bf16.msra.mxu0 0
      %945 = vmatpush.bf16.msra.mxu0 %v936
      %946 = vmatmul.bf16.gmra.mxu0 %v933
      %v947 = vpop.f32.mrf.mxu0
      %v948 = vadd.f32 0.0, %v947
      %v949 = vpop.f32.mrf.mxu0
      %950 = vdwg.mxu0
      %952 = vrot.lane.b32.xlu0 %v948, 8
      %v953 = vpop.permute.xlu0 %952
      %v955 = vsel %vm837, %v891, %v953
      %v956 = vmul.f32 %v955, %v835
      %v957 = vpack.c.bf16 %v956, %v956
      %v959 = vperm.slane %v758, 0
      %v963 = vunpack.c.l.b16 %v756
      %v964 = vunpack.c.l.b16 %v757
      %v965 = vpack.c.b16 %v964, %v963
      %vm967 = vcmask 130048
      %v969 = vsel %vm967, %v957, 0
      %971 = vmatpush.bf16.msra.mxu0 0
      %972 = vmatpush.bf16.msra.mxu0 0
      %973 = vmatpush.bf16.msra.mxu0 0
      %974 = vmatpush.bf16.msra.mxu0 0
      %975 = vmatpush.bf16.msra.mxu0 0
      %976 = vmatpush.bf16.msra.mxu0 0
      %977 = vmatpush.bf16.msra.mxu0 0
      %978 = vmatpush.bf16.msra.mxu0 %v965
      %979 = vmatmul.bf16.gmra.mxu0 %v969
      %v980 = vpop.f32.mrf.mxu0
      %v981 = vadd.f32 %v959, %v980
      %v982 = vpop.f32.mrf.mxu0
      %983 = vdwg.mxu0
      %v984 = vadd.f32 %v981, %v736
      %v985 = vpack.c.bf16 %v984, %v984
      %v986 = vld [vmem:[%s8] sm:$0x3]
      %v987 = vld [vmem:[%s9] sm:$0x1]
      %v989 = vperm.slane %v987, 0
      %v992 = vsel %vm760, %v985, 0
      %v995 = vsel %vm764, %v986, 0
      %997 = vmatpush.bf16.msra.mxu0 0
      %998 = vmatpush.bf16.msra.mxu0 0
      %999 = vmatpush.bf16.msra.mxu0 0
      %1000 = vmatpush.bf16.msra.mxu0 0
      %1001 = vmatpush.bf16.msra.mxu0 0
      %1002 = vmatpush.bf16.msra.mxu0 0
      %1003 = vmatpush.bf16.msra.mxu0 0
      %1004 = vmatpush.bf16.msra.mxu0 %v995
      %1005 = vmatmul.bf16.gmra.mxu0 %v992
      %v1006 = vpop.f32.mrf.mxu0
      %v1007 = vadd.f32 %v989, %v1006
      %v1008 = vpop.f32.mrf.mxu0
      %1009 = vdwg.mxu0
      %1010 = vst [vmem:[#allocation1] ss:$4 sm:$0xff] %v986
      %v1011 = vld.sshfl [vmem:[#allocation1] sm:$0xff pattern:$0x73625140]
      %1013 = vrot.lane.b32.xlu0 %v1011, 112
      %v1014 = vpop.permute.xlu0 %1013
      %1015 = vrot.lane.b32.xlu0 %v989, 112
      %v1016 = vpop.permute.xlu0 %1015
      %v1019 = vsel %vm764, %v1014, 0
      %1021 = vmatpush.bf16.msra.mxu0 0
      %1022 = vmatpush.bf16.msra.mxu0 0
      %1023 = vmatpush.bf16.msra.mxu0 0
      %1024 = vmatpush.bf16.msra.mxu0 0
      %1025 = vmatpush.bf16.msra.mxu0 0
      %1026 = vmatpush.bf16.msra.mxu0 0
      %1027 = vmatpush.bf16.msra.mxu0 0
      %1028 = vmatpush.bf16.msra.mxu0 %v1019
      %1029 = vmatmul.bf16.gmra.mxu0 %v992
      %v1030 = vpop.f32.mrf.mxu0
      %v1031 = vadd.f32 %v1016, %v1030
      %v1032 = vpop.f32.mrf.mxu0
      %1033 = vdwg.mxu0
      %v1034 = vmul.f32 %v1031, 0.5
      %v1035 = vmul.f32 %v1031, 0.70710677
      %v1036 = vmul.f32 %v1035, %v1035
      %v1037 = vmin.f32 16.0, %v1036
      %v1038 = vmul.f32 %v1037, 2.1237322e-06
      %v1039 = vadd.f32 %v1038, 0.00028619796
      %v1040 = vmul.f32 %v1037, %v1039
      %v1041 = vadd.f32 %v1040, 0.0036580483
      %v1042 = vmul.f32 %v1037, %v1041
      %v1043 = vadd.f32 %v1042, 0.05243302
      %v1044 = vmul.f32 %v1037, %v1043
      %v1045 = vadd.f32 %v1044, 0.18741608
      %v1046 = vmul.f32 %v1037, %v1045
      %v1047 = vadd.f32 %v1046, 1.1283791
      %v1048 = vmul.f32 %v1035, %v1047
      %v1049 = vmul.f32 %v1037, 3.8918573e-05
      %v1050 = vadd.f32 %v1049, 0.001143296
      %v1051 = vmul.f32 %v1037, %v1050
      %v1052 = vadd.f32 %v1051, 0.014752088
      %v1053 = vmul.f32 %v1037, %v1052
      %v1054 = vadd.f32 %v1053, 0.112945676
      %v1055 = vmul.f32 %v1037, %v1054
      %v1056 = vadd.f32 %v1055, 0.4994258
      %v1057 = vmul.f32 %v1037, %v1056
      %v1058 = vadd.f32 %v1057, 1.0
      %v1059 = vrcp.pop %v1058
      %v1060 = vmul.f32 %v1058, %v1059
      %v1061 = vsub.f32 1.0, %v1060
      %v1062 = vmul.f32 %v1059, %v1061
      %v1063 = vadd.f32 %v1059, %v1062
      %vm1064 = vweird.f32 %v1058
      %vm1065 = vweird.f32 %v1059
      %vm1066 = vmor %vm1064, %vm1065
      %v1067 = vsel %vm1066, %v1059, %v1063
      %v1068 = vand.u32 2147483647, %v1058
      %vm1069 = vcmp.eq.f32.partialorder %v1068, 8.507059e+37
      %v1070 = vand.u32 %v1058, 2147483648
      %v1071 = vor.u32 1.1754944e-38, %v1070
      %v1072 = vsel %vm1069, %v1071, %v1067
      %v1073 = vmul.f32 %v1048, %v1072
      %v1074 = vmin.f32 %v1073, 1.0
      %v1075 = vmax.f32 %v1074, -1.0
      %v1076 = vadd.f32 %v1075, 1.0
      %v1077 = vmul.f32 %v1034, %v1076
      %v1078 = vmul.f32 %v1007, %v1077
      %v1079 = vpack.c.bf16 %v1078, %v1078
      %v1080 = vld [vmem:[%s10] sm:$0xf]
      %v1081 = vld [vmem:[%s10 + $0x4] sm:$0xf]
      %v1082 = vld [vmem:[%s11] sm:$0x1]
      %v1084 = vperm.slane %v1082, 0
      %v1088 = vunpack.c.l.b16 %v1080
      %v1089 = vunpack.c.l.b16 %v1081
      %v1090 = vpack.c.b16 %v1089, %v1088
      %v1093 = vsel %vm967, %v1079, 0
      %1095 = vmatpush.bf16.msra.mxu0 0
      %1096 = vmatpush.bf16.msra.mxu0 0
      %1097 = vmatpush.bf16.msra.mxu0 0
      %1098 = vmatpush.bf16.msra.mxu0 0
      %1099 = vmatpush.bf16.msra.mxu0 0
      %1100 = vmatpush.bf16.msra.mxu0 0
      %1101 = vmatpush.bf16.msra.mxu0 0
      %1102 = vmatpush.bf16.msra.mxu0 %v1090
      %1103 = vmatmul.bf16.gmra.mxu0 %v1093
      %v1104 = vpop.f32.mrf.mxu0
      %v1105 = vadd.f32 %v1084, %v1104
      %v1106 = vpop.f32.mrf.mxu0
      %1107 = vdwg.mxu0
      %v1108 = vadd.f32 %v1105, %v984
      %1109 = vxpose.xlu0.b32.start [1/16] %v1108, 128
      %1110 = vxpose.xlu0.b32.cont [2/16] 0.0, 128
      %1111 = vxpose.xlu0.b32.cont [3/16] 0.0, 128
      %1112 = vxpose.xlu0.b32.cont [4/16] 0.0, 128
      %1113 = vxpose.xlu0.b32.cont [5/16] 0.0, 128
      %1114 = vxpose.xlu0.b32.cont [6/16] 0.0, 128
      %1115 = vxpose.xlu0.b32.cont [7/16] 0.0, 128
      %1116 = vxpose.xlu0.b32.cont [8/16] 0.0, 128
      %1117 = vxpose.xlu0.b32.cont [9/16] 0.0, 128
      %1118 = vxpose.xlu0.b32.cont [10/16] 0.0, 128
      %1119 = vxpose.xlu0.b32.cont [11/16] 0.0, 128
      %1120 = vxpose.xlu0.b32.cont [12/16] 0.0, 128
      %1121 = vxpose.xlu0.b32.cont [13/16] 0.0, 128
      %1122 = vxpose.xlu0.b32.cont [14/16] 0.0, 128
      %1123 = vxpose.xlu0.b32.cont [15/16] 0.0, 128
      %1124 = vxpose.xlu0.b32.end [16/16] 0.0, 128
      %v1125 = vpop.trf.xlu0
      %v1126 = vpop.trf.xlu0
      %v1127 = vpop.trf.xlu0
      %v1128 = vpop.trf.xlu0
      %v1129 = vpop.trf.xlu0
      %v1130 = vpop.trf.xlu0
      %v1131 = vpop.trf.xlu0
      %v1132 = vpop.trf.xlu0
      %v1133 = vpop.trf.xlu0
      %v1134 = vpop.trf.xlu0
      %v1135 = vpop.trf.xlu0
      %v1136 = vpop.trf.xlu0
      %v1137 = vpop.trf.xlu0
      %v1138 = vpop.trf.xlu0
      %v1139 = vpop.trf.xlu0
      %v1140 = vpop.trf.xlu0
      %v1141 = vld [vmem:[%s12] sm:$0xf]
      %v1142 = vld [vmem:[%s13] sm:$0xf]
      %v1143 = vld [vmem:[%s14] sm:$0xf]
      %v1144 = vld [vmem:[%s15] sm:$0x1]
      %v1145 = vld [vmem:[%s16] sm:$0xf]
      %v1146 = vld [vmem:[%s16 + $0x4] sm:$0xf]
      %v1147 = vld [vmem:[%s17] sm:$0x1]
      %v1148 = vpack.c.bf16 %v1125, %v1125
      %v1150 = vsel %vm837, %v1148, 0
      %v1153 = vsel %vm877, %v1142, 0
      %1155 = vmatpush.bf16.msra.mxu0 0
      %1156 = vmatpush.bf16.msra.mxu0 0
      %1157 = vmatpush.bf16.msra.mxu0 0
      %1158 = vmatpush.bf16.msra.mxu0 0
      %1159 = vmatpush.bf16.msra.mxu0 0
      %1160 = vmatpush.bf16.msra.mxu0 0
      %1161 = vmatpush.bf16.msra.mxu0 0
      %1162 = vmatpush.bf16.msra.mxu0 %v1153
      %1163 = vmatmul.bf16.gmra.mxu0 %v1150
      %v1164 = vpop.f32.mrf.mxu0
      %v1165 = vadd.f32 0.0, %v1164
      %v1166 = vpop.f32.mrf.mxu0
      %1167 = vdwg.mxu0
      %v1168 = vpack.c.bf16 %v1165, %v1165
      %v1170 = vsel %vm877, %v1141, 0
      %1172 = vmatpush.bf16.msra.mxu0 0
      %1173 = vmatpush.bf16.msra.mxu0 0
      %1174 = vmatpush.bf16.msra.mxu0 0
      %1175 = vmatpush.bf16.msra.mxu0 0
      %1176 = vmatpush.bf16.msra.mxu0 0
      %1177 = vmatpush.bf16.msra.mxu0 0
      %1178 = vmatpush.bf16.msra.mxu0 0
      %1179 = vmatpush.bf16.msra.mxu0 %v1170
      %1180 = vmatmul.bf16.gmra.mxu0 %v1150
      %v1181 = vpop.f32.mrf.mxu0
      %v1182 = vadd.f32 0.0, %v1181
      %v1183 = vpop.f32.mrf.mxu0
      %1184 = vdwg.mxu0
      %v1186 = vperm.slane %v1144, 0
      %v1189 = vsel %vm877, %v1143, 0
      %1191 = vmatpush.bf16.msra.mxu0 0
      %1192 = vmatpush.bf16.msra.mxu0 0
      %1193 = vmatpush.bf16.msra.mxu0 0
      %1194 = vmatpush.bf16.msra.mxu0 0
      %1195 = vmatpush.bf16.msra.mxu0 0
      %1196 = vmatpush.bf16.msra.mxu0 0
      %1197 = vmatpush.bf16.msra.mxu0 0
      %1198 = vmatpush.bf16.msra.mxu0 %v1189
      %1199 = vmatmul.bf16.gmra.mxu0 %v1150
      %v1200 = vpop.f32.mrf.mxu0
      %v1201 = vadd.f32 %v1186, %v1200
      %v1202 = vpop.f32.mrf.mxu0
      %1203 = vdwg.mxu0
      %v1204 = vxor.u32 %v1201, 2147483648
      %v1205 = vmul.f32 %v1204, 1.442695
      %v1206 = vpow.pop %v1205
      %v1207 = vadd.f32 %v1206, 1.0
      %v1208 = vrcp.pop %v1207
      %v1209 = vmul.f32 %v1207, %v1208
      %v1210 = vsub.f32 1.0, %v1209
      %v1211 = vmul.f32 %v1208, %v1210
      %v1212 = vadd.f32 %v1208, %v1211
      %vm1213 = vweird.f32 %v1207
      %vm1214 = vweird.f32 %v1208
      %vm1215 = vmor %vm1213, %vm1214
      %v1216 = vsel %vm1215, %v1208, %v1212
      %v1217 = vand.u32 2147483647, %v1207
      %vm1218 = vcmp.eq.f32.partialorder %v1217, 8.507059e+37
      %v1219 = vand.u32 %v1207, 2147483648
      %v1220 = vor.u32 1.1754944e-38, %v1219
      %v1221 = vsel %vm1218, %v1220, %v1216
      %v1222 = vmul.f32 1.0, %v1221
      %v1223 = vpack.c.bf16 %v1182, %v1182
      %v1225 = vsel %vm837, %v1223, 0
      %v1228 = vsel %vm837, %v1168, 0
      %1230 = vmatpush.bf16.xpose.msra.mxu0 0
      %1231 = vmatpush.bf16.xpose.msra.mxu0 0
      %1232 = vmatpush.bf16.xpose.msra.mxu0 0
      %1233 = vmatpush.bf16.xpose.msra.mxu0 0
      %1234 = vmatpush.bf16.xpose.msra.mxu0 0
      %1235 = vmatpush.bf16.xpose.msra.mxu0 0
      %1236 = vmatpush.bf16.xpose.msra.mxu0 0
      %1237 = vmatpush.bf16.xpose.msra.mxu0 %v1228
      %1238 = vmatmul.bf16.gmra.mxu0 %v1225
      %v1239 = vpop.f32.mrf.mxu0
      %v1240 = vadd.f32 0.0, %v1239
      %v1241 = vpop.f32.mrf.mxu0
      %1242 = vdwg.mxu0
      %vm1243 = vcmask 27648
      %v1244 = vsel %vm1243, %v1240, -inf
      %1245 = vmax.xlane.f32.xlu0 %v1244
      %v1246 = vpop.xlane.xlu0 %1245
      %v1247 = vsub.f32 %v1240, %v1246
      %v1248 = vmul.f32 %v1247, 1.442695
      %v1249 = vpow.pop %v1248
      %v1250 = vsel %vm1243, %v1249, 0.0
      %1251 = vadd.xlane.f32.xlu0 %v1250
      %v1252 = vpop.xlane.xlu0 %1251
      %v1253 = vrcp.pop %v1252
      %v1254 = vmul.f32 %v1249, %v1253
      %v1255 = vpack.c.bf16 %v1254, %v1254
      %v1257 = vunpack.c.l.b16 %v1168
      %v1258 = vpack.c.b16 %v1257, %v1257
      %1259 = vrot.lane.b32.xlu0 %v1258, 112
      %v1260 = vpop.permute.xlu0 %1259
      %v1262 = vsel %vm760, %v1255, 0
      %v1265 = vsel %vm764, %v1260, 0
      %1267 = vmatpush.bf16.msra.mxu0 0
      %1268 = vmatpush.bf16.msra.mxu0 0
      %1269 = vmatpush.bf16.msra.mxu0 0
      %1270 = vmatpush.bf16.msra.mxu0 0
      %1271 = vmatpush.bf16.msra.mxu0 0
      %1272 = vmatpush.bf16.msra.mxu0 0
      %1273 = vmatpush.bf16.msra.mxu0 0
      %1274 = vmatpush.bf16.msra.mxu0 %v1265
      %1275 = vmatmul.bf16.gmra.mxu0 %v1262
      %v1276 = vpop.f32.mrf.mxu0
      %v1277 = vadd.f32 0.0, %v1276
      %v1278 = vpop.f32.mrf.mxu0
      %1279 = vdwg.mxu0
      %1281 = vrot.lane.b32.xlu0 %v1223, 120
      %v1282 = vpop.permute.xlu0 %1281
      %1283 = vrot.lane.b32.xlu0 %v1258, 120
      %v1284 = vpop.permute.xlu0 %1283
      %v1286 = vsel %vm837, %v1282, 0
      %v1289 = vsel %vm837, %v1284, 0
      %1291 = vmatpush.bf16.xpose.msra.mxu0 0
      %1292 = vmatpush.bf16.xpose.msra.mxu0 0
      %1293 = vmatpush.bf16.xpose.msra.mxu0 0
      %1294 = vmatpush.bf16.xpose.msra.mxu0 0
      %1295 = vmatpush.bf16.xpose.msra.mxu0 0
      %1296 = vmatpush.bf16.xpose.msra.mxu0 0
      %1297 = vmatpush.bf16.xpose.msra.mxu0 0
      %1298 = vmatpush.bf16.xpose.msra.mxu0 %v1289
      %1299 = vmatmul.bf16.gmra.mxu0 %v1286
      %v1300 = vpop.f32.mrf.mxu0
      %v1301 = vadd.f32 0.0, %v1300
      %v1302 = vpop.f32.mrf.mxu0
      %1303 = vdwg.mxu0
      %v1304 = vsel %vm1243, %v1301, -inf
      %1305 = vmax.xlane.f32.xlu0 %v1304
      %v1306 = vpop.xlane.xlu0 %1305
      %v1307 = vsub.f32 %v1301, %v1306
      %v1308 = vmul.f32 %v1307, 1.442695
      %v1309 = vpow.pop %v1308
      %v1310 = vsel %vm1243, %v1309, 0.0
      %1311 = vadd.xlane.f32.xlu0 %v1310
      %v1312 = vpop.xlane.xlu0 %1311
      %v1313 = vrcp.pop %v1312
      %v1314 = vmul.f32 %v1309, %v1313
      %v1315 = vpack.c.bf16 %v1314, %v1314
      %1316 = vrot.lane.b32.xlu0 %v1258, 104
      %v1317 = vpop.permute.xlu0 %1316
      %v1319 = vsel %vm760, %v1315, 0
      %v1322 = vsel %vm764, %v1317, 0
      %1324 = vmatpush.bf16.msra.mxu0 0
      %1325 = vmatpush.bf16.msra.mxu0 0
      %1326 = vmatpush.bf16.msra.mxu0 0
      %1327 = vmatpush.bf16.msra.mxu0 0
      %1328 = vmatpush.bf16.msra.mxu0 0
      %1329 = vmatpush.bf16.msra.mxu0 0
      %1330 = vmatpush.bf16.msra.mxu0 0
      %1331 = vmatpush.bf16.msra.mxu0 %v1322
      %1332 = vmatmul.bf16.gmra.mxu0 %v1319
      %v1333 = vpop.f32.mrf.mxu0
      %v1334 = vadd.f32 0.0, %v1333
      %v1335 = vpop.f32.mrf.mxu0
      %1336 = vdwg.mxu0
      %1338 = vrot.lane.b32.xlu0 %v1334, 8
      %v1339 = vpop.permute.xlu0 %1338
      %v1341 = vsel %vm837, %v1277, %v1339
      %v1342 = vmul.f32 %v1341, %v1222
      %v1343 = vpack.c.bf16 %v1342, %v1342
      %v1345 = vperm.slane %v1147, 0
      %v1349 = vunpack.c.l.b16 %v1145
      %v1350 = vunpack.c.l.b16 %v1146
      %v1351 = vpack.c.b16 %v1350, %v1349
      %v1354 = vsel %vm967, %v1343, 0
      %1356 = vmatpush.bf16.msra.mxu0 0
      %1357 = vmatpush.bf16.msra.mxu0 0
      %1358 = vmatpush.bf16.msra.mxu0 0
      %1359 = vmatpush.bf16.msra.mxu0 0
      %1360 = vmatpush.bf16.msra.mxu0 0
      %1361 = vmatpush.bf16.msra.mxu0 0
      %1362 = vmatpush.bf16.msra.mxu0 0
      %1363 = vmatpush.bf16.msra.mxu0 %v1351
      %1364 = vmatmul.bf16.gmra.mxu0 %v1354
      %v1365 = vpop.f32.mrf.mxu0
      %v1366 = vadd.f32 %v1345, %v1365
      %v1367 = vpop.f32.mrf.mxu0
      %1368 = vdwg.mxu0
      %v1369 = vadd.f32 %v1366, %v1125
      %v1370 = vpack.c.bf16 %v1369, %v1369
      %v1371 = vld [vmem:[%s18] sm:$0xf]
      %v1372 = vld [vmem:[%s19] sm:$0x1]
      %v1374 = vperm.slane %v1372, 0
      %v1377 = vsel %vm837, %v1370, 0
      %v1380 = vsel %vm877, %v1371, 0
      %1382 = vmatpush.bf16.msra.mxu0 0
      %1383 = vmatpush.bf16.msra.mxu0 0
      %1384 = vmatpush.bf16.msra.mxu0 0
      %1385 = vmatpush.bf16.msra.mxu0 0
      %1386 = vmatpush.bf16.msra.mxu0 0
      %1387 = vmatpush.bf16.msra.mxu0 0
      %1388 = vmatpush.bf16.msra.mxu0 0
      %1389 = vmatpush.bf16.msra.mxu0 %v1380
      %1390 = vmatmul.bf16.gmra.mxu0 %v1377
      %v1391 = vpop.f32.mrf.mxu0
      %v1392 = vadd.f32 %v1374, %v1391
      %v1393 = vpop.f32.mrf.mxu0
      %1394 = vdwg.mxu0
      %v1396 = vunpack.c.l.b16 %v1371
      %v1397 = vpack.c.b16 %v1396, %v1396
      %1398 = vrot.lane.b32.xlu0 %v1397, 96
      %v1399 = vpop.permute.xlu0 %1398
      %1400 = vrot.lane.b32.xlu0 %v1374, 96
      %v1401 = vpop.permute.xlu0 %1400
      %v1404 = vsel %vm877, %v1399, 0
      %1406 = vmatpush.bf16.msra.mxu0 0
      %1407 = vmatpush.bf16.msra.mxu0 0
      %1408 = vmatpush.bf16.msra.mxu0 0
      %1409 = vmatpush.bf16.msra.mxu0 0
      %1410 = vmatpush.bf16.msra.mxu0 0
      %1411 = vmatpush.bf16.msra.mxu0 0
      %1412 = vmatpush.bf16.msra.mxu0 0
      %1413 = vmatpush.bf16.msra.mxu0 %v1404
      %1414 = vmatmul.bf16.gmra.mxu0 %v1377
      %v1415 = vpop.f32.mrf.mxu0
      %v1416 = vadd.f32 %v1401, %v1415
      %v1417 = vpop.f32.mrf.mxu0
      %1418 = vdwg.mxu0
      %v1419 = vmul.f32 %v1416, 0.5
      %v1420 = vmul.f32 %v1416, 0.70710677
      %v1421 = vmul.f32 %v1420, %v1420
      %v1422 = vmin.f32 16.0, %v1421
      %v1423 = vmul.f32 %v1422, 2.1237322e-06
      %v1424 = vadd.f32 %v1423, 0.00028619796
      %v1425 = vmul.f32 %v1422, %v1424
      %v1426 = vadd.f32 %v1425, 0.0036580483
      %v1427 = vmul.f32 %v1422, %v1426
      %v1428 = vadd.f32 %v1427, 0.05243302
      %v1429 = vmul.f32 %v1422, %v1428
      %v1430 = vadd.f32 %v1429, 0.18741608
      %v1431 = vmul.f32 %v1422, %v1430
      %v1432 = vadd.f32 %v1431, 1.1283791
      %v1433 = vmul.f32 %v1420, %v1432
      %v1434 = vmul.f32 %v1422, 3.8918573e-05
      %v1435 = vadd.f32 %v1434, 0.001143296
      %v1436 = vmul.f32 %v1422, %v1435
      %v1437 = vadd.f32 %v1436, 0.014752088
      %v1438 = vmul.f32 %v1422, %v1437
      %v1439 = vadd.f32 %v1438, 0.112945676
      %v1440 = vmul.f32 %v1422, %v1439
      %v1441 = vadd.f32 %v1440, 0.4994258
      %v1442 = vmul.f32 %v1422, %v1441
      %v1443 = vadd.f32 %v1442, 1.0
      %v1444 = vrcp.pop %v1443
      %v1445 = vmul.f32 %v1443, %v1444
      %v1446 = vsub.f32 1.0, %v1445
      %v1447 = vmul.f32 %v1444, %v1446
      %v1448 = vadd.f32 %v1444, %v1447
      %vm1449 = vweird.f32 %v1443
      %vm1450 = vweird.f32 %v1444
      %vm1451 = vmor %vm1449, %vm1450
      %v1452 = vsel %vm1451, %v1444, %v1448
      %v1453 = vand.u32 2147483647, %v1443
      %vm1454 = vcmp.eq.f32.partialorder %v1453, 8.507059e+37
      %v1455 = vand.u32 %v1443, 2147483648
      %v1456 = vor.u32 1.1754944e-38, %v1455
      %v1457 = vsel %vm1454, %v1456, %v1452
      %v1458 = vmul.f32 %v1433, %v1457
      %v1459 = vmin.f32 %v1458, 1.0
      %v1460 = vmax.f32 %v1459, -1.0
      %v1461 = vadd.f32 %v1460, 1.0
      %v1462 = vmul.f32 %v1419, %v1461
      %v1463 = vmul.f32 %v1392, %v1462
      %v1464 = vpack.c.bf16 %v1463, %v1463
      %v1465 = vld [vmem:[%s20] sm:$0xf]
      %v1466 = vld [vmem:[%s20 + $0x4] sm:$0xf]
      %v1467 = vld [vmem:[%s20 + $0x8] sm:$0xf]
      %v1468 = vld [vmem:[%s20 + $0xc] sm:$0xf]
      %v1469 = vld [vmem:[%s21] sm:$0x1]
      %v1471 = vperm.slane %v1469, 0
      %v1477 = vunpack.c.l.b16 %v1465
      %v1478 = vunpack.c.l.b16 %v1466
      %v1479 = vunpack.c.l.b16 %v1467
      %v1480 = vunpack.c.l.b16 %v1468
      %v1481 = vpack.c.b16 %v1478, %v1477
      %v1482 = vpack.c.b16 %v1480, %v1479
      %vm1485 = vcmask 261120
      %v1487 = vsel %vm1485, %v1464, 0
      %1489 = vmatpush.bf16.msra.mxu0 0
      %1490 = vmatpush.bf16.msra.mxu0 0
      %1491 = vmatpush.bf16.msra.mxu0 0
      %1492 = vmatpush.bf16.msra.mxu0 0
      %1493 = vmatpush.bf16.msra.mxu0 0
      %1494 = vmatpush.bf16.msra.mxu0 0
      %1495 = vmatpush.bf16.msra.mxu0 %v1482
      %1496 = vmatpush.bf16.msra.mxu0 %v1481
      %1497 = vmatmul.bf16.gmra.mxu0 %v1487
      %v1498 = vpop.f32.mrf.mxu0
      %v1499 = vadd.f32 %v1471, %v1498
      %v1500 = vpop.f32.mrf.mxu0
      %1501 = vdwg.mxu0
      %v1502 = vadd.f32 %v1499, %v1369
      %v1503 = vmul.f32 %v1502, 0.25
      %1504 = vxpose.xlu0.b32.start [1/16] %v1503, 128
      %1505 = vxpose.xlu0.b32.cont [2/16] 0.0, 128
      %1506 = vxpose.xlu0.b32.cont [3/16] 0.0, 128
      %1507 = vxpose.xlu0.b32.cont [4/16] 0.0, 128
      %1508 = vxpose.xlu0.b32.cont [5/16] 0.0, 128
      %1509 = vxpose.xlu0.b32.cont [6/16] 0.0, 128
      %1510 = vxpose.xlu0.b32.cont [7/16] 0.0, 128
      %1511 = vxpose.xlu0.b32.cont [8/16] 0.0, 128
      %1512 = vxpose.xlu0.b32.cont [9/16] 0.0, 128
      %1513 = vxpose.xlu0.b32.cont [10/16] 0.0, 128
      %1514 = vxpose.xlu0.b32.cont [11/16] 0.0, 128
      %1515 = vxpose.xlu0.b32.cont [12/16] 0.0, 128
      %1516 = vxpose.xlu0.b32.cont [13/16] 0.0, 128
      %1517 = vxpose.xlu0.b32.cont [14/16] 0.0, 128
      %1518 = vxpose.xlu0.b32.cont [15/16] 0.0, 128
      %1519 = vxpose.xlu0.b32.end [16/16] 0.0, 128
      %v1520 = vpop.trf.xlu0
      %v1521 = vpop.trf.xlu0
      %v1522 = vpop.trf.xlu0
      %v1523 = vpop.trf.xlu0
      %v1524 = vpop.trf.xlu0
      %v1525 = vpop.trf.xlu0
      %v1526 = vpop.trf.xlu0
      %v1527 = vpop.trf.xlu0
      %v1528 = vpop.trf.xlu0
      %v1529 = vpop.trf.xlu0
      %v1530 = vpop.trf.xlu0
      %v1531 = vpop.trf.xlu0
      %v1532 = vpop.trf.xlu0
      %v1533 = vpop.trf.xlu0
      %v1534 = vpop.trf.xlu0
      %v1535 = vpop.trf.xlu0
      %v1537 = vsel %vm760, %v1520, 0
      %v1540 = vsel %vm877, %v1502, 0
      %1542 = vmatpush.msra.mxu0 0.0
      %1543 = vmatpush.msra.mxu0 0.0
      %1544 = vmatpush.msra.mxu0 0.0
      %1545 = vmatpush.msra.mxu0 0.0
      %1546 = vmatpush.msra.mxu0 0.0
      %1547 = vmatpush.msra.mxu0 0.0
      %1548 = vmatpush.msra.mxu0 0.0
      %1549 = vmatpush.msra.mxu0 0.0
      %1550 = vmatpush.msra.mxu0 0.0
      %1551 = vmatpush.msra.mxu0 0.0
      %1552 = vmatpush.msra.mxu0 0.0
      %1553 = vmatpush.msra.mxu0 0.0
      %1554 = vmatpush.msra.mxu0 0.0
      %1555 = vmatpush.msra.mxu0 0.0
      %1556 = vmatpush.msra.mxu0 0.0
      %1557 = vmatpush.msra.mxu0 %v1540
      %1558 = vmatmul.f32.gmra.mxu0 %v1537
      %v1559 = vpop.f32.mrf.mxu0
      %v1560 = vadd.f32 0.0, %v1559
      %1561 = vdwg.mxu0
      %v1562 = vadd.f32 %v719, %v1560
      %1563 = vst.msk [vmem:[%s716] sm:$0xff] %vm837, %v1562
      %vm1564 = vcmask 60416
      %1565 = vst.msk [vmem:[%s712] sm:$0xf] %vm1564, %v1502
      %p1566 = scmp.lt.s32.totalorder %s35, 1
      %s1567 = scalar_select %p1566, %s35, 1
      %s1568 = smul.addr %s1567, 4
      %s1569 = scalar_lea.vmem %s22, %s1568
      %p1570 = scmp.lt.s32.totalorder %s35, 1
      %s1571 = scalar_select %p1570, %s35, 1
      %s1572 = smul.addr %s1571, 8
      %s1573 = scalar_lea.vmem %s23, %s1572
      // Predicated region
      $region109: #{omics_forward.6} parent=107 // pred_check
        %p1574 = pneg %p520
      $region110: #{omics_forward.6} parent=107 // pred_check_branch
        %1576 = sbr.rel (%p1574) target = $region112
      $region111: #{omics_forward.6} parent=107 // pred_region
        _
      $region112: #{omics_forward.6} parent=107 // pred_fallthru
        _
      // Predicated region
      $region113: #{omics_forward.6} parent=107 // pred_check
        %p1577 = pneg %p546
      $region114: #{omics_forward.6} parent=107 // pred_check_branch
        %1579 = sbr.rel (%p1577) target = $region116
      $region115: #{omics_forward.6} parent=107 // pred_region
        _
      $region116: #{omics_forward.6} parent=107 // pred_fallthru
        _
    $region108: #{omics_forward.6} parent=5 // pred_fallthru
      _
    %p1580 = scmp.le.s32.totalorder 2, %s30
    // Predicated region
    $region117: #{omics_forward.6} parent=5 // pred_check
      %p1581 = pneg %p1580
    $region118: #{omics_forward.6} parent=5 // pred_check_branch
      %1583 = sbr.rel (%p1581) target = $region120
    $region119: #{omics_forward.6} parent=5 // pred_region
      %s1584 = ssub.s32 %s30, 2
      // Predicated region
      $region121: #{omics_forward.6} parent=119 // pred_check
        %p1585 = pneg %p526
      $region122: #{omics_forward.6} parent=119 // pred_check_branch
        %1587 = sbr.rel (%p1585) target = $region124
      $region123: #{omics_forward.6} parent=119 // pred_region
        %p1588 = scmp.lt.s32.totalorder %s36, 1
        %s1589 = scalar_select %p1588, %s36, 1
        %s1590 = smul.addr %s1589, 4
        %s1591 = scalar_lea.vmem %s22, %s1590
      $region124: #{omics_forward.6} parent=119 // pred_fallthru
        _
      // Predicated region
      $region125: #{omics_forward.6} parent=119 // pred_check
        %p1592 = pneg %p552
      $region126: #{omics_forward.6} parent=119 // pred_check_branch
        %1594 = sbr.rel (%p1592) target = $region128
      $region127: #{omics_forward.6} parent=119 // pred_region
        %p1595 = scmp.lt.s32.totalorder %s36, 1
        %s1596 = scalar_select %p1595, %s36, 1
        %s1597 = smul.addr %s1596, 8
        %s1598 = scalar_lea.vmem %s23, %s1597
      $region128: #{omics_forward.6} parent=119 // pred_fallthru
        _
    $region120: #{omics_forward.6} parent=5 // pred_fallthru
      _
  $region6: #{omics_forward.6} parent=0 // loop_footer
    %s34 = sadd.s32 1, %s30
  $region7: #{omics_forward.6} parent=0 // loop_footer_branch
    %29 = sbr.rel target = $region3
  $region8: #{omics_forward.6} parent=0 // loop_exit
    _

// kernel: omics_forward.9
$region0: #{omics_forward.9}
  #allocation0 [shape = 'u32[]', space=smem, size = 0x4, offset = 0x4, fixed_abs, tag = 'smem constant byte address 0x4 - core index']
  #allocation1 [shape = 'u32[72,128]{1,0:T(1,128)}', space=vmem, size = 0x9000, scoped, tag = 'internal scratch']
  %s0 = inlined_call_operand.vmem [shape: f32[2,128], index: 0, kind: input, shape index: {}]
  %s1 = inlined_call_operand.vmem [shape: bf16[128,128], index: 1, kind: input, shape index: {}]
  %s2 = inlined_call_operand.vmem [shape: f32[1,128], index: 2, kind: input, shape index: {}]
  %s3 = inlined_call_operand.hbm [shape: bf16[128,128], index: 3, kind: input, shape index: {}]
  %s4 = inlined_call_operand.vmem [shape: f32[1,128], index: 4, kind: input, shape index: {}]
  %s5 = inlined_call_operand.vmem [shape: bf16[128,3], index: 5, kind: input, shape index: {}]
  %s6 = inlined_call_operand.vmem [shape: f32[1,3], index: 6, kind: input, shape index: {}]
  %s7 = inlined_call_operand.hbm [shape: f32[2,3], index: 7, kind: output, shape index: {}]
  %s8 = sld [smem:[#allocation0]]
  $region42: #{omics_forward.9} parent=0
    _
  %s10 = ssub.s32 1, %s8
  %s11 = scalar_select 0, %s10, %s8
  $region1: #{omics_forward.9} parent=0
    #allocation2 [shape = 'u8[32768]{0}', space=vmem, size = 0x8000, scoped, tag = 'input window, operand 3, single buffered']
    #allocation3 [shape = 's32[1]{0}', space=sflag, size = 0x4, scoped, tag = 'scoped memory for omics_forward.9']
    #allocation4 [shape = 's32[1]{0}', space=sflag, size = 0x4, scoped, tag = 'scoped memory for omics_forward.9']
    #allocation5 [shape = 'u8[1024]{0}', space=vmem, size = 0x400, scoped, tag = 'output window, operand 0, single buffered']
    %12 = vsyncpa [#allocation3], 0
    %13 = vsyncpa [#allocation4], 0
    // Predicated region
    $region2: #{omics_forward.9} parent=1 // pred_check
      _
    $region3: #{omics_forward.9} parent=1 // pred_check_branch
      %15 = sbr.rel (0) target = $region5
    $region4: #{omics_forward.9} parent=1 // pred_region
      _
    $region5: #{omics_forward.9} parent=1 // pred_fallthru
      _
    // Predicated region
    $region6: #{omics_forward.9} parent=1 // pred_check
      _
    $region7: #{omics_forward.9} parent=1 // pred_check_branch
      %17 = sbr.rel (0) target = $region9
    $region8: #{omics_forward.9} parent=1 // pred_region
      _
    $region9: #{omics_forward.9} parent=1 // pred_fallthru
      _
    // Predicated region
    $region10: #{omics_forward.9} parent=1 // pred_check
      _
    $region11: #{omics_forward.9} parent=1 // pred_check_branch
      %19 = sbr.rel (0) target = $region13
    $region12: #{omics_forward.9} parent=1 // pred_region
      _
    $region13: #{omics_forward.9} parent=1 // pred_fallthru
      _
    // Predicated region
    $region14: #{omics_forward.9} parent=1 // pred_check
      _
    $region15: #{omics_forward.9} parent=1 // pred_check_branch
      %21 = sbr.rel (0) target = $region17
    $region16: #{omics_forward.9} parent=1 // pred_region
      %23 = vsyncadd [#allocation3], 0
      %s24 = sshll.u32 %s3, 4
      %s25 = int_to_ptr.hbm [resolvable:$true] %s24
      %s26 = sshll.u32 [#allocation2], 4
      %s27 = int_to_ptr.vmem [resolvable:$true] %s26
      %32 = dma.hbm_to_vmem [thread:$0]  %s25, 1024, %s27, [#allocation3], 64, 64, 4
    $region17: #{omics_forward.9} parent=1 // pred_fallthru
      _
    // Predicated region
    $region18: #{omics_forward.9} parent=1 // pred_check
      _
    $region19: #{omics_forward.9} parent=1 // pred_check_branch
      %34 = sbr.rel (0) target = $region21
    $region20: #{omics_forward.9} parent=1 // pred_region
      _
    $region21: #{omics_forward.9} parent=1 // pred_fallthru
      _
    // Predicated region
    $region22: #{omics_forward.9} parent=1 // pred_check
      _
    $region23: #{omics_forward.9} parent=1 // pred_check_branch
      %36 = sbr.rel (0) target = $region25
    $region24: #{omics_forward.9} parent=1 // pred_region
      _
    $region25: #{omics_forward.9} parent=1 // pred_fallthru
      _
    // Predicated region
    $region26: #{omics_forward.9} parent=1 // pred_check
      _
    $region27: #{omics_forward.9} parent=1 // pred_check_branch
      %38 = sbr.rel (0) target = $region29
    $region28: #{omics_forward.9} parent=1 // pred_region
      _
    $region29: #{omics_forward.9} parent=1 // pred_fallthru
      _
    // Predicated region
    $region30: #{omics_forward.9} parent=1 // pred_check
      _
    $region31: #{omics_forward.9} parent=1 // pred_check_branch
      %40 = sbr.rel (0) target = $region33
    $region32: #{omics_forward.9} parent=1 // pred_region
      %42 = dma.done [#allocation3], 1024
    $region33: #{omics_forward.9} parent=1 // pred_fallthru
      _
    %v43 = vld [vmem:[%s0] sm:$0x3]
    %v44 = vpack.c.bf16 %v43, %v43
    %v45 = vld [vmem:[%s1] sm:$0xf]
    %v46 = vld [vmem:[%s1 + $0x4] sm:$0xf]
    %v47 = vld [vmem:[%s1 + $0x8] sm:$0xf]
    %v48 = vld [vmem:[%s1 + $0xc] sm:$0xf]
    %v49 = vld [vmem:[%s1 + $0x10] sm:$0xf]
    %v50 = vld [vmem:[%s1 + $0x14] sm:$0xf]
    %v51 = vld [vmem:[%s1 + $0x18] sm:$0xf]
    %v52 = vld [vmem:[%s1 + $0x1c] sm:$0xf]
    %v53 = vld [vmem:[%s1 + $0x20] sm:$0xf]
    %v54 = vld [vmem:[%s1 + $0x24] sm:$0xf]
    %v55 = vld [vmem:[%s1 + $0x28] sm:$0xf]
    %v56 = vld [vmem:[%s1 + $0x2c] sm:$0xf]
    %v57 = vld [vmem:[%s1 + $0x30] sm:$0xf]
    %v58 = vld [vmem:[%s1 + $0x34] sm:$0xf]
    %v59 = vld [vmem:[%s1 + $0x38] sm:$0xf]
    %v60 = vld [vmem:[%s1 + $0x3c] sm:$0xf]
    %v61 = vld [vmem:[%s2] sm:$0x1]
    %v63 = vperm.slane %v61, 0
    %v81 = vunpack.c.l.b16 %v45
    %v82 = vunpack.c.l.b16 %v46
    %v83 = vunpack.c.l.b16 %v47
    %v84 = vunpack.c.l.b16 %v48
    %v85 = vunpack.c.l.b16 %v49
    %v86 = vunpack.c.l.b16 %v50
    %v87 = vunpack.c.l.b16 %v51
    %v88 = vunpack.c.l.b16 %v52
    %v89 = vunpack.c.l.b16 %v53
    %v90 = vunpack.c.l.b16 %v54
    %v91 = vunpack.c.l.b16 %v55
    %v92 = vunpack.c.l.b16 %v56
    %v93 = vunpack.c.l.b16 %v57
    %v94 = vunpack.c.l.b16 %v58
    %v95 = vunpack.c.l.b16 %v59
    %v96 = vunpack.c.l.b16 %v60
    %v97 = vpack.c.b16 %v82, %v81
    %v98 = vpack.c.b16 %v84, %v83
    %v99 = vpack.c.b16 %v86, %v85
    %v100 = vpack.c.b16 %v88, %v87
    %v101 = vpack.c.b16 %v90, %v89
    %v102 = vpack.c.b16 %v92, %v91
    %v103 = vpack.c.b16 %v94, %v93
    %v104 = vpack.c.b16 %v96, %v95
    %113 = vmatpush.bf16.msra.mxu0 %v104
    %114 = vmatpush.bf16.msra.mxu0 %v103
    %115 = vmatpush.bf16.msra.mxu0 %v102
    %116 = vmatpush.bf16.msra.mxu0 %v101
    %117 = vmatpush.bf16.msra.mxu0 %v100
    %118 = vmatpush.bf16.msra.mxu0 %v99
    %119 = vmatpush.bf16.msra.mxu0 %v98
    %120 = vmatpush.bf16.msra.mxu0 %v97
    %121 = vmatmul.bf16.gmra.mxu0 %v44
    %v122 = vpop.f32.mrf.mxu0
    %v123 = vadd.f32 %v63, %v122
    %v124 = vpop.f32.mrf.mxu0
    %125 = vdwg.mxu0
    %v126 = vmax.f32 %v123, 0.0
    %v127 = vpack.c.bf16 %v126, %v126
    %v128 = vld [vmem:[#allocation2] sm:$0xf]
    %v129 = vld [vmem:[#allocation2 + $0x4] sm:$0xf]
    %v130 = vld [vmem:[#allocation2 + $0x8] sm:$0xf]
    %v131 = vld [vmem:[#allocation2 + $0xc] sm:$0xf]
    %v132 = vld [vmem:[#allocation2 + $0x10] sm:$0xf]
    %v133 = vld [vmem:[#allocation2 + $0x14] sm:$0xf]
    %v134 = vld [vmem:[#allocation2 + $0x18] sm:$0xf]
    %v135 = vld [vmem:[#allocation2 + $0x1c] sm:$0xf]
    %v136 = vld [vmem:[#allocation2 + $0x20] sm:$0xf]
    %v137 = vld [vmem:[#allocation2 + $0x24] sm:$0xf]
    %v138 = vld [vmem:[#allocation2 + $0x28] sm:$0xf]
    %v139 = vld [vmem:[#allocation2 + $0x2c] sm:$0xf]
    %v140 = vld [vmem:[#allocation2 + $0x30] sm:$0xf]
    %v141 = vld [vmem:[#allocation2 + $0x34] sm:$0xf]
    %v142 = vld [vmem:[#allocation2 + $0x38] sm:$0xf]
    %v143 = vld [vmem:[#allocation2 + $0x3c] sm:$0xf]
    %v144 = vld [vmem:[%s4] sm:$0x1]
    %v146 = vperm.slane %v144, 0
    %v164 = vunpack.c.l.b16 %v128
    %v165 = vunpack.c.l.b16 %v129
    %v166 = vunpack.c.l.b16 %v130
    %v167 = vunpack.c.l.b16 %v131
    %v168 = vunpack.c.l.b16 %v132
    %v169 = vunpack.c.l.b16 %v133
    %v170 = vunpack.c.l.b16 %v134
    %v171 = vunpack.c.l.b16 %v135
    %v172 = vunpack.c.l.b16 %v136
    %v173 = vunpack.c.l.b16 %v137
    %v174 = vunpack.c.l.b16 %v138
    %v175 = vunpack.c.l.b16 %v139
    %v176 = vunpack.c.l.b16 %v140
    %v177 = vunpack.c.l.b16 %v141
    %v178 = vunpack.c.l.b16 %v142
    %v179 = vunpack.c.l.b16 %v143
    %v180 = vpack.c.b16 %v165, %v164
    %v181 = vpack.c.b16 %v167, %v166
    %v182 = vpack.c.b16 %v169, %v168
    %v183 = vpack.c.b16 %v171, %v170
    %v184 = vpack.c.b16 %v173, %v172
    %v185 = vpack.c.b16 %v175, %v174
    %v186 = vpack.c.b16 %v177, %v176
    %v187 = vpack.c.b16 %v179, %v178
    %196 = vmatpush.bf16.msra.mxu0 %v187
    %197 = vmatpush.bf16.msra.mxu0 %v186
    %198 = vmatpush.bf16.msra.mxu0 %v185
    %199 = vmatpush.bf16.msra.mxu0 %v184
    %200 = vmatpush.bf16.msra.mxu0 %v183
    %201 = vmatpush.bf16.msra.mxu0 %v182
    %202 = vmatpush.bf16.msra.mxu0 %v181
    %203 = vmatpush.bf16.msra.mxu0 %v180
    %204 = vmatmul.bf16.gmra.mxu0 %v127
    %v205 = vpop.f32.mrf.mxu0
    %v206 = vadd.f32 %v146, %v205
    %v207 = vpop.f32.mrf.mxu0
    %208 = vdwg.mxu0
    %v209 = vmax.f32 %v206, 0.0
    %v210 = vpack.c.bf16 %v209, %v209
    %v211 = vld [vmem:[%s5] sm:$0xf]
    %v212 = vld [vmem:[%s5 + $0x4] sm:$0xf]
    %v213 = vld [vmem:[%s5 + $0x8] sm:$0xf]
    %v214 = vld [vmem:[%s5 + $0xc] sm:$0xf]
    %v215 = vld [vmem:[%s5 + $0x10] sm:$0xf]
    %v216 = vld [vmem:[%s5 + $0x14] sm:$0xf]
    %v217 = vld [vmem:[%s5 + $0x18] sm:$0xf]
    %v218 = vld [vmem:[%s5 + $0x1c] sm:$0xf]
    %v219 = vld [vmem:[%s5 + $0x20] sm:$0xf]
    %v220 = vld [vmem:[%s5 + $0x24] sm:$0xf]
    %v221 = vld [vmem:[%s5 + $0x28] sm:$0xf]
    %v222 = vld [vmem:[%s5 + $0x2c] sm:$0xf]
    %v223 = vld [vmem:[%s5 + $0x30] sm:$0xf]
    %v224 = vld [vmem:[%s5 + $0x34] sm:$0xf]
    %v225 = vld [vmem:[%s5 + $0x38] sm:$0xf]
    %v226 = vld [vmem:[%s5 + $0x3c] sm:$0xf]
    %v227 = vld [vmem:[%s6] sm:$0x1]
    %v229 = vperm.slane %v227, 0
    %v247 = vunpack.c.l.b16 %v211
    %v248 = vunpack.c.l.b16 %v212
    %v249 = vunpack.c.l.b16 %v213
    %v250 = vunpack.c.l.b16 %v214
    %v251 = vunpack.c.l.b16 %v215
    %v252 = vunpack.c.l.b16 %v216
    %v253 = vunpack.c.l.b16 %v217
    %v254 = vunpack.c.l.b16 %v218
    %v255 = vunpack.c.l.b16 %v219
    %v256 = vunpack.c.l.b16 %v220
    %v257 = vunpack.c.l.b16 %v221
    %v258 = vunpack.c.l.b16 %v222
    %v259 = vunpack.c.l.b16 %v223
    %v260 = vunpack.c.l.b16 %v224
    %v261 = vunpack.c.l.b16 %v225
    %v262 = vunpack.c.l.b16 %v226
    %v263 = vpack.c.b16 %v248, %v247
    %v264 = vpack.c.b16 %v250, %v249
    %v265 = vpack.c.b16 %v252, %v251
    %v266 = vpack.c.b16 %v254, %v253
    %v267 = vpack.c.b16 %v256, %v255
    %v268 = vpack.c.b16 %v258, %v257
    %v269 = vpack.c.b16 %v260, %v259
    %v270 = vpack.c.b16 %v262, %v261
    %279 = vmatpush.bf16.msra.mxu0 %v270
    %280 = vmatpush.bf16.msra.mxu0 %v269
    %281 = vmatpush.bf16.msra.mxu0 %v268
    %282 = vmatpush.bf16.msra.mxu0 %v267
    %283 = vmatpush.bf16.msra.mxu0 %v266
    %284 = vmatpush.bf16.msra.mxu0 %v265
    %285 = vmatpush.bf16.msra.mxu0 %v264
    %286 = vmatpush.bf16.msra.mxu0 %v263
    %287 = vmatmul.bf16.gmra.mxu0 %v210
    %v288 = vpop.f32.mrf.mxu0
    %v289 = vadd.f32 %v229, %v288
    %v290 = vpop.f32.mrf.mxu0
    %291 = vdwg.mxu0
    %vm292 = vcmask 17408
    %v293 = vsel %vm292, %v289, -inf
    %294 = vmax.xlane.f32.xlu0 %v293
    %v295 = vpop.xlane.xlu0 %294
    %v296 = vsub.f32 %v289, %v295
    %v297 = vmul.f32 %v296, 1.442695
    %v298 = vpow.pop %v297
    %v299 = vsel %vm292, %v298, 0.0
    %300 = vadd.xlane.f32.xlu0 %v299
    %v301 = vpop.xlane.xlu0 %300
    %v302 = vrcp.pop %v301
    %v303 = vmul.f32 %v298, %v302
    %304 = vst.msk [vmem:[#allocation5] sm:$0x3] %vm292, %v303
    // Predicated region
    $region34: #{omics_forward.9} parent=1 // pred_check
      _
    $region35: #{omics_forward.9} parent=1 // pred_check_branch
      %306 = sbr.rel (0) target = $region37
    $region36: #{omics_forward.9} parent=1 // pred_region
      %308 = vsyncadd [#allocation4], 0
      %s310 = sshll.u32 [#allocation5], 4
      %s311 = int_to_ptr.vmem [resolvable:$true] %s310
      %s312 = sshll.u32 %s7, 4
      %s313 = int_to_ptr.hbm [resolvable:$true] %s312
      %315 = dma.vmem_to_hbm [thread:$0]  %s311, 32, %s313, [#allocation4]
    $region37: #{omics_forward.9} parent=1 // pred_fallthru
      _
    // Predicated region
    $region38: #{omics_forward.9} parent=1 // pred_check
      _
    $region39: #{omics_forward.9} parent=1 // pred_check_branch
      %317 = sbr.rel (0) target = $region41
    $region40: #{omics_forward.9} parent=1 // pred_region
      %319 = dma.done [#allocation4], 32
    $region41: #{omics_forward.9} parent=1 // pred_fallthru
      _
    %320 = vsyncpa [#allocation3], 1
    %321 = vsyncpa [#allocation4], 1

</llo_original>
